<compile_context>
chip_gen: v7x
topology: tpu7x:2x2x1
jax: 0.10.0
libtpu: 0.0.40
codegen_flags: <defaults>
</compile_context>

<pallas_src>
import numpy as np
import jax
import jax.numpy as jnp
from jax.experimental import pallas as pl
from jax.experimental.pallas import tpu as pltpu


# ----------------------------- glue (parameter setup) -----------------------

def gaussian_1d(window_size: int, sigma: float) -> np.ndarray:
    x = np.arange(window_size, dtype=np.float64)
    g = np.exp(-((x - window_size // 2) ** 2) / (2.0 * sigma ** 2))
    return (g / g.sum()).astype(np.float32)


def blur_matrix(n: int, g: np.ndarray) -> np.ndarray:
    """A[i, h] such that (A @ x)[i] == 1-D zero-padded cross-correlation of x with g."""
    ws = g.shape[0]
    p = ws // 2
    A = np.zeros((n, n), dtype=np.float32)
    for i in range(n):
        for k in range(ws):
            h = i + k - p
            if 0 <= h < n:
                A[i, h] += g[k]
    return A


# ----------------------------- Pallas kernel --------------------------------

def _ssim_kernel(x1_ref, x2_ref, ah_ref, awt_ref, out_ref):
    # x1_ref/x2_ref: (1, H, L) packed image group, L = k*W (lane-dense, 128)
    # ah_ref       : (H, H)  resident H-blur matrix
    # awt_ref      : (L, L)  resident kron(I_k, Aw^T) W-blur matrix
    x1 = x1_ref[0]            # (H, L)
    x2 = x2_ref[0]            # (H, L)
    ah = ah_ref[...]          # (H, H)
    awt = awt_ref[...]        # (L, L)
    H = x1.shape[0]

    prec = jax.lax.Precision.HIGHEST

    # Stack the 5 blur inputs along the sublane axis -> one batched W-blur.
    s = jnp.concatenate([x1, x2, x1 * x1, x2 * x2, x1 * x2], axis=0)   # (5H, L)
    t = jnp.dot(s, awt, preferred_element_type=jnp.float32, precision=prec)

    # H-blur per slab with the resident (H, H) Ah (static, tile-aligned slices).
    def hblur(i):
        return jnp.dot(ah, t[i * H:(i + 1) * H, :],
                       preferred_element_type=jnp.float32, precision=prec)

    mu1 = hblur(0)
    mu2 = hblur(1)
    e11 = hblur(2)
    e22 = hblur(3)
    e12 = hblur(4)

    mu1_sq = mu1 * mu1
    mu2_sq = mu2 * mu2
    mu1_mu2 = mu1 * mu2
    sigma1_sq = e11 - mu1_sq
    sigma2_sq = e22 - mu2_sq
    sigma12 = e12 - mu1_mu2

    C1 = 0.01 ** 2
    C2 = 0.03 ** 2
    num = (2.0 * mu1_mu2 + C1) * (2.0 * sigma12 + C2)
    den = (mu1_sq + mu2_sq + C1) * (sigma1_sq + sigma2_sq + C2)
    ssim_map = num / den

    # Per-group partial sum; global mean is finalized in the wrapper.
    out_ref[0, 0] = jnp.sum(ssim_map)


def ssim_pallas(img1: jax.Array, img2: jax.Array, window_size: int = 11) -> jax.Array:
    B, C, H, W = img1.shape
    BC = B * C

    # Lane packing factor: pack k channel-images along lanes to reach 128.
    if 128 % W == 0 and BC % (128 // W) == 0:
        k = 128 // W
    else:
        k = 1                      # fallback: lane-sparse but still correct
    G = BC // k
    L = k * W

    g1d = gaussian_1d(window_size, 1.5)
    Ah = blur_matrix(H, g1d)                                  # (H, H)
    Aw = blur_matrix(W, g1d)                                  # (W, W)
    AwT_pk = np.kron(np.eye(k, dtype=np.float32), Aw.T)       # (L, L) block-diag

    def pack(x):
        x = jnp.asarray(x, jnp.float32).reshape(G, k, H, W)
        return x.transpose(0, 2, 1, 3).reshape(G, H, L)       # (G, H, k*W)

    x1 = pack(img1)
    x2 = pack(img2)

    partials = pl.pallas_call(
        _ssim_kernel,
        grid=(G,),
        out_shape=jax.ShapeDtypeStruct((G, 1), jnp.float32),
        in_specs=[
            pl.BlockSpec((1, H, L), lambda g: (g, 0, 0)),     # x1 group (pipelined)
            pl.BlockSpec((1, H, L), lambda g: (g, 0, 0)),     # x2 group (pipelined)
            pl.BlockSpec((H, H), lambda g: (0, 0)),           # Ah   (resident)
            pl.BlockSpec((L, L), lambda g: (0, 0)),           # AwT  (resident)
        ],
        out_specs=pl.BlockSpec((1, 1), lambda g: (g, 0),
                               memory_space=pltpu.MemorySpace.SMEM),
        compiler_params=pltpu.CompilerParams(
            dimension_semantics=("parallel",)),               # shards over 2 TCs on v7x
    )(x1, x2, jnp.asarray(Ah), jnp.asarray(AwT_pk))

    # size_average=True: global mean over all B*C*H*W elements (tiny glue reduce).
    return jnp.sum(partials) / float(BC * H * W)


# ----------------------------- pure-JAX reference ---------------------------

def ssim_ref(img1, img2, window_size: int = 11):
    B, C, H, W = img1.shape
    g = gaussian_1d(window_size, 1.5)
    w2 = jnp.asarray(np.outer(g, g), jnp.float32)
    kern = jnp.broadcast_to(w2[None, None], (C, 1, window_size, window_size))
    pad = window_size // 2

    def conv(x):
        return jax.lax.conv_general_dilated(
            x, kern, window_strides=(1, 1), padding=[(pad, pad), (pad, pad)],
            feature_group_count=C, dimension_numbers=("NCHW", "OIHW", "NCHW"),
            precision=jax.lax.Precision.HIGHEST)

    mu1, mu2 = conv(img1), conv(img2)
    mu1_sq, mu2_sq, mu1_mu2 = mu1 * mu1, mu2 * mu2, mu1 * mu2
    s1 = conv(img1 * img1) - mu1_sq
    s2 = conv(img2 * img2) - mu2_sq
    s12 = conv(img1 * img2) - mu1_mu2
    C1, C2 = 0.01 ** 2, 0.03 ** 2
    m = (2 * mu1_mu2 + C1) * (2 * s12 + C2) / ((mu1_sq + mu2_sq + C1) * (s1 + s2 + C2))
    return m.mean()


# ----------------------------- main ------------------------------------------

if __name__ == "__main__":
    key = jax.random.PRNGKey(0)
    k1, k2 = jax.random.split(key)
    B, C, H, W = 2, 4, 16, 16
    img1 = jax.random.uniform(k1, (B, C, H, W), dtype=jnp.float32)
    img2 = jax.random.uniform(k2, (B, C, H, W), dtype=jnp.float32)

    out = jax.block_until_ready(ssim_pallas(img1, img2))
    ref = jax.block_until_ready(ssim_ref(img1, img2))

    assert np.allclose(np.asarray(out), np.asarray(ref), atol=1e-3), (out, ref)

    print("KERNEL_OK")
</pallas_src>

<mosaic_0001>
module attributes {stable_mosaic.version = 11 : i64} {
  func.func @_ssim_kernel(%arg0: i32, %arg1: memref<1x16x128xf32, #tpu.memory_space<vmem>>, %arg2: memref<1x16x128xf32, #tpu.memory_space<vmem>>, %arg3: memref<16x16xf32, #tpu.memory_space<vmem>>, %arg4: memref<128x128xf32, #tpu.memory_space<vmem>>, %arg5: memref<1x1xf32, #tpu.memory_space<smem>>) attributes {dimension_semantics = [#tpu.dimension_semantics<parallel>], iteration_bounds = array<i64: 1>, scalar_prefetch = 0 : i64, scratch_operands = 0 : i64, tpu.core_type = #tpu.core_type<tc>, window_params = [{transform_indices = @transform_0, window_bounds = array<i64: 1, 16, 128>}, {transform_indices = @transform_1, window_bounds = array<i64: 1, 16, 128>}, {pipeline_mode = #tpu.pipeline_mode<synchronous>, transform_indices = @transform_2, window_bounds = array<i64: 16, 16>}, {pipeline_mode = #tpu.pipeline_mode<synchronous>, transform_indices = @transform_3, window_bounds = array<i64: 128, 128>}, {transform_indices = @transform_4, window_bounds = array<i64: 1, 1>}]} {
    %c0 = arith.constant 0 : index
    %c0_0 = arith.constant 0 : index
    %c0_1 = arith.constant 0 : index
    %0 = vector.load %arg1[%c0, %c0_0, %c0_1] : memref<1x16x128xf32, #tpu.memory_space<vmem>>, vector<1x16x128xf32>
    %1 = vector.shape_cast %0 : vector<1x16x128xf32> to vector<16x128xf32>
    %c0_2 = arith.constant 0 : index
    %c0_3 = arith.constant 0 : index
    %c0_4 = arith.constant 0 : index
    %2 = vector.load %arg2[%c0_2, %c0_3, %c0_4] : memref<1x16x128xf32, #tpu.memory_space<vmem>>, vector<1x16x128xf32>
    %3 = vector.shape_cast %2 : vector<1x16x128xf32> to vector<16x128xf32>
    %c0_5 = arith.constant 0 : index
    %c0_6 = arith.constant 0 : index
    %4 = vector.load %arg3[%c0_5, %c0_6] : memref<16x16xf32, #tpu.memory_space<vmem>>, vector<16x16xf32>
    %c0_7 = arith.constant 0 : index
    %c0_8 = arith.constant 0 : index
    %5 = vector.load %arg4[%c0_7, %c0_8] : memref<128x128xf32, #tpu.memory_space<vmem>>, vector<128x128xf32>
    %6 = arith.mulf %1, %1 : vector<16x128xf32>
    %7 = arith.mulf %3, %3 : vector<16x128xf32>
    %8 = arith.mulf %1, %3 : vector<16x128xf32>
    %9 = tpu.concatenate %1, %3, %6, %7, %8 in 0 : vector<16x128xf32>, vector<16x128xf32>, vector<16x128xf32>, vector<16x128xf32>, vector<16x128xf32> -> vector<80x128xf32>
    %cst = arith.constant dense<0.000000e+00> : vector<80x128xf32>
    %10 = tpu.matmul %9, %5, %cst {dimension_numbers = #tpu.dot_dimension_numbers<[1], [0], [0], [1], [0, 0, 1, 1], [], []>, precision = #tpu.contract_precision<fp32>} : vector<80x128xf32>, vector<128x128xf32>, vector<80x128xf32> -> vector<80x128xf32>
    %11 = vector.extract_strided_slice %10 {offsets = [0, 0], sizes = [16, 128], strides = [1, 1]} : vector<80x128xf32> to vector<16x128xf32>
    %cst_9 = arith.constant dense<0.000000e+00> : vector<16x128xf32>
    %12 = tpu.matmul %4, %11, %cst_9 {dimension_numbers = #tpu.dot_dimension_numbers<[1], [0], [0], [1], [0, 0, 1, 1], [], []>, precision = #tpu.contract_precision<fp32>} : vector<16x16xf32>, vector<16x128xf32>, vector<16x128xf32> -> vector<16x128xf32>
    %13 = vector.extract_strided_slice %10 {offsets = [16, 0], sizes = [16, 128], strides = [1, 1]} : vector<80x128xf32> to vector<16x128xf32>
    %cst_10 = arith.constant dense<0.000000e+00> : vector<16x128xf32>
    %14 = tpu.matmul %4, %13, %cst_10 {dimension_numbers = #tpu.dot_dimension_numbers<[1], [0], [0], [1], [0, 0, 1, 1], [], []>, precision = #tpu.contract_precision<fp32>} : vector<16x16xf32>, vector<16x128xf32>, vector<16x128xf32> -> vector<16x128xf32>
    %15 = vector.extract_strided_slice %10 {offsets = [32, 0], sizes = [16, 128], strides = [1, 1]} : vector<80x128xf32> to vector<16x128xf32>
    %cst_11 = arith.constant dense<0.000000e+00> : vector<16x128xf32>
    %16 = tpu.matmul %4, %15, %cst_11 {dimension_numbers = #tpu.dot_dimension_numbers<[1], [0], [0], [1], [0, 0, 1, 1], [], []>, precision = #tpu.contract_precision<fp32>} : vector<16x16xf32>, vector<16x128xf32>, vector<16x128xf32> -> vector<16x128xf32>
    %17 = vector.extract_strided_slice %10 {offsets = [48, 0], sizes = [16, 128], strides = [1, 1]} : vector<80x128xf32> to vector<16x128xf32>
    %cst_12 = arith.constant dense<0.000000e+00> : vector<16x128xf32>
    %18 = tpu.matmul %4, %17, %cst_12 {dimension_numbers = #tpu.dot_dimension_numbers<[1], [0], [0], [1], [0, 0, 1, 1], [], []>, precision = #tpu.contract_precision<fp32>} : vector<16x16xf32>, vector<16x128xf32>, vector<16x128xf32> -> vector<16x128xf32>
    %19 = vector.extract_strided_slice %10 {offsets = [64, 0], sizes = [16, 128], strides = [1, 1]} : vector<80x128xf32> to vector<16x128xf32>
    %cst_13 = arith.constant dense<0.000000e+00> : vector<16x128xf32>
    %20 = tpu.matmul %4, %19, %cst_13 {dimension_numbers = #tpu.dot_dimension_numbers<[1], [0], [0], [1], [0, 0, 1, 1], [], []>, precision = #tpu.contract_precision<fp32>} : vector<16x16xf32>, vector<16x128xf32>, vector<16x128xf32> -> vector<16x128xf32>
    %21 = arith.mulf %12, %12 : vector<16x128xf32>
    %22 = arith.mulf %14, %14 : vector<16x128xf32>
    %23 = arith.mulf %12, %14 : vector<16x128xf32>
    %24 = arith.subf %16, %21 : vector<16x128xf32>
    %25 = arith.subf %18, %22 : vector<16x128xf32>
    %26 = arith.subf %20, %23 : vector<16x128xf32>
    %cst_14 = arith.constant 2.000000e+00 : f32
    %27 = vector.broadcast %cst_14 : f32 to vector<16x128xf32>
    %28 = arith.mulf %27, %23 : vector<16x128xf32>
    %cst_15 = arith.constant 9.99999974E-5 : f32
    %29 = vector.broadcast %cst_15 : f32 to vector<16x128xf32>
    %30 = arith.addf %28, %29 : vector<16x128xf32>
    %cst_16 = arith.constant 2.000000e+00 : f32
    %31 = vector.broadcast %cst_16 : f32 to vector<16x128xf32>
    %32 = arith.mulf %31, %26 : vector<16x128xf32>
    %cst_17 = arith.constant 8.99999984E-4 : f32
    %33 = vector.broadcast %cst_17 : f32 to vector<16x128xf32>
    %34 = arith.addf %32, %33 : vector<16x128xf32>
    %35 = arith.mulf %30, %34 : vector<16x128xf32>
    %36 = arith.addf %21, %22 : vector<16x128xf32>
    %cst_18 = arith.constant 9.99999974E-5 : f32
    %37 = vector.broadcast %cst_18 : f32 to vector<16x128xf32>
    %38 = arith.addf %36, %37 : vector<16x128xf32>
    %39 = arith.addf %24, %25 : vector<16x128xf32>
    %cst_19 = arith.constant 8.99999984E-4 : f32
    %40 = vector.broadcast %cst_19 : f32 to vector<16x128xf32>
    %41 = arith.addf %39, %40 : vector<16x128xf32>
    %42 = arith.mulf %38, %41 : vector<16x128xf32>
    %43 = arith.divf %35, %42 : vector<16x128xf32>
    %44 = vector.shape_cast %43 : vector<16x128xf32> to vector<1x16x128xf32>
    %cst_20 = arith.constant dense<0.000000e+00> : vector<1xf32>
    %45 = vector.multi_reduction <add>, %44, %cst_20 [1, 2] : vector<1x16x128xf32> to vector<1xf32>
    %46 = vector.shape_cast %45 : vector<1xf32> to vector<1x1x1xf32>
    %47 = vector.extract %46[0, 0, 0] : f32 from vector<1x1x1xf32>
    %c0_21 = arith.constant 0 : index
    %c0_22 = arith.constant 0 : index
    %48 = memref.load %arg5[%c0_21, %c0_22] : memref<1x1xf32, #tpu.memory_space<smem>>
    memref.store %47, %arg5[%c0_21, %c0_22] : memref<1x1xf32, #tpu.memory_space<smem>>
    return
  }
  func.func @transform_0(%arg0: i32) -> (i32, i32, i32) {
    %c0_i32 = arith.constant 0 : i32
    %c0_i32_0 = arith.constant 0 : i32
    %c0_i32_1 = arith.constant 0 : i32
    return %arg0, %c0_i32, %c0_i32_0 : i32, i32, i32
  }
  func.func @transform_1(%arg0: i32) -> (i32, i32, i32) {
    %c0_i32 = arith.constant 0 : i32
    %c0_i32_0 = arith.constant 0 : i32
    %c0_i32_1 = arith.constant 0 : i32
    return %arg0, %c0_i32, %c0_i32_0 : i32, i32, i32
  }
  func.func @transform_2(%arg0: i32) -> (i32, i32) {
    %c0_i32 = arith.constant 0 : i32
    %c0_i32_0 = arith.constant 0 : i32
    %c0_i32_1 = arith.constant 0 : i32
    return %c0_i32, %c0_i32_0 : i32, i32
  }
  func.func @transform_3(%arg0: i32) -> (i32, i32) {
    %c0_i32 = arith.constant 0 : i32
    %c0_i32_0 = arith.constant 0 : i32
    %c0_i32_1 = arith.constant 0 : i32
    return %c0_i32, %c0_i32_0 : i32, i32
  }
  func.func @transform_4(%arg0: i32) -> (i32, i32) {
    %c0_i32 = arith.constant 0 : i32
    %c0_i32_0 = arith.constant 0 : i32
    return %arg0, %c0_i32 : i32, i32
  }
}

</mosaic_0001>

<llo_original>
// kernel: tpu_custom_call.1
$region0: #{tpu_custom_call.1}
  #allocation0 [shape = 'u32[]', space=smem, size = 0x4, offset = 0x4, fixed_abs, tag = 'smem constant byte address 0x4 - core index']
  #allocation1 [shape = 'u32[144,128]{1,0:T(1,128)}', space=vmem, size = 0x12000, scoped, tag = 'internal scratch']
  %s0 = inlined_call_operand.hbm [shape: f32[1,16,128], index: 0, kind: input, shape index: {}]
  %s1 = inlined_call_operand.hbm [shape: f32[1,16,128], index: 1, kind: input, shape index: {}]
  %s2 = inlined_call_operand.hbm [shape: f32[16,16], index: 2, kind: input, shape index: {}]
  %s3 = inlined_call_operand.hbm [shape: f32[128,128], index: 3, kind: input, shape index: {}]
  %s4 = inlined_call_operand.hbm [shape: f32[1,1], index: 4, kind: output, shape index: {}]
  %s5 = sld [smem:[#allocation0]]
  $region42: #{tpu_custom_call.1} parent=0
    _
  %s7 = ssub.s32 1, %s5
  %s8 = scalar_select 0, %s7, %s5
  $region1: #{tpu_custom_call.1} parent=0
    #allocation2 [shape = 'u8[8192]{0}', space=vmem, size = 0x2000, scoped, tag = 'input window, operand 0, single buffered']
    #allocation3 [shape = 's32[1]{0}', space=sflag, size = 0x4, scoped, tag = 'scoped memory for tpu_custom_call.1']
    #allocation4 [shape = 's32[1]{0}', space=sflag, size = 0x4, scoped, tag = 'scoped memory for tpu_custom_call.1']
    #allocation5 [shape = 'u8[8192]{0}', space=vmem, size = 0x2000, scoped, tag = 'input window, operand 1, single buffered']
    #allocation6 [shape = 's32[1]{0}', space=sflag, size = 0x4, scoped, tag = 'scoped memory for tpu_custom_call.1']
    #allocation7 [shape = 'u8[8192]{0}', space=vmem, size = 0x2000, scoped, tag = 'input window, operand 2, single buffered']
    #allocation8 [shape = 'u8[65536]{0}', space=vmem, size = 0x10000, scoped, tag = 'input window, operand 3, single buffered']
    #allocation9 [shape = 's32[1]{0}', space=sflag, size = 0x4, scoped, tag = 'scoped memory for tpu_custom_call.1']
    #allocation10 [shape = 'u8[512]{0}', space=smem, size = 0x200, scoped, tag = 'output window, operand 0, single buffered']
    %9 = vsyncpa [#allocation3], 0
    %10 = vsyncpa [#allocation6], 0
    %11 = vsyncpa [#allocation9], 0
    %12 = vsyncpa [#allocation4], 0
    // Predicated region
    $region2: #{tpu_custom_call.1} parent=1 // pred_check
      _
    $region3: #{tpu_custom_call.1} parent=1 // pred_check_branch
      %14 = sbr.rel (0) target = $region5
    $region4: #{tpu_custom_call.1} parent=1 // pred_region
      %s16 = ssub.s32 256, 256
      %17 = vsyncadd [#allocation3], %s16
      %s18 = sshll.u32 [#allocation2], 4
      %s19 = int_to_ptr.vmem [resolvable:$true] %s18
      %24 = dma.hbm_to_vmem [thread:$0]  %s0, 256, %s19, [#allocation3], 128, 128, 8
    $region5: #{tpu_custom_call.1} parent=1 // pred_fallthru
      _
    // Predicated region
    $region6: #{tpu_custom_call.1} parent=1 // pred_check
      _
    $region7: #{tpu_custom_call.1} parent=1 // pred_check_branch
      %26 = sbr.rel (0) target = $region9
    $region8: #{tpu_custom_call.1} parent=1 // pred_region
      %s28 = ssub.s32 256, 256
      %29 = vsyncadd [#allocation6], %s28
      %s30 = sshll.u32 [#allocation5], 4
      %s31 = int_to_ptr.vmem [resolvable:$true] %s30
      %36 = dma.hbm_to_vmem [thread:$0]  %s1, 256, %s31, [#allocation6], 128, 128, 8
    $region9: #{tpu_custom_call.1} parent=1 // pred_fallthru
      _
    // Predicated region
    $region10: #{tpu_custom_call.1} parent=1 // pred_check
      _
    $region11: #{tpu_custom_call.1} parent=1 // pred_check_branch
      %38 = sbr.rel (0) target = $region13
    $region12: #{tpu_custom_call.1} parent=1 // pred_region
      %s40 = ssub.s32 256, 256
      %41 = vsyncadd [#allocation6], %s40
      %s42 = sshll.u32 [#allocation7], 4
      %s43 = int_to_ptr.vmem [resolvable:$true] %s42
      %48 = dma.hbm_to_vmem [thread:$0]  %s2, 256, %s43, [#allocation6], 128, 128, 8
    $region13: #{tpu_custom_call.1} parent=1 // pred_fallthru
      _
    // Predicated region
    $region14: #{tpu_custom_call.1} parent=1 // pred_check
      _
    $region15: #{tpu_custom_call.1} parent=1 // pred_check_branch
      %50 = sbr.rel (0) target = $region17
    $region16: #{tpu_custom_call.1} parent=1 // pred_region
      %s52 = ssub.s32 2048, 2048
      %53 = vsyncadd [#allocation9], %s52
      %s54 = sshll.u32 [#allocation8], 4
      %s55 = int_to_ptr.vmem [resolvable:$true] %s54
      %60 = dma.hbm_to_vmem [thread:$0]  %s3, 2048, %s55, [#allocation9], 128, 128, 8
    $region17: #{tpu_custom_call.1} parent=1 // pred_fallthru
      _
    // Predicated region
    $region18: #{tpu_custom_call.1} parent=1 // pred_check
      _
    $region19: #{tpu_custom_call.1} parent=1 // pred_check_branch
      %62 = sbr.rel (0) target = $region21
    $region20: #{tpu_custom_call.1} parent=1 // pred_region
      %63 = dma.done [#allocation3], 256
    $region21: #{tpu_custom_call.1} parent=1 // pred_fallthru
      _
    // Predicated region
    $region22: #{tpu_custom_call.1} parent=1 // pred_check
      _
    $region23: #{tpu_custom_call.1} parent=1 // pred_check_branch
      %65 = sbr.rel (0) target = $region25
    $region24: #{tpu_custom_call.1} parent=1 // pred_region
      %66 = dma.done [#allocation6], 256
    $region25: #{tpu_custom_call.1} parent=1 // pred_fallthru
      _
    // Predicated region
    $region26: #{tpu_custom_call.1} parent=1 // pred_check
      _
    $region27: #{tpu_custom_call.1} parent=1 // pred_check_branch
      %68 = sbr.rel (0) target = $region29
    $region28: #{tpu_custom_call.1} parent=1 // pred_region
      %69 = dma.done [#allocation6], 256
    $region29: #{tpu_custom_call.1} parent=1 // pred_fallthru
      _
    // Predicated region
    $region30: #{tpu_custom_call.1} parent=1 // pred_check
      _
    $region31: #{tpu_custom_call.1} parent=1 // pred_check_branch
      %71 = sbr.rel (0) target = $region33
    $region32: #{tpu_custom_call.1} parent=1 // pred_region
      %72 = dma.done [#allocation9], 2048
    $region33: #{tpu_custom_call.1} parent=1 // pred_fallthru
      _
    %v73 = vld [vmem:[#allocation2] sm:$0xff]
    %v74 = vld [vmem:[#allocation2 + $0x8] sm:$0xff]
    %v75 = vld [vmem:[#allocation5] sm:$0xff]
    %v76 = vld [vmem:[#allocation5 + $0x8] sm:$0xff]
    %v77 = vld [vmem:[#allocation7] sm:$0xff]
    %v78 = vld [vmem:[#allocation7 + $0x8] sm:$0xff]
    %v79 = vld [vmem:[#allocation8] sm:$0xff]
    %v80 = vld [vmem:[#allocation8 + $0x8] sm:$0xff]
    %v81 = vld [vmem:[#allocation8 + $0x10] sm:$0xff]
    %v82 = vld [vmem:[#allocation8 + $0x18] sm:$0xff]
    %v83 = vld [vmem:[#allocation8 + $0x20] sm:$0xff]
    %v84 = vld [vmem:[#allocation8 + $0x28] sm:$0xff]
    %v85 = vld [vmem:[#allocation8 + $0x30] sm:$0xff]
    %v86 = vld [vmem:[#allocation8 + $0x38] sm:$0xff]
    %v87 = vld [vmem:[#allocation8 + $0x40] sm:$0xff]
    %v88 = vld [vmem:[#allocation8 + $0x48] sm:$0xff]
    %v89 = vld [vmem:[#allocation8 + $0x50] sm:$0xff]
    %v90 = vld [vmem:[#allocation8 + $0x58] sm:$0xff]
    %v91 = vld [vmem:[#allocation8 + $0x60] sm:$0xff]
    %v92 = vld [vmem:[#allocation8 + $0x68] sm:$0xff]
    %v93 = vld [vmem:[#allocation8 + $0x70] sm:$0xff]
    %v94 = vld [vmem:[#allocation8 + $0x78] sm:$0xff]
    %v95 = vmul.f32 %v73, %v73
    %v96 = vmul.f32 %v74, %v74
    %v97 = vmul.f32 %v75, %v75
    %v98 = vmul.f32 %v76, %v76
    %v99 = vmul.f32 %v73, %v75
    %v100 = vmul.f32 %v74, %v76
    %101 = vmatprep.subr.mxu0 0.0
    %v102 = vand.u32 %v79, 4294901760
    %103 = vmatpush1.msra.mxu0 %v102
    %104 = vmatprep.subr.mxu0 0.0
    %v105 = vand.u32 %v80, 4294901760
    %106 = vmatpush1.msra.mxu0 %v105
    %107 = vmatprep.subr.mxu0 0.0
    %v108 = vand.u32 %v81, 4294901760
    %109 = vmatpush1.msra.mxu0 %v108
    %110 = vmatprep.subr.mxu0 0.0
    %v111 = vand.u32 %v82, 4294901760
    %112 = vmatpush1.msra.mxu0 %v111
    %113 = vmatprep.subr.mxu0 0.0
    %v114 = vand.u32 %v83, 4294901760
    %115 = vmatpush1.msra.mxu0 %v114
    %116 = vmatprep.subr.mxu0 0.0
    %v117 = vand.u32 %v84, 4294901760
    %118 = vmatpush1.msra.mxu0 %v117
    %119 = vmatprep.subr.mxu0 0.0
    %v120 = vand.u32 %v85, 4294901760
    %121 = vmatpush1.msra.mxu0 %v120
    %122 = vmatprep.subr.mxu0 0.0
    %v123 = vand.u32 %v86, 4294901760
    %124 = vmatpush1.msra.mxu0 %v123
    %125 = vmatprep.subr.mxu0 0.0
    %v126 = vand.u32 %v87, 4294901760
    %127 = vmatpush1.msra.mxu0 %v126
    %128 = vmatprep.subr.mxu0 0.0
    %v129 = vand.u32 %v88, 4294901760
    %130 = vmatpush1.msra.mxu0 %v129
    %131 = vmatprep.subr.mxu0 0.0
    %v132 = vand.u32 %v89, 4294901760
    %133 = vmatpush1.msra.mxu0 %v132
    %134 = vmatprep.subr.mxu0 0.0
    %v135 = vand.u32 %v90, 4294901760
    %136 = vmatpush1.msra.mxu0 %v135
    %137 = vmatprep.subr.mxu0 0.0
    %v138 = vand.u32 %v91, 4294901760
    %139 = vmatpush1.msra.mxu0 %v138
    %140 = vmatprep.subr.mxu0 0.0
    %v141 = vand.u32 %v92, 4294901760
    %142 = vmatpush1.msra.mxu0 %v141
    %143 = vmatprep.subr.mxu0 0.0
    %v144 = vand.u32 %v93, 4294901760
    %145 = vmatpush1.msra.mxu0 %v144
    %146 = vmatprep.subr.mxu0 0.0
    %v147 = vand.u32 %v94, 4294901760
    %148 = vmatpush1.msra.mxu0 %v147
    %149 = vmatprep.subr.mxu0 0.0
    %150 = vmatpush1.msra.mxu0 0.0
    %151 = vmatprep.subr.mxu0 0.0
    %152 = vmatpush1.msra.mxu0 0.0
    %153 = vmatprep.subr.mxu0 0.0
    %154 = vmatpush1.msra.mxu0 0.0
    %155 = vmatprep.subr.mxu0 0.0
    %156 = vmatpush1.msra.mxu0 0.0
    %157 = vmatprep.subr.mxu0 0.0
    %158 = vmatpush1.msra.mxu0 0.0
    %159 = vmatprep.subr.mxu0 0.0
    %160 = vmatpush1.msra.mxu0 0.0
    %161 = vmatprep.subr.mxu0 0.0
    %162 = vmatpush1.msra.mxu0 0.0
    %163 = vmatprep.subr.mxu0 0.0
    %164 = vmatpush1.msra.mxu0 0.0
    %165 = vmatprep.subr.mxu0 0.0
    %166 = vmatpush1.msra.mxu0 0.0
    %167 = vmatprep.subr.mxu0 0.0
    %168 = vmatpush1.msra.mxu0 0.0
    %169 = vmatprep.subr.mxu0 0.0
    %170 = vmatpush1.msra.mxu0 0.0
    %171 = vmatprep.subr.mxu0 0.0
    %172 = vmatpush1.msra.mxu0 0.0
    %173 = vmatprep.subr.mxu0 0.0
    %174 = vmatpush1.msra.mxu0 0.0
    %175 = vmatprep.subr.mxu0 0.0
    %176 = vmatpush1.msra.mxu0 0.0
    %177 = vmatprep.subr.mxu0 0.0
    %178 = vmatpush1.msra.mxu0 0.0
    %179 = vmatprep.subr.mxu0 0.0
    %180 = vmatpush1.msra.mxu0 0.0
    %181 = vmatprep.mubr.f32.mxu0 0.0
    %v182 = vand.u32 %v73, 4294901760
    %v183 = vsub.f32 %v73, %v182
    %v184 = vand.u32 %v183, 4294901760
    %v185 = vsub.f32 %v183, %v184
    %v186 = vand.u32 %v185, 4294901760
    %187 = vmatmul.mubr.f32.gmra.mrb[0].mxu0 %v186
    %v188 = vpop.f32.mrb[0].mxu0
    %v189 = vadd.f32 0.0, %v188
    %v190 = vpop.f32.mrb[0].mxu0
    %191 = vmatprep.mubr.f32.mxu0 0.0
    %v192 = vand.u32 %v74, 4294901760
    %v193 = vsub.f32 %v74, %v192
    %v194 = vand.u32 %v193, 4294901760
    %v195 = vsub.f32 %v193, %v194
    %v196 = vand.u32 %v195, 4294901760
    %197 = vmatmul.mubr.f32.gmra.mrb[0].mxu0 %v196
    %v198 = vpop.f32.mrb[0].mxu0
    %v199 = vadd.f32 0.0, %v198
    %v200 = vpop.f32.mrb[0].mxu0
    %201 = vmatprep.mubr.f32.mxu0 0.0
    %v202 = vand.u32 %v75, 4294901760
    %v203 = vsub.f32 %v75, %v202
    %v204 = vand.u32 %v203, 4294901760
    %v205 = vsub.f32 %v203, %v204
    %v206 = vand.u32 %v205, 4294901760
    %207 = vmatmul.mubr.f32.gmra.mrb[0].mxu0 %v206
    %v208 = vpop.f32.mrb[0].mxu0
    %v209 = vadd.f32 0.0, %v208
    %v210 = vpop.f32.mrb[0].mxu0
    %211 = vmatprep.mubr.f32.mxu0 0.0
    %v212 = vand.u32 %v76, 4294901760
    %v213 = vsub.f32 %v76, %v212
    %v214 = vand.u32 %v213, 4294901760
    %v215 = vsub.f32 %v213, %v214
    %v216 = vand.u32 %v215, 4294901760
    %217 = vmatmul.mubr.f32.gmra.mrb[0].mxu0 %v216
    %v218 = vpop.f32.mrb[0].mxu0
    %v219 = vadd.f32 0.0, %v218
    %v220 = vpop.f32.mrb[0].mxu0
    %221 = vmatprep.mubr.f32.mxu0 0.0
    %v222 = vand.u32 %v95, 4294901760
    %v223 = vsub.f32 %v95, %v222
    %v224 = vand.u32 %v223, 4294901760
    %v225 = vsub.f32 %v223, %v224
    %v226 = vand.u32 %v225, 4294901760
    %227 = vmatmul.mubr.f32.gmra.mrb[0].mxu0 %v226
    %v228 = vpop.f32.mrb[0].mxu0
    %v229 = vadd.f32 0.0, %v228
    %v230 = vpop.f32.mrb[0].mxu0
    %231 = vmatprep.mubr.f32.mxu0 0.0
    %v232 = vand.u32 %v96, 4294901760
    %v233 = vsub.f32 %v96, %v232
    %v234 = vand.u32 %v233, 4294901760
    %v235 = vsub.f32 %v233, %v234
    %v236 = vand.u32 %v235, 4294901760
    %237 = vmatmul.mubr.f32.gmra.mrb[0].mxu0 %v236
    %v238 = vpop.f32.mrb[0].mxu0
    %v239 = vadd.f32 0.0, %v238
    %v240 = vpop.f32.mrb[0].mxu0
    %241 = vmatprep.mubr.f32.mxu0 0.0
    %v242 = vand.u32 %v97, 4294901760
    %v243 = vsub.f32 %v97, %v242
    %v244 = vand.u32 %v243, 4294901760
    %v245 = vsub.f32 %v243, %v244
    %v246 = vand.u32 %v245, 4294901760
    %247 = vmatmul.mubr.f32.gmra.mrb[0].mxu0 %v246
    %v248 = vpop.f32.mrb[0].mxu0
    %v249 = vadd.f32 0.0, %v248
    %v250 = vpop.f32.mrb[0].mxu0
    %251 = vmatprep.mubr.f32.mxu0 0.0
    %v252 = vand.u32 %v98, 4294901760
    %v253 = vsub.f32 %v98, %v252
    %v254 = vand.u32 %v253, 4294901760
    %v255 = vsub.f32 %v253, %v254
    %v256 = vand.u32 %v255, 4294901760
    %257 = vmatmul.mubr.f32.gmra.mrb[0].mxu0 %v256
    %v258 = vpop.f32.mrb[0].mxu0
    %v259 = vadd.f32 0.0, %v258
    %v260 = vpop.f32.mrb[0].mxu0
    %261 = vmatprep.mubr.f32.mxu0 0.0
    %v262 = vand.u32 %v99, 4294901760
    %v263 = vsub.f32 %v99, %v262
    %v264 = vand.u32 %v263, 4294901760
    %v265 = vsub.f32 %v263, %v264
    %v266 = vand.u32 %v265, 4294901760
    %267 = vmatmul.mubr.f32.gmra.mrb[0].mxu0 %v266
    %v268 = vpop.f32.mrb[0].mxu0
    %v269 = vadd.f32 0.0, %v268
    %v270 = vpop.f32.mrb[0].mxu0
    %271 = vmatprep.mubr.f32.mxu0 0.0
    %v272 = vand.u32 %v100, 4294901760
    %v273 = vsub.f32 %v100, %v272
    %v274 = vand.u32 %v273, 4294901760
    %v275 = vsub.f32 %v273, %v274
    %v276 = vand.u32 %v275, 4294901760
    %277 = vmatmul.mubr.f32.gmra.mrb[0].mxu0 %v276
    %v278 = vpop.f32.mrb[0].mxu0
    %v279 = vadd.f32 0.0, %v278
    %v280 = vpop.f32.mrb[0].mxu0
    %281 = vdwg.mxu0
    %282 = vmatprep.subr.mxu0 0.0
    %v283 = vand.u32 %v79, 4294901760
    %v284 = vsub.f32 %v79, %v283
    %v285 = vand.u32 %v284, 4294901760
    %v286 = vsub.f32 %v284, %v285
    %v287 = vand.u32 %v286, 4294901760
    %288 = vmatpush1.msra.mxu0 %v287
    %289 = vmatprep.subr.mxu0 0.0
    %v290 = vand.u32 %v80, 4294901760
    %v291 = vsub.f32 %v80, %v290
    %v292 = vand.u32 %v291, 4294901760
    %v293 = vsub.f32 %v291, %v292
    %v294 = vand.u32 %v293, 4294901760
    %295 = vmatpush1.msra.mxu0 %v294
    %296 = vmatprep.subr.mxu0 0.0
    %v297 = vand.u32 %v81, 4294901760
    %v298 = vsub.f32 %v81, %v297
    %v299 = vand.u32 %v298, 4294901760
    %v300 = vsub.f32 %v298, %v299
    %v301 = vand.u32 %v300, 4294901760
    %302 = vmatpush1.msra.mxu0 %v301
    %303 = vmatprep.subr.mxu0 0.0
    %v304 = vand.u32 %v82, 4294901760
    %v305 = vsub.f32 %v82, %v304
    %v306 = vand.u32 %v305, 4294901760
    %v307 = vsub.f32 %v305, %v306
    %v308 = vand.u32 %v307, 4294901760
    %309 = vmatpush1.msra.mxu0 %v308
    %310 = vmatprep.subr.mxu0 0.0
    %v311 = vand.u32 %v83, 4294901760
    %v312 = vsub.f32 %v83, %v311
    %v313 = vand.u32 %v312, 4294901760
    %v314 = vsub.f32 %v312, %v313
    %v315 = vand.u32 %v314, 4294901760
    %316 = vmatpush1.msra.mxu0 %v315
    %317 = vmatprep.subr.mxu0 0.0
    %v318 = vand.u32 %v84, 4294901760
    %v319 = vsub.f32 %v84, %v318
    %v320 = vand.u32 %v319, 4294901760
    %v321 = vsub.f32 %v319, %v320
    %v322 = vand.u32 %v321, 4294901760
    %323 = vmatpush1.msra.mxu0 %v322
    %324 = vmatprep.subr.mxu0 0.0
    %v325 = vand.u32 %v85, 4294901760
    %v326 = vsub.f32 %v85, %v325
    %v327 = vand.u32 %v326, 4294901760
    %v328 = vsub.f32 %v326, %v327
    %v329 = vand.u32 %v328, 4294901760
    %330 = vmatpush1.msra.mxu0 %v329
    %331 = vmatprep.subr.mxu0 0.0
    %v332 = vand.u32 %v86, 4294901760
    %v333 = vsub.f32 %v86, %v332
    %v334 = vand.u32 %v333, 4294901760
    %v335 = vsub.f32 %v333, %v334
    %v336 = vand.u32 %v335, 4294901760
    %337 = vmatpush1.msra.mxu0 %v336
    %338 = vmatprep.subr.mxu0 0.0
    %v339 = vand.u32 %v87, 4294901760
    %v340 = vsub.f32 %v87, %v339
    %v341 = vand.u32 %v340, 4294901760
    %v342 = vsub.f32 %v340, %v341
    %v343 = vand.u32 %v342, 4294901760
    %344 = vmatpush1.msra.mxu0 %v343
    %345 = vmatprep.subr.mxu0 0.0
    %v346 = vand.u32 %v88, 4294901760
    %v347 = vsub.f32 %v88, %v346
    %v348 = vand.u32 %v347, 4294901760
    %v349 = vsub.f32 %v347, %v348
    %v350 = vand.u32 %v349, 4294901760
    %351 = vmatpush1.msra.mxu0 %v350
    %352 = vmatprep.subr.mxu0 0.0
    %v353 = vand.u32 %v89, 4294901760
    %v354 = vsub.f32 %v89, %v353
    %v355 = vand.u32 %v354, 4294901760
    %v356 = vsub.f32 %v354, %v355
    %v357 = vand.u32 %v356, 4294901760
    %358 = vmatpush1.msra.mxu0 %v357
    %359 = vmatprep.subr.mxu0 0.0
    %v360 = vand.u32 %v90, 4294901760
    %v361 = vsub.f32 %v90, %v360
    %v362 = vand.u32 %v361, 4294901760
    %v363 = vsub.f32 %v361, %v362
    %v364 = vand.u32 %v363, 4294901760
    %365 = vmatpush1.msra.mxu0 %v364
    %366 = vmatprep.subr.mxu0 0.0
    %v367 = vand.u32 %v91, 4294901760
    %v368 = vsub.f32 %v91, %v367
    %v369 = vand.u32 %v368, 4294901760
    %v370 = vsub.f32 %v368, %v369
    %v371 = vand.u32 %v370, 4294901760
    %372 = vmatpush1.msra.mxu0 %v371
    %373 = vmatprep.subr.mxu0 0.0
    %v374 = vand.u32 %v92, 4294901760
    %v375 = vsub.f32 %v92, %v374
    %v376 = vand.u32 %v375, 4294901760
    %v377 = vsub.f32 %v375, %v376
    %v378 = vand.u32 %v377, 4294901760
    %379 = vmatpush1.msra.mxu0 %v378
    %380 = vmatprep.subr.mxu0 0.0
    %v381 = vand.u32 %v93, 4294901760
    %v382 = vsub.f32 %v93, %v381
    %v383 = vand.u32 %v382, 4294901760
    %v384 = vsub.f32 %v382, %v383
    %v385 = vand.u32 %v384, 4294901760
    %386 = vmatpush1.msra.mxu0 %v385
    %387 = vmatprep.subr.mxu0 0.0
    %v388 = vand.u32 %v94, 4294901760
    %v389 = vsub.f32 %v94, %v388
    %v390 = vand.u32 %v389, 4294901760
    %v391 = vsub.f32 %v389, %v390
    %v392 = vand.u32 %v391, 4294901760
    %393 = vmatpush1.msra.mxu0 %v392
    %394 = vmatprep.subr.mxu0 0.0
    %395 = vmatpush1.msra.mxu0 0.0
    %396 = vmatprep.subr.mxu0 0.0
    %397 = vmatpush1.msra.mxu0 0.0
    %398 = vmatprep.subr.mxu0 0.0
    %399 = vmatpush1.msra.mxu0 0.0
    %400 = vmatprep.subr.mxu0 0.0
    %401 = vmatpush1.msra.mxu0 0.0
    %402 = vmatprep.subr.mxu0 0.0
    %403 = vmatpush1.msra.mxu0 0.0
    %404 = vmatprep.subr.mxu0 0.0
    %405 = vmatpush1.msra.mxu0 0.0
    %406 = vmatprep.subr.mxu0 0.0
    %407 = vmatpush1.msra.mxu0 0.0
    %408 = vmatprep.subr.mxu0 0.0
    %409 = vmatpush1.msra.mxu0 0.0
    %410 = vmatprep.subr.mxu0 0.0
    %411 = vmatpush1.msra.mxu0 0.0
    %412 = vmatprep.subr.mxu0 0.0
    %413 = vmatpush1.msra.mxu0 0.0
    %414 = vmatprep.subr.mxu0 0.0
    %415 = vmatpush1.msra.mxu0 0.0
    %416 = vmatprep.subr.mxu0 0.0
    %417 = vmatpush1.msra.mxu0 0.0
    %418 = vmatprep.subr.mxu0 0.0
    %419 = vmatpush1.msra.mxu0 0.0
    %420 = vmatprep.subr.mxu0 0.0
    %421 = vmatpush1.msra.mxu0 0.0
    %422 = vmatprep.subr.mxu0 0.0
    %423 = vmatpush1.msra.mxu0 0.0
    %424 = vmatprep.subr.mxu0 0.0
    %425 = vmatpush1.msra.mxu0 0.0
    %426 = vmatprep.mubr.f32.mxu0 0.0
    %v427 = vand.u32 %v73, 4294901760
    %428 = vmatmul.mubr.f32.gmra.mrb[0].mxu0 %v427
    %v429 = vpop.f32.mrb[0].mxu0
    %v430 = vadd.f32 %v189, %v429
    %v431 = vpop.f32.mrb[0].mxu0
    %432 = vmatprep.mubr.f32.mxu0 0.0
    %v433 = vand.u32 %v74, 4294901760
    %434 = vmatmul.mubr.f32.gmra.mrb[0].mxu0 %v433
    %v435 = vpop.f32.mrb[0].mxu0
    %v436 = vadd.f32 %v199, %v435
    %v437 = vpop.f32.mrb[0].mxu0
    %438 = vmatprep.mubr.f32.mxu0 0.0
    %v439 = vand.u32 %v75, 4294901760
    %440 = vmatmul.mubr.f32.gmra.mrb[0].mxu0 %v439
    %v441 = vpop.f32.mrb[0].mxu0
    %v442 = vadd.f32 %v209, %v441
    %v443 = vpop.f32.mrb[0].mxu0
    %444 = vmatprep.mubr.f32.mxu0 0.0
    %v445 = vand.u32 %v76, 4294901760
    %446 = vmatmul.mubr.f32.gmra.mrb[0].mxu0 %v445
    %v447 = vpop.f32.mrb[0].mxu0
    %v448 = vadd.f32 %v219, %v447
    %v449 = vpop.f32.mrb[0].mxu0
    %450 = vmatprep.mubr.f32.mxu0 0.0
    %v451 = vand.u32 %v95, 4294901760
    %452 = vmatmul.mubr.f32.gmra.mrb[0].mxu0 %v451
    %v453 = vpop.f32.mrb[0].mxu0
    %v454 = vadd.f32 %v229, %v453
    %v455 = vpop.f32.mrb[0].mxu0
    %456 = vmatprep.mubr.f32.mxu0 0.0
    %v457 = vand.u32 %v96, 4294901760
    %458 = vmatmul.mubr.f32.gmra.mrb[0].mxu0 %v457
    %v459 = vpop.f32.mrb[0].mxu0
    %v460 = vadd.f32 %v239, %v459
    %v461 = vpop.f32.mrb[0].mxu0
    %462 = vmatprep.mubr.f32.mxu0 0.0
    %v463 = vand.u32 %v97, 4294901760
    %464 = vmatmul.mubr.f32.gmra.mrb[0].mxu0 %v463
    %v465 = vpop.f32.mrb[0].mxu0
    %v466 = vadd.f32 %v249, %v465
    %v467 = vpop.f32.mrb[0].mxu0
    %468 = vmatprep.mubr.f32.mxu0 0.0
    %v469 = vand.u32 %v98, 4294901760
    %470 = vmatmul.mubr.f32.gmra.mrb[0].mxu0 %v469
    %v471 = vpop.f32.mrb[0].mxu0
    %v472 = vadd.f32 %v259, %v471
    %v473 = vpop.f32.mrb[0].mxu0
    %474 = vmatprep.mubr.f32.mxu0 0.0
    %v475 = vand.u32 %v99, 4294901760
    %476 = vmatmul.mubr.f32.gmra.mrb[0].mxu0 %v475
    %v477 = vpop.f32.mrb[0].mxu0
    %v478 = vadd.f32 %v269, %v477
    %v479 = vpop.f32.mrb[0].mxu0
    %480 = vmatprep.mubr.f32.mxu0 0.0
    %v481 = vand.u32 %v100, 4294901760
    %482 = vmatmul.mubr.f32.gmra.mrb[0].mxu0 %v481
    %v483 = vpop.f32.mrb[0].mxu0
    %v484 = vadd.f32 %v279, %v483
    %v485 = vpop.f32.mrb[0].mxu0
    %486 = vdwg.mxu0
    %487 = vmatprep.subr.mxu0 0.0
    %v488 = vand.u32 %v79, 4294901760
    %v489 = vsub.f32 %v79, %v488
    %490 = vmatpush1.msra.mxu0 %v489
    %491 = vmatprep.subr.mxu0 0.0
    %v492 = vand.u32 %v80, 4294901760
    %v493 = vsub.f32 %v80, %v492
    %494 = vmatpush1.msra.mxu0 %v493
    %495 = vmatprep.subr.mxu0 0.0
    %v496 = vand.u32 %v81, 4294901760
    %v497 = vsub.f32 %v81, %v496
    %498 = vmatpush1.msra.mxu0 %v497
    %499 = vmatprep.subr.mxu0 0.0
    %v500 = vand.u32 %v82, 4294901760
    %v501 = vsub.f32 %v82, %v500
    %502 = vmatpush1.msra.mxu0 %v501
    %503 = vmatprep.subr.mxu0 0.0
    %v504 = vand.u32 %v83, 4294901760
    %v505 = vsub.f32 %v83, %v504
    %506 = vmatpush1.msra.mxu0 %v505
    %507 = vmatprep.subr.mxu0 0.0
    %v508 = vand.u32 %v84, 4294901760
    %v509 = vsub.f32 %v84, %v508
    %510 = vmatpush1.msra.mxu0 %v509
    %511 = vmatprep.subr.mxu0 0.0
    %v512 = vand.u32 %v85, 4294901760
    %v513 = vsub.f32 %v85, %v512
    %514 = vmatpush1.msra.mxu0 %v513
    %515 = vmatprep.subr.mxu0 0.0
    %v516 = vand.u32 %v86, 4294901760
    %v517 = vsub.f32 %v86, %v516
    %518 = vmatpush1.msra.mxu0 %v517
    %519 = vmatprep.subr.mxu0 0.0
    %v520 = vand.u32 %v87, 4294901760
    %v521 = vsub.f32 %v87, %v520
    %522 = vmatpush1.msra.mxu0 %v521
    %523 = vmatprep.subr.mxu0 0.0
    %v524 = vand.u32 %v88, 4294901760
    %v525 = vsub.f32 %v88, %v524
    %526 = vmatpush1.msra.mxu0 %v525
    %527 = vmatprep.subr.mxu0 0.0
    %v528 = vand.u32 %v89, 4294901760
    %v529 = vsub.f32 %v89, %v528
    %530 = vmatpush1.msra.mxu0 %v529
    %531 = vmatprep.subr.mxu0 0.0
    %v532 = vand.u32 %v90, 4294901760
    %v533 = vsub.f32 %v90, %v532
    %534 = vmatpush1.msra.mxu0 %v533
    %535 = vmatprep.subr.mxu0 0.0
    %v536 = vand.u32 %v91, 4294901760
    %v537 = vsub.f32 %v91, %v536
    %538 = vmatpush1.msra.mxu0 %v537
    %539 = vmatprep.subr.mxu0 0.0
    %v540 = vand.u32 %v92, 4294901760
    %v541 = vsub.f32 %v92, %v540
    %542 = vmatpush1.msra.mxu0 %v541
    %543 = vmatprep.subr.mxu0 0.0
    %v544 = vand.u32 %v93, 4294901760
    %v545 = vsub.f32 %v93, %v544
    %546 = vmatpush1.msra.mxu0 %v545
    %547 = vmatprep.subr.mxu0 0.0
    %v548 = vand.u32 %v94, 4294901760
    %v549 = vsub.f32 %v94, %v548
    %550 = vmatpush1.msra.mxu0 %v549
    %551 = vmatprep.subr.mxu0 0.0
    %552 = vmatpush1.msra.mxu0 0.0
    %553 = vmatprep.subr.mxu0 0.0
    %554 = vmatpush1.msra.mxu0 0.0
    %555 = vmatprep.subr.mxu0 0.0
    %556 = vmatpush1.msra.mxu0 0.0
    %557 = vmatprep.subr.mxu0 0.0
    %558 = vmatpush1.msra.mxu0 0.0
    %559 = vmatprep.subr.mxu0 0.0
    %560 = vmatpush1.msra.mxu0 0.0
    %561 = vmatprep.subr.mxu0 0.0
    %562 = vmatpush1.msra.mxu0 0.0
    %563 = vmatprep.subr.mxu0 0.0
    %564 = vmatpush1.msra.mxu0 0.0
    %565 = vmatprep.subr.mxu0 0.0
    %566 = vmatpush1.msra.mxu0 0.0
    %567 = vmatprep.subr.mxu0 0.0
    %568 = vmatpush1.msra.mxu0 0.0
    %569 = vmatprep.subr.mxu0 0.0
    %570 = vmatpush1.msra.mxu0 0.0
    %571 = vmatprep.subr.mxu0 0.0
    %572 = vmatpush1.msra.mxu0 0.0
    %573 = vmatprep.subr.mxu0 0.0
    %574 = vmatpush1.msra.mxu0 0.0
    %575 = vmatprep.subr.mxu0 0.0
    %576 = vmatpush1.msra.mxu0 0.0
    %577 = vmatprep.subr.mxu0 0.0
    %578 = vmatpush1.msra.mxu0 0.0
    %579 = vmatprep.subr.mxu0 0.0
    %580 = vmatpush1.msra.mxu0 0.0
    %581 = vmatprep.subr.mxu0 0.0
    %582 = vmatpush1.msra.mxu0 0.0
    %583 = vmatprep.mubr.f32.mxu0 0.0
    %v584 = vand.u32 %v73, 4294901760
    %v585 = vsub.f32 %v73, %v584
    %586 = vmatmul.mubr.f32.gmra.mrb[0].mxu0 %v585
    %v587 = vpop.f32.mrb[0].mxu0
    %v588 = vadd.f32 %v430, %v587
    %v589 = vpop.f32.mrb[0].mxu0
    %590 = vmatprep.mubr.f32.mxu0 0.0
    %v591 = vand.u32 %v74, 4294901760
    %v592 = vsub.f32 %v74, %v591
    %593 = vmatmul.mubr.f32.gmra.mrb[0].mxu0 %v592
    %v594 = vpop.f32.mrb[0].mxu0
    %v595 = vadd.f32 %v436, %v594
    %v596 = vpop.f32.mrb[0].mxu0
    %597 = vmatprep.mubr.f32.mxu0 0.0
    %v598 = vand.u32 %v75, 4294901760
    %v599 = vsub.f32 %v75, %v598
    %600 = vmatmul.mubr.f32.gmra.mrb[0].mxu0 %v599
    %v601 = vpop.f32.mrb[0].mxu0
    %v602 = vadd.f32 %v442, %v601
    %v603 = vpop.f32.mrb[0].mxu0
    %604 = vmatprep.mubr.f32.mxu0 0.0
    %v605 = vand.u32 %v76, 4294901760
    %v606 = vsub.f32 %v76, %v605
    %607 = vmatmul.mubr.f32.gmra.mrb[0].mxu0 %v606
    %v608 = vpop.f32.mrb[0].mxu0
    %v609 = vadd.f32 %v448, %v608
    %v610 = vpop.f32.mrb[0].mxu0
    %611 = vmatprep.mubr.f32.mxu0 0.0
    %v612 = vand.u32 %v95, 4294901760
    %v613 = vsub.f32 %v95, %v612
    %614 = vmatmul.mubr.f32.gmra.mrb[0].mxu0 %v613
    %v615 = vpop.f32.mrb[0].mxu0
    %v616 = vadd.f32 %v454, %v615
    %v617 = vpop.f32.mrb[0].mxu0
    %618 = vmatprep.mubr.f32.mxu0 0.0
    %v619 = vand.u32 %v96, 4294901760
    %v620 = vsub.f32 %v96, %v619
    %621 = vmatmul.mubr.f32.gmra.mrb[0].mxu0 %v620
    %v622 = vpop.f32.mrb[0].mxu0
    %v623 = vadd.f32 %v460, %v622
    %v624 = vpop.f32.mrb[0].mxu0
    %625 = vmatprep.mubr.f32.mxu0 0.0
    %v626 = vand.u32 %v97, 4294901760
    %v627 = vsub.f32 %v97, %v626
    %628 = vmatmul.mubr.f32.gmra.mrb[0].mxu0 %v627
    %v629 = vpop.f32.mrb[0].mxu0
    %v630 = vadd.f32 %v466, %v629
    %v631 = vpop.f32.mrb[0].mxu0
    %632 = vmatprep.mubr.f32.mxu0 0.0
    %v633 = vand.u32 %v98, 4294901760
    %v634 = vsub.f32 %v98, %v633
    %635 = vmatmul.mubr.f32.gmra.mrb[0].mxu0 %v634
    %v636 = vpop.f32.mrb[0].mxu0
    %v637 = vadd.f32 %v472, %v636
    %v638 = vpop.f32.mrb[0].mxu0
    %639 = vmatprep.mubr.f32.mxu0 0.0
    %v640 = vand.u32 %v99, 4294901760
    %v641 = vsub.f32 %v99, %v640
    %642 = vmatmul.mubr.f32.gmra.mrb[0].mxu0 %v641
    %v643 = vpop.f32.mrb[0].mxu0
    %v644 = vadd.f32 %v478, %v643
    %v645 = vpop.f32.mrb[0].mxu0
    %646 = vmatprep.mubr.f32.mxu0 0.0
    %v647 = vand.u32 %v100, 4294901760
    %v648 = vsub.f32 %v100, %v647
    %649 = vmatmul.mubr.f32.gmra.mrb[0].mxu0 %v648
    %v650 = vpop.f32.mrb[0].mxu0
    %v651 = vadd.f32 %v484, %v650
    %v652 = vpop.f32.mrb[0].mxu0
    %653 = vdwg.mxu0
    %654 = vmatprep.subr.mxu0 0.0
    %v655 = vand.u32 %v79, 4294901760
    %656 = vmatpush1.msra.mxu0 %v655
    %657 = vmatprep.subr.mxu0 0.0
    %v658 = vand.u32 %v80, 4294901760
    %659 = vmatpush1.msra.mxu0 %v658
    %660 = vmatprep.subr.mxu0 0.0
    %v661 = vand.u32 %v81, 4294901760
    %662 = vmatpush1.msra.mxu0 %v661
    %663 = vmatprep.subr.mxu0 0.0
    %v664 = vand.u32 %v82, 4294901760
    %665 = vmatpush1.msra.mxu0 %v664
    %666 = vmatprep.subr.mxu0 0.0
    %v667 = vand.u32 %v83, 4294901760
    %668 = vmatpush1.msra.mxu0 %v667
    %669 = vmatprep.subr.mxu0 0.0
    %v670 = vand.u32 %v84, 4294901760
    %671 = vmatpush1.msra.mxu0 %v670
    %672 = vmatprep.subr.mxu0 0.0
    %v673 = vand.u32 %v85, 4294901760
    %674 = vmatpush1.msra.mxu0 %v673
    %675 = vmatprep.subr.mxu0 0.0
    %v676 = vand.u32 %v86, 4294901760
    %677 = vmatpush1.msra.mxu0 %v676
    %678 = vmatprep.subr.mxu0 0.0
    %v679 = vand.u32 %v87, 4294901760
    %680 = vmatpush1.msra.mxu0 %v679
    %681 = vmatprep.subr.mxu0 0.0
    %v682 = vand.u32 %v88, 4294901760
    %683 = vmatpush1.msra.mxu0 %v682
    %684 = vmatprep.subr.mxu0 0.0
    %v685 = vand.u32 %v89, 4294901760
    %686 = vmatpush1.msra.mxu0 %v685
    %687 = vmatprep.subr.mxu0 0.0
    %v688 = vand.u32 %v90, 4294901760
    %689 = vmatpush1.msra.mxu0 %v688
    %690 = vmatprep.subr.mxu0 0.0
    %v691 = vand.u32 %v91, 4294901760
    %692 = vmatpush1.msra.mxu0 %v691
    %693 = vmatprep.subr.mxu0 0.0
    %v694 = vand.u32 %v92, 4294901760
    %695 = vmatpush1.msra.mxu0 %v694
    %696 = vmatprep.subr.mxu0 0.0
    %v697 = vand.u32 %v93, 4294901760
    %698 = vmatpush1.msra.mxu0 %v697
    %699 = vmatprep.subr.mxu0 0.0
    %v700 = vand.u32 %v94, 4294901760
    %701 = vmatpush1.msra.mxu0 %v700
    %702 = vmatprep.subr.mxu0 0.0
    %703 = vmatpush1.msra.mxu0 0.0
    %704 = vmatprep.subr.mxu0 0.0
    %705 = vmatpush1.msra.mxu0 0.0
    %706 = vmatprep.subr.mxu0 0.0
    %707 = vmatpush1.msra.mxu0 0.0
    %708 = vmatprep.subr.mxu0 0.0
    %709 = vmatpush1.msra.mxu0 0.0
    %710 = vmatprep.subr.mxu0 0.0
    %711 = vmatpush1.msra.mxu0 0.0
    %712 = vmatprep.subr.mxu0 0.0
    %713 = vmatpush1.msra.mxu0 0.0
    %714 = vmatprep.subr.mxu0 0.0
    %715 = vmatpush1.msra.mxu0 0.0
    %716 = vmatprep.subr.mxu0 0.0
    %717 = vmatpush1.msra.mxu0 0.0
    %718 = vmatprep.subr.mxu0 0.0
    %719 = vmatpush1.msra.mxu0 0.0
    %720 = vmatprep.subr.mxu0 0.0
    %721 = vmatpush1.msra.mxu0 0.0
    %722 = vmatprep.subr.mxu0 0.0
    %723 = vmatpush1.msra.mxu0 0.0
    %724 = vmatprep.subr.mxu0 0.0
    %725 = vmatpush1.msra.mxu0 0.0
    %726 = vmatprep.subr.mxu0 0.0
    %727 = vmatpush1.msra.mxu0 0.0
    %728 = vmatprep.subr.mxu0 0.0
    %729 = vmatpush1.msra.mxu0 0.0
    %730 = vmatprep.subr.mxu0 0.0
    %731 = vmatpush1.msra.mxu0 0.0
    %732 = vmatprep.subr.mxu0 0.0
    %733 = vmatpush1.msra.mxu0 0.0
    %734 = vmatprep.mubr.f32.mxu0 0.0
    %v735 = vand.u32 %v73, 4294901760
    %v736 = vsub.f32 %v73, %v735
    %v737 = vand.u32 %v736, 4294901760
    %738 = vmatmul.mubr.f32.gmra.mrb[0].mxu0 %v737
    %v739 = vpop.f32.mrb[0].mxu0
    %v740 = vadd.f32 %v588, %v739
    %v741 = vpop.f32.mrb[0].mxu0
    %742 = vmatprep.mubr.f32.mxu0 0.0
    %v743 = vand.u32 %v74, 4294901760
    %v744 = vsub.f32 %v74, %v743
    %v745 = vand.u32 %v744, 4294901760
    %746 = vmatmul.mubr.f32.gmra.mrb[0].mxu0 %v745
    %v747 = vpop.f32.mrb[0].mxu0
    %v748 = vadd.f32 %v595, %v747
    %v749 = vpop.f32.mrb[0].mxu0
    %750 = vmatprep.mubr.f32.mxu0 0.0
    %v751 = vand.u32 %v75, 4294901760
    %v752 = vsub.f32 %v75, %v751
    %v753 = vand.u32 %v752, 4294901760
    %754 = vmatmul.mubr.f32.gmra.mrb[0].mxu0 %v753
    %v755 = vpop.f32.mrb[0].mxu0
    %v756 = vadd.f32 %v602, %v755
    %v757 = vpop.f32.mrb[0].mxu0
    %758 = vmatprep.mubr.f32.mxu0 0.0
    %v759 = vand.u32 %v76, 4294901760
    %v760 = vsub.f32 %v76, %v759
    %v761 = vand.u32 %v760, 4294901760
    %762 = vmatmul.mubr.f32.gmra.mrb[0].mxu0 %v761
    %v763 = vpop.f32.mrb[0].mxu0
    %v764 = vadd.f32 %v609, %v763
    %v765 = vpop.f32.mrb[0].mxu0
    %766 = vmatprep.mubr.f32.mxu0 0.0
    %v767 = vand.u32 %v95, 4294901760
    %v768 = vsub.f32 %v95, %v767
    %v769 = vand.u32 %v768, 4294901760
    %770 = vmatmul.mubr.f32.gmra.mrb[0].mxu0 %v769
    %v771 = vpop.f32.mrb[0].mxu0
    %v772 = vadd.f32 %v616, %v771
    %v773 = vpop.f32.mrb[0].mxu0
    %774 = vmatprep.mubr.f32.mxu0 0.0
    %v775 = vand.u32 %v96, 4294901760
    %v776 = vsub.f32 %v96, %v775
    %v777 = vand.u32 %v776, 4294901760
    %778 = vmatmul.mubr.f32.gmra.mrb[0].mxu0 %v777
    %v779 = vpop.f32.mrb[0].mxu0
    %v780 = vadd.f32 %v623, %v779
    %v781 = vpop.f32.mrb[0].mxu0
    %782 = vmatprep.mubr.f32.mxu0 0.0
    %v783 = vand.u32 %v97, 4294901760
    %v784 = vsub.f32 %v97, %v783
    %v785 = vand.u32 %v784, 4294901760
    %786 = vmatmul.mubr.f32.gmra.mrb[0].mxu0 %v785
    %v787 = vpop.f32.mrb[0].mxu0
    %v788 = vadd.f32 %v630, %v787
    %v789 = vpop.f32.mrb[0].mxu0
    %790 = vmatprep.mubr.f32.mxu0 0.0
    %v791 = vand.u32 %v98, 4294901760
    %v792 = vsub.f32 %v98, %v791
    %v793 = vand.u32 %v792, 4294901760
    %794 = vmatmul.mubr.f32.gmra.mrb[0].mxu0 %v793
    %v795 = vpop.f32.mrb[0].mxu0
    %v796 = vadd.f32 %v637, %v795
    %v797 = vpop.f32.mrb[0].mxu0
    %798 = vmatprep.mubr.f32.mxu0 0.0
    %v799 = vand.u32 %v99, 4294901760
    %v800 = vsub.f32 %v99, %v799
    %v801 = vand.u32 %v800, 4294901760
    %802 = vmatmul.mubr.f32.gmra.mrb[0].mxu0 %v801
    %v803 = vpop.f32.mrb[0].mxu0
    %v804 = vadd.f32 %v644, %v803
    %v805 = vpop.f32.mrb[0].mxu0
    %806 = vmatprep.mubr.f32.mxu0 0.0
    %v807 = vand.u32 %v100, 4294901760
    %v808 = vsub.f32 %v100, %v807
    %v809 = vand.u32 %v808, 4294901760
    %810 = vmatmul.mubr.f32.gmra.mrb[0].mxu0 %v809
    %v811 = vpop.f32.mrb[0].mxu0
    %v812 = vadd.f32 %v651, %v811
    %v813 = vpop.f32.mrb[0].mxu0
    %814 = vdwg.mxu0
    %815 = vmatprep.subr.mxu0 0.0
    %v816 = vand.u32 %v79, 4294901760
    %v817 = vsub.f32 %v79, %v816
    %v818 = vand.u32 %v817, 4294901760
    %819 = vmatpush1.msra.mxu0 %v818
    %820 = vmatprep.subr.mxu0 0.0
    %v821 = vand.u32 %v80, 4294901760
    %v822 = vsub.f32 %v80, %v821
    %v823 = vand.u32 %v822, 4294901760
    %824 = vmatpush1.msra.mxu0 %v823
    %825 = vmatprep.subr.mxu0 0.0
    %v826 = vand.u32 %v81, 4294901760
    %v827 = vsub.f32 %v81, %v826
    %v828 = vand.u32 %v827, 4294901760
    %829 = vmatpush1.msra.mxu0 %v828
    %830 = vmatprep.subr.mxu0 0.0
    %v831 = vand.u32 %v82, 4294901760
    %v832 = vsub.f32 %v82, %v831
    %v833 = vand.u32 %v832, 4294901760
    %834 = vmatpush1.msra.mxu0 %v833
    %835 = vmatprep.subr.mxu0 0.0
    %v836 = vand.u32 %v83, 4294901760
    %v837 = vsub.f32 %v83, %v836
    %v838 = vand.u32 %v837, 4294901760
    %839 = vmatpush1.msra.mxu0 %v838
    %840 = vmatprep.subr.mxu0 0.0
    %v841 = vand.u32 %v84, 4294901760
    %v842 = vsub.f32 %v84, %v841
    %v843 = vand.u32 %v842, 4294901760
    %844 = vmatpush1.msra.mxu0 %v843
    %845 = vmatprep.subr.mxu0 0.0
    %v846 = vand.u32 %v85, 4294901760
    %v847 = vsub.f32 %v85, %v846
    %v848 = vand.u32 %v847, 4294901760
    %849 = vmatpush1.msra.mxu0 %v848
    %850 = vmatprep.subr.mxu0 0.0
    %v851 = vand.u32 %v86, 4294901760
    %v852 = vsub.f32 %v86, %v851
    %v853 = vand.u32 %v852, 4294901760
    %854 = vmatpush1.msra.mxu0 %v853
    %855 = vmatprep.subr.mxu0 0.0
    %v856 = vand.u32 %v87, 4294901760
    %v857 = vsub.f32 %v87, %v856
    %v858 = vand.u32 %v857, 4294901760
    %859 = vmatpush1.msra.mxu0 %v858
    %860 = vmatprep.subr.mxu0 0.0
    %v861 = vand.u32 %v88, 4294901760
    %v862 = vsub.f32 %v88, %v861
    %v863 = vand.u32 %v862, 4294901760
    %864 = vmatpush1.msra.mxu0 %v863
    %865 = vmatprep.subr.mxu0 0.0
    %v866 = vand.u32 %v89, 4294901760
    %v867 = vsub.f32 %v89, %v866
    %v868 = vand.u32 %v867, 4294901760
    %869 = vmatpush1.msra.mxu0 %v868
    %870 = vmatprep.subr.mxu0 0.0
    %v871 = vand.u32 %v90, 4294901760
    %v872 = vsub.f32 %v90, %v871
    %v873 = vand.u32 %v872, 4294901760
    %874 = vmatpush1.msra.mxu0 %v873
    %875 = vmatprep.subr.mxu0 0.0
    %v876 = vand.u32 %v91, 4294901760
    %v877 = vsub.f32 %v91, %v876
    %v878 = vand.u32 %v877, 4294901760
    %879 = vmatpush1.msra.mxu0 %v878
    %880 = vmatprep.subr.mxu0 0.0
    %v881 = vand.u32 %v92, 4294901760
    %v882 = vsub.f32 %v92, %v881
    %v883 = vand.u32 %v882, 4294901760
    %884 = vmatpush1.msra.mxu0 %v883
    %885 = vmatprep.subr.mxu0 0.0
    %v886 = vand.u32 %v93, 4294901760
    %v887 = vsub.f32 %v93, %v886
    %v888 = vand.u32 %v887, 4294901760
    %889 = vmatpush1.msra.mxu0 %v888
    %890 = vmatprep.subr.mxu0 0.0
    %v891 = vand.u32 %v94, 4294901760
    %v892 = vsub.f32 %v94, %v891
    %v893 = vand.u32 %v892, 4294901760
    %894 = vmatpush1.msra.mxu0 %v893
    %895 = vmatprep.subr.mxu0 0.0
    %896 = vmatpush1.msra.mxu0 0.0
    %897 = vmatprep.subr.mxu0 0.0
    %898 = vmatpush1.msra.mxu0 0.0
    %899 = vmatprep.subr.mxu0 0.0
    %900 = vmatpush1.msra.mxu0 0.0
    %901 = vmatprep.subr.mxu0 0.0
    %902 = vmatpush1.msra.mxu0 0.0
    %903 = vmatprep.subr.mxu0 0.0
    %904 = vmatpush1.msra.mxu0 0.0
    %905 = vmatprep.subr.mxu0 0.0
    %906 = vmatpush1.msra.mxu0 0.0
    %907 = vmatprep.subr.mxu0 0.0
    %908 = vmatpush1.msra.mxu0 0.0
    %909 = vmatprep.subr.mxu0 0.0
    %910 = vmatpush1.msra.mxu0 0.0
    %911 = vmatprep.subr.mxu0 0.0
    %912 = vmatpush1.msra.mxu0 0.0
    %913 = vmatprep.subr.mxu0 0.0
    %914 = vmatpush1.msra.mxu0 0.0
    %915 = vmatprep.subr.mxu0 0.0
    %916 = vmatpush1.msra.mxu0 0.0
    %917 = vmatprep.subr.mxu0 0.0
    %918 = vmatpush1.msra.mxu0 0.0
    %919 = vmatprep.subr.mxu0 0.0
    %920 = vmatpush1.msra.mxu0 0.0
    %921 = vmatprep.subr.mxu0 0.0
    %922 = vmatpush1.msra.mxu0 0.0
    %923 = vmatprep.subr.mxu0 0.0
    %924 = vmatpush1.msra.mxu0 0.0
    %925 = vmatprep.subr.mxu0 0.0
    %926 = vmatpush1.msra.mxu0 0.0
    %927 = vmatprep.mubr.f32.mxu0 0.0
    %v928 = vand.u32 %v73, 4294901760
    %929 = vmatmul.mubr.f32.gmra.mrb[0].mxu0 %v928
    %v930 = vpop.f32.mrb[0].mxu0
    %v931 = vadd.f32 %v740, %v930
    %v932 = vpop.f32.mrb[0].mxu0
    %933 = vmatprep.mubr.f32.mxu0 0.0
    %v934 = vand.u32 %v74, 4294901760
    %935 = vmatmul.mubr.f32.gmra.mrb[0].mxu0 %v934
    %v936 = vpop.f32.mrb[0].mxu0
    %v937 = vadd.f32 %v748, %v936
    %v938 = vpop.f32.mrb[0].mxu0
    %939 = vmatprep.mubr.f32.mxu0 0.0
    %v940 = vand.u32 %v75, 4294901760
    %941 = vmatmul.mubr.f32.gmra.mrb[0].mxu0 %v940
    %v942 = vpop.f32.mrb[0].mxu0
    %v943 = vadd.f32 %v756, %v942
    %v944 = vpop.f32.mrb[0].mxu0
    %945 = vmatprep.mubr.f32.mxu0 0.0
    %v946 = vand.u32 %v76, 4294901760
    %947 = vmatmul.mubr.f32.gmra.mrb[0].mxu0 %v946
    %v948 = vpop.f32.mrb[0].mxu0
    %v949 = vadd.f32 %v764, %v948
    %v950 = vpop.f32.mrb[0].mxu0
    %951 = vmatprep.mubr.f32.mxu0 0.0
    %v952 = vand.u32 %v95, 4294901760
    %953 = vmatmul.mubr.f32.gmra.mrb[0].mxu0 %v952
    %v954 = vpop.f32.mrb[0].mxu0
    %v955 = vadd.f32 %v772, %v954
    %v956 = vpop.f32.mrb[0].mxu0
    %957 = vmatprep.mubr.f32.mxu0 0.0
    %v958 = vand.u32 %v96, 4294901760
    %959 = vmatmul.mubr.f32.gmra.mrb[0].mxu0 %v958
    %v960 = vpop.f32.mrb[0].mxu0
    %v961 = vadd.f32 %v780, %v960
    %v962 = vpop.f32.mrb[0].mxu0
    %963 = vmatprep.mubr.f32.mxu0 0.0
    %v964 = vand.u32 %v97, 4294901760
    %965 = vmatmul.mubr.f32.gmra.mrb[0].mxu0 %v964
    %v966 = vpop.f32.mrb[0].mxu0
    %v967 = vadd.f32 %v788, %v966
    %v968 = vpop.f32.mrb[0].mxu0
    %969 = vmatprep.mubr.f32.mxu0 0.0
    %v970 = vand.u32 %v98, 4294901760
    %971 = vmatmul.mubr.f32.gmra.mrb[0].mxu0 %v970
    %v972 = vpop.f32.mrb[0].mxu0
    %v973 = vadd.f32 %v796, %v972
    %v974 = vpop.f32.mrb[0].mxu0
    %975 = vmatprep.mubr.f32.mxu0 0.0
    %v976 = vand.u32 %v99, 4294901760
    %977 = vmatmul.mubr.f32.gmra.mrb[0].mxu0 %v976
    %v978 = vpop.f32.mrb[0].mxu0
    %v979 = vadd.f32 %v804, %v978
    %v980 = vpop.f32.mrb[0].mxu0
    %981 = vmatprep.mubr.f32.mxu0 0.0
    %v982 = vand.u32 %v100, 4294901760
    %983 = vmatmul.mubr.f32.gmra.mrb[0].mxu0 %v982
    %v984 = vpop.f32.mrb[0].mxu0
    %v985 = vadd.f32 %v812, %v984
    %v986 = vpop.f32.mrb[0].mxu0
    %987 = vdwg.mxu0
    %988 = vmatprep.subr.mxu0 0.0
    %v989 = vand.u32 %v79, 4294901760
    %990 = vmatpush1.msra.mxu0 %v989
    %991 = vmatprep.subr.mxu0 0.0
    %v992 = vand.u32 %v80, 4294901760
    %993 = vmatpush1.msra.mxu0 %v992
    %994 = vmatprep.subr.mxu0 0.0
    %v995 = vand.u32 %v81, 4294901760
    %996 = vmatpush1.msra.mxu0 %v995
    %997 = vmatprep.subr.mxu0 0.0
    %v998 = vand.u32 %v82, 4294901760
    %999 = vmatpush1.msra.mxu0 %v998
    %1000 = vmatprep.subr.mxu0 0.0
    %v1001 = vand.u32 %v83, 4294901760
    %1002 = vmatpush1.msra.mxu0 %v1001
    %1003 = vmatprep.subr.mxu0 0.0
    %v1004 = vand.u32 %v84, 4294901760
    %1005 = vmatpush1.msra.mxu0 %v1004
    %1006 = vmatprep.subr.mxu0 0.0
    %v1007 = vand.u32 %v85, 4294901760
    %1008 = vmatpush1.msra.mxu0 %v1007
    %1009 = vmatprep.subr.mxu0 0.0
    %v1010 = vand.u32 %v86, 4294901760
    %1011 = vmatpush1.msra.mxu0 %v1010
    %1012 = vmatprep.subr.mxu0 0.0
    %v1013 = vand.u32 %v87, 4294901760
    %1014 = vmatpush1.msra.mxu0 %v1013
    %1015 = vmatprep.subr.mxu0 0.0
    %v1016 = vand.u32 %v88, 4294901760
    %1017 = vmatpush1.msra.mxu0 %v1016
    %1018 = vmatprep.subr.mxu0 0.0
    %v1019 = vand.u32 %v89, 4294901760
    %1020 = vmatpush1.msra.mxu0 %v1019
    %1021 = vmatprep.subr.mxu0 0.0
    %v1022 = vand.u32 %v90, 4294901760
    %1023 = vmatpush1.msra.mxu0 %v1022
    %1024 = vmatprep.subr.mxu0 0.0
    %v1025 = vand.u32 %v91, 4294901760
    %1026 = vmatpush1.msra.mxu0 %v1025
    %1027 = vmatprep.subr.mxu0 0.0
    %v1028 = vand.u32 %v92, 4294901760
    %1029 = vmatpush1.msra.mxu0 %v1028
    %1030 = vmatprep.subr.mxu0 0.0
    %v1031 = vand.u32 %v93, 4294901760
    %1032 = vmatpush1.msra.mxu0 %v1031
    %1033 = vmatprep.subr.mxu0 0.0
    %v1034 = vand.u32 %v94, 4294901760
    %1035 = vmatpush1.msra.mxu0 %v1034
    %1036 = vmatprep.subr.mxu0 0.0
    %1037 = vmatpush1.msra.mxu0 0.0
    %1038 = vmatprep.subr.mxu0 0.0
    %1039 = vmatpush1.msra.mxu0 0.0
    %1040 = vmatprep.subr.mxu0 0.0
    %1041 = vmatpush1.msra.mxu0 0.0
    %1042 = vmatprep.subr.mxu0 0.0
    %1043 = vmatpush1.msra.mxu0 0.0
    %1044 = vmatprep.subr.mxu0 0.0
    %1045 = vmatpush1.msra.mxu0 0.0
    %1046 = vmatprep.subr.mxu0 0.0
    %1047 = vmatpush1.msra.mxu0 0.0
    %1048 = vmatprep.subr.mxu0 0.0
    %1049 = vmatpush1.msra.mxu0 0.0
    %1050 = vmatprep.subr.mxu0 0.0
    %1051 = vmatpush1.msra.mxu0 0.0
    %1052 = vmatprep.subr.mxu0 0.0
    %1053 = vmatpush1.msra.mxu0 0.0
    %1054 = vmatprep.subr.mxu0 0.0
    %1055 = vmatpush1.msra.mxu0 0.0
    %1056 = vmatprep.subr.mxu0 0.0
    %1057 = vmatpush1.msra.mxu0 0.0
    %1058 = vmatprep.subr.mxu0 0.0
    %1059 = vmatpush1.msra.mxu0 0.0
    %1060 = vmatprep.subr.mxu0 0.0
    %1061 = vmatpush1.msra.mxu0 0.0
    %1062 = vmatprep.subr.mxu0 0.0
    %1063 = vmatpush1.msra.mxu0 0.0
    %1064 = vmatprep.subr.mxu0 0.0
    %1065 = vmatpush1.msra.mxu0 0.0
    %1066 = vmatprep.subr.mxu0 0.0
    %1067 = vmatpush1.msra.mxu0 0.0
    %1068 = vmatprep.mubr.f32.mxu0 0.0
    %v1069 = vand.u32 %v73, 4294901760
    %1070 = vmatmul.mubr.f32.gmra.mrb[0].mxu0 %v1069
    %v1071 = vpop.f32.mrb[0].mxu0
    %v1072 = vadd.f32 %v931, %v1071
    %v1073 = vpop.f32.mrb[0].mxu0
    %1074 = vmatprep.mubr.f32.mxu0 0.0
    %v1075 = vand.u32 %v74, 4294901760
    %1076 = vmatmul.mubr.f32.gmra.mrb[0].mxu0 %v1075
    %v1077 = vpop.f32.mrb[0].mxu0
    %v1078 = vadd.f32 %v937, %v1077
    %v1079 = vpop.f32.mrb[0].mxu0
    %1080 = vmatprep.mubr.f32.mxu0 0.0
    %v1081 = vand.u32 %v75, 4294901760
    %1082 = vmatmul.mubr.f32.gmra.mrb[0].mxu0 %v1081
    %v1083 = vpop.f32.mrb[0].mxu0
    %v1084 = vadd.f32 %v943, %v1083
    %v1085 = vpop.f32.mrb[0].mxu0
    %1086 = vmatprep.mubr.f32.mxu0 0.0
    %v1087 = vand.u32 %v76, 4294901760
    %1088 = vmatmul.mubr.f32.gmra.mrb[0].mxu0 %v1087
    %v1089 = vpop.f32.mrb[0].mxu0
    %v1090 = vadd.f32 %v949, %v1089
    %v1091 = vpop.f32.mrb[0].mxu0
    %1092 = vmatprep.mubr.f32.mxu0 0.0
    %v1093 = vand.u32 %v95, 4294901760
    %1094 = vmatmul.mubr.f32.gmra.mrb[0].mxu0 %v1093
    %v1095 = vpop.f32.mrb[0].mxu0
    %v1096 = vadd.f32 %v955, %v1095
    %v1097 = vpop.f32.mrb[0].mxu0
    %1098 = vmatprep.mubr.f32.mxu0 0.0
    %v1099 = vand.u32 %v96, 4294901760
    %1100 = vmatmul.mubr.f32.gmra.mrb[0].mxu0 %v1099
    %v1101 = vpop.f32.mrb[0].mxu0
    %v1102 = vadd.f32 %v961, %v1101
    %v1103 = vpop.f32.mrb[0].mxu0
    %1104 = vmatprep.mubr.f32.mxu0 0.0
    %v1105 = vand.u32 %v97, 4294901760
    %1106 = vmatmul.mubr.f32.gmra.mrb[0].mxu0 %v1105
    %v1107 = vpop.f32.mrb[0].mxu0
    %v1108 = vadd.f32 %v967, %v1107
    %v1109 = vpop.f32.mrb[0].mxu0
    %1110 = vmatprep.mubr.f32.mxu0 0.0
    %v1111 = vand.u32 %v98, 4294901760
    %1112 = vmatmul.mubr.f32.gmra.mrb[0].mxu0 %v1111
    %v1113 = vpop.f32.mrb[0].mxu0
    %v1114 = vadd.f32 %v973, %v1113
    %v1115 = vpop.f32.mrb[0].mxu0
    %1116 = vmatprep.mubr.f32.mxu0 0.0
    %v1117 = vand.u32 %v99, 4294901760
    %1118 = vmatmul.mubr.f32.gmra.mrb[0].mxu0 %v1117
    %v1119 = vpop.f32.mrb[0].mxu0
    %v1120 = vadd.f32 %v979, %v1119
    %v1121 = vpop.f32.mrb[0].mxu0
    %1122 = vmatprep.mubr.f32.mxu0 0.0
    %v1123 = vand.u32 %v100, 4294901760
    %1124 = vmatmul.mubr.f32.gmra.mrb[0].mxu0 %v1123
    %v1125 = vpop.f32.mrb[0].mxu0
    %v1126 = vadd.f32 %v985, %v1125
    %v1127 = vpop.f32.mrb[0].mxu0
    %1128 = vdwg.mxu0
    %vm1129 = vcmask 130048
    %v1131 = vsel %vm1129, %v77, 0
    %v1134 = vsel %vm1129, %v78, 0
    %1136 = vmatprep.subr.mxu0 0.0
    %v1137 = vand.u32 %v1072, 4294901760
    %1138 = vmatpush1.msra.mxu0 %v1137
    %1139 = vmatprep.subr.mxu0 0.0
    %v1140 = vand.u32 %v1078, 4294901760
    %1141 = vmatpush1.msra.mxu0 %v1140
    %1142 = vmatprep.subr.mxu0 0.0
    %1143 = vmatpush1.msra.mxu0 0.0
    %1144 = vmatprep.subr.mxu0 0.0
    %1145 = vmatpush1.msra.mxu0 0.0
    %1146 = vmatprep.subr.mxu0 0.0
    %1147 = vmatpush1.msra.mxu0 0.0
    %1148 = vmatprep.subr.mxu0 0.0
    %1149 = vmatpush1.msra.mxu0 0.0
    %1150 = vmatprep.subr.mxu0 0.0
    %1151 = vmatpush1.msra.mxu0 0.0
    %1152 = vmatprep.subr.mxu0 0.0
    %1153 = vmatpush1.msra.mxu0 0.0
    %1154 = vmatprep.subr.mxu0 0.0
    %1155 = vmatpush1.msra.mxu0 0.0
    %1156 = vmatprep.subr.mxu0 0.0
    %1157 = vmatpush1.msra.mxu0 0.0
    %1158 = vmatprep.subr.mxu0 0.0
    %1159 = vmatpush1.msra.mxu0 0.0
    %1160 = vmatprep.subr.mxu0 0.0
    %1161 = vmatpush1.msra.mxu0 0.0
    %1162 = vmatprep.subr.mxu0 0.0
    %1163 = vmatpush1.msra.mxu0 0.0
    %1164 = vmatprep.subr.mxu0 0.0
    %1165 = vmatpush1.msra.mxu0 0.0
    %1166 = vmatprep.subr.mxu0 0.0
    %1167 = vmatpush1.msra.mxu0 0.0
    %1168 = vmatprep.subr.mxu0 0.0
    %1169 = vmatpush1.msra.mxu0 0.0
    %1170 = vmatprep.subr.mxu0 0.0
    %1171 = vmatpush1.msra.mxu0 0.0
    %1172 = vmatprep.subr.mxu0 0.0
    %1173 = vmatpush1.msra.mxu0 0.0
    %1174 = vmatprep.subr.mxu0 0.0
    %1175 = vmatpush1.msra.mxu0 0.0
    %1176 = vmatprep.subr.mxu0 0.0
    %1177 = vmatpush1.msra.mxu0 0.0
    %1178 = vmatprep.subr.mxu0 0.0
    %1179 = vmatpush1.msra.mxu0 0.0
    %1180 = vmatprep.subr.mxu0 0.0
    %1181 = vmatpush1.msra.mxu0 0.0
    %1182 = vmatprep.subr.mxu0 0.0
    %1183 = vmatpush1.msra.mxu0 0.0
    %1184 = vmatprep.subr.mxu0 0.0
    %1185 = vmatpush1.msra.mxu0 0.0
    %1186 = vmatprep.subr.mxu0 0.0
    %1187 = vmatpush1.msra.mxu0 0.0
    %1188 = vmatprep.subr.mxu0 0.0
    %1189 = vmatpush1.msra.mxu0 0.0
    %1190 = vmatprep.subr.mxu0 0.0
    %1191 = vmatpush1.msra.mxu0 0.0
    %1192 = vmatprep.subr.mxu0 0.0
    %1193 = vmatpush1.msra.mxu0 0.0
    %1194 = vmatprep.subr.mxu0 0.0
    %1195 = vmatpush1.msra.mxu0 0.0
    %1196 = vmatprep.subr.mxu0 0.0
    %1197 = vmatpush1.msra.mxu0 0.0
    %1198 = vmatprep.subr.mxu0 0.0
    %1199 = vmatpush1.msra.mxu0 0.0
    %1200 = vmatprep.subr.mxu0 0.0
    %1201 = vmatpush1.msra.mxu0 0.0
    %1202 = vmatprep.mubr.f32.mxu0 0.0
    %v1203 = vand.u32 %v1131, 4294901760
    %v1204 = vsub.f32 %v1131, %v1203
    %v1205 = vand.u32 %v1204, 4294901760
    %v1206 = vsub.f32 %v1204, %v1205
    %v1207 = vand.u32 %v1206, 4294901760
    %1208 = vmatmul.mubr.f32.gmra.mrb[0].mxu0 %v1207
    %v1209 = vpop.f32.mrb[0].mxu0
    %v1210 = vadd.f32 0.0, %v1209
    %v1211 = vpop.f32.mrb[0].mxu0
    %1212 = vmatprep.mubr.f32.mxu0 0.0
    %v1213 = vand.u32 %v1134, 4294901760
    %v1214 = vsub.f32 %v1134, %v1213
    %v1215 = vand.u32 %v1214, 4294901760
    %v1216 = vsub.f32 %v1214, %v1215
    %v1217 = vand.u32 %v1216, 4294901760
    %1218 = vmatmul.mubr.f32.gmra.mrb[0].mxu0 %v1217
    %v1219 = vpop.f32.mrb[0].mxu0
    %v1220 = vadd.f32 0.0, %v1219
    %v1221 = vpop.f32.mrb[0].mxu0
    %1222 = vdwg.mxu0
    %1223 = vmatprep.subr.mxu0 0.0
    %v1224 = vand.u32 %v1072, 4294901760
    %v1225 = vsub.f32 %v1072, %v1224
    %v1226 = vand.u32 %v1225, 4294901760
    %v1227 = vsub.f32 %v1225, %v1226
    %v1228 = vand.u32 %v1227, 4294901760
    %1229 = vmatpush1.msra.mxu0 %v1228
    %1230 = vmatprep.subr.mxu0 0.0
    %v1231 = vand.u32 %v1078, 4294901760
    %v1232 = vsub.f32 %v1078, %v1231
    %v1233 = vand.u32 %v1232, 4294901760
    %v1234 = vsub.f32 %v1232, %v1233
    %v1235 = vand.u32 %v1234, 4294901760
    %1236 = vmatpush1.msra.mxu0 %v1235
    %1237 = vmatprep.subr.mxu0 0.0
    %1238 = vmatpush1.msra.mxu0 0.0
    %1239 = vmatprep.subr.mxu0 0.0
    %1240 = vmatpush1.msra.mxu0 0.0
    %1241 = vmatprep.subr.mxu0 0.0
    %1242 = vmatpush1.msra.mxu0 0.0
    %1243 = vmatprep.subr.mxu0 0.0
    %1244 = vmatpush1.msra.mxu0 0.0
    %1245 = vmatprep.subr.mxu0 0.0
    %1246 = vmatpush1.msra.mxu0 0.0
    %1247 = vmatprep.subr.mxu0 0.0
    %1248 = vmatpush1.msra.mxu0 0.0
    %1249 = vmatprep.subr.mxu0 0.0
    %1250 = vmatpush1.msra.mxu0 0.0
    %1251 = vmatprep.subr.mxu0 0.0
    %1252 = vmatpush1.msra.mxu0 0.0
    %1253 = vmatprep.subr.mxu0 0.0
    %1254 = vmatpush1.msra.mxu0 0.0
    %1255 = vmatprep.subr.mxu0 0.0
    %1256 = vmatpush1.msra.mxu0 0.0
    %1257 = vmatprep.subr.mxu0 0.0
    %1258 = vmatpush1.msra.mxu0 0.0
    %1259 = vmatprep.subr.mxu0 0.0
    %1260 = vmatpush1.msra.mxu0 0.0
    %1261 = vmatprep.subr.mxu0 0.0
    %1262 = vmatpush1.msra.mxu0 0.0
    %1263 = vmatprep.subr.mxu0 0.0
    %1264 = vmatpush1.msra.mxu0 0.0
    %1265 = vmatprep.subr.mxu0 0.0
    %1266 = vmatpush1.msra.mxu0 0.0
    %1267 = vmatprep.subr.mxu0 0.0
    %1268 = vmatpush1.msra.mxu0 0.0
    %1269 = vmatprep.subr.mxu0 0.0
    %1270 = vmatpush1.msra.mxu0 0.0
    %1271 = vmatprep.subr.mxu0 0.0
    %1272 = vmatpush1.msra.mxu0 0.0
    %1273 = vmatprep.subr.mxu0 0.0
    %1274 = vmatpush1.msra.mxu0 0.0
    %1275 = vmatprep.subr.mxu0 0.0
    %1276 = vmatpush1.msra.mxu0 0.0
    %1277 = vmatprep.subr.mxu0 0.0
    %1278 = vmatpush1.msra.mxu0 0.0
    %1279 = vmatprep.subr.mxu0 0.0
    %1280 = vmatpush1.msra.mxu0 0.0
    %1281 = vmatprep.subr.mxu0 0.0
    %1282 = vmatpush1.msra.mxu0 0.0
    %1283 = vmatprep.subr.mxu0 0.0
    %1284 = vmatpush1.msra.mxu0 0.0
    %1285 = vmatprep.subr.mxu0 0.0
    %1286 = vmatpush1.msra.mxu0 0.0
    %1287 = vmatprep.subr.mxu0 0.0
    %1288 = vmatpush1.msra.mxu0 0.0
    %1289 = vmatprep.subr.mxu0 0.0
    %1290 = vmatpush1.msra.mxu0 0.0
    %1291 = vmatprep.subr.mxu0 0.0
    %1292 = vmatpush1.msra.mxu0 0.0
    %1293 = vmatprep.subr.mxu0 0.0
    %1294 = vmatpush1.msra.mxu0 0.0
    %1295 = vmatprep.subr.mxu0 0.0
    %1296 = vmatpush1.msra.mxu0 0.0
    %1297 = vmatprep.mubr.f32.mxu0 0.0
    %v1298 = vand.u32 %v1131, 4294901760
    %1299 = vmatmul.mubr.f32.gmra.mrb[0].mxu0 %v1298
    %v1300 = vpop.f32.mrb[0].mxu0
    %v1301 = vadd.f32 %v1210, %v1300
    %v1302 = vpop.f32.mrb[0].mxu0
    %1303 = vmatprep.mubr.f32.mxu0 0.0
    %v1304 = vand.u32 %v1134, 4294901760
    %1305 = vmatmul.mubr.f32.gmra.mrb[0].mxu0 %v1304
    %v1306 = vpop.f32.mrb[0].mxu0
    %v1307 = vadd.f32 %v1220, %v1306
    %v1308 = vpop.f32.mrb[0].mxu0
    %1309 = vdwg.mxu0
    %1310 = vmatprep.subr.mxu0 0.0
    %v1311 = vand.u32 %v1072, 4294901760
    %v1312 = vsub.f32 %v1072, %v1311
    %1313 = vmatpush1.msra.mxu0 %v1312
    %1314 = vmatprep.subr.mxu0 0.0
    %v1315 = vand.u32 %v1078, 4294901760
    %v1316 = vsub.f32 %v1078, %v1315
    %1317 = vmatpush1.msra.mxu0 %v1316
    %1318 = vmatprep.subr.mxu0 0.0
    %1319 = vmatpush1.msra.mxu0 0.0
    %1320 = vmatprep.subr.mxu0 0.0
    %1321 = vmatpush1.msra.mxu0 0.0
    %1322 = vmatprep.subr.mxu0 0.0
    %1323 = vmatpush1.msra.mxu0 0.0
    %1324 = vmatprep.subr.mxu0 0.0
    %1325 = vmatpush1.msra.mxu0 0.0
    %1326 = vmatprep.subr.mxu0 0.0
    %1327 = vmatpush1.msra.mxu0 0.0
    %1328 = vmatprep.subr.mxu0 0.0
    %1329 = vmatpush1.msra.mxu0 0.0
    %1330 = vmatprep.subr.mxu0 0.0
    %1331 = vmatpush1.msra.mxu0 0.0
    %1332 = vmatprep.subr.mxu0 0.0
    %1333 = vmatpush1.msra.mxu0 0.0
    %1334 = vmatprep.subr.mxu0 0.0
    %1335 = vmatpush1.msra.mxu0 0.0
    %1336 = vmatprep.subr.mxu0 0.0
    %1337 = vmatpush1.msra.mxu0 0.0
    %1338 = vmatprep.subr.mxu0 0.0
    %1339 = vmatpush1.msra.mxu0 0.0
    %1340 = vmatprep.subr.mxu0 0.0
    %1341 = vmatpush1.msra.mxu0 0.0
    %1342 = vmatprep.subr.mxu0 0.0
    %1343 = vmatpush1.msra.mxu0 0.0
    %1344 = vmatprep.subr.mxu0 0.0
    %1345 = vmatpush1.msra.mxu0 0.0
    %1346 = vmatprep.subr.mxu0 0.0
    %1347 = vmatpush1.msra.mxu0 0.0
    %1348 = vmatprep.subr.mxu0 0.0
    %1349 = vmatpush1.msra.mxu0 0.0
    %1350 = vmatprep.subr.mxu0 0.0
    %1351 = vmatpush1.msra.mxu0 0.0
    %1352 = vmatprep.subr.mxu0 0.0
    %1353 = vmatpush1.msra.mxu0 0.0
    %1354 = vmatprep.subr.mxu0 0.0
    %1355 = vmatpush1.msra.mxu0 0.0
    %1356 = vmatprep.subr.mxu0 0.0
    %1357 = vmatpush1.msra.mxu0 0.0
    %1358 = vmatprep.subr.mxu0 0.0
    %1359 = vmatpush1.msra.mxu0 0.0
    %1360 = vmatprep.subr.mxu0 0.0
    %1361 = vmatpush1.msra.mxu0 0.0
    %1362 = vmatprep.subr.mxu0 0.0
    %1363 = vmatpush1.msra.mxu0 0.0
    %1364 = vmatprep.subr.mxu0 0.0
    %1365 = vmatpush1.msra.mxu0 0.0
    %1366 = vmatprep.subr.mxu0 0.0
    %1367 = vmatpush1.msra.mxu0 0.0
    %1368 = vmatprep.subr.mxu0 0.0
    %1369 = vmatpush1.msra.mxu0 0.0
    %1370 = vmatprep.subr.mxu0 0.0
    %1371 = vmatpush1.msra.mxu0 0.0
    %1372 = vmatprep.subr.mxu0 0.0
    %1373 = vmatpush1.msra.mxu0 0.0
    %1374 = vmatprep.subr.mxu0 0.0
    %1375 = vmatpush1.msra.mxu0 0.0
    %1376 = vmatprep.subr.mxu0 0.0
    %1377 = vmatpush1.msra.mxu0 0.0
    %1378 = vmatprep.mubr.f32.mxu0 0.0
    %v1379 = vand.u32 %v1131, 4294901760
    %v1380 = vsub.f32 %v1131, %v1379
    %1381 = vmatmul.mubr.f32.gmra.mrb[0].mxu0 %v1380
    %v1382 = vpop.f32.mrb[0].mxu0
    %v1383 = vadd.f32 %v1301, %v1382
    %v1384 = vpop.f32.mrb[0].mxu0
    %1385 = vmatprep.mubr.f32.mxu0 0.0
    %v1386 = vand.u32 %v1134, 4294901760
    %v1387 = vsub.f32 %v1134, %v1386
    %1388 = vmatmul.mubr.f32.gmra.mrb[0].mxu0 %v1387
    %v1389 = vpop.f32.mrb[0].mxu0
    %v1390 = vadd.f32 %v1307, %v1389
    %v1391 = vpop.f32.mrb[0].mxu0
    %1392 = vdwg.mxu0
    %1393 = vmatprep.subr.mxu0 0.0
    %v1394 = vand.u32 %v1072, 4294901760
    %1395 = vmatpush1.msra.mxu0 %v1394
    %1396 = vmatprep.subr.mxu0 0.0
    %v1397 = vand.u32 %v1078, 4294901760
    %1398 = vmatpush1.msra.mxu0 %v1397
    %1399 = vmatprep.subr.mxu0 0.0
    %1400 = vmatpush1.msra.mxu0 0.0
    %1401 = vmatprep.subr.mxu0 0.0
    %1402 = vmatpush1.msra.mxu0 0.0
    %1403 = vmatprep.subr.mxu0 0.0
    %1404 = vmatpush1.msra.mxu0 0.0
    %1405 = vmatprep.subr.mxu0 0.0
    %1406 = vmatpush1.msra.mxu0 0.0
    %1407 = vmatprep.subr.mxu0 0.0
    %1408 = vmatpush1.msra.mxu0 0.0
    %1409 = vmatprep.subr.mxu0 0.0
    %1410 = vmatpush1.msra.mxu0 0.0
    %1411 = vmatprep.subr.mxu0 0.0
    %1412 = vmatpush1.msra.mxu0 0.0
    %1413 = vmatprep.subr.mxu0 0.0
    %1414 = vmatpush1.msra.mxu0 0.0
    %1415 = vmatprep.subr.mxu0 0.0
    %1416 = vmatpush1.msra.mxu0 0.0
    %1417 = vmatprep.subr.mxu0 0.0
    %1418 = vmatpush1.msra.mxu0 0.0
    %1419 = vmatprep.subr.mxu0 0.0
    %1420 = vmatpush1.msra.mxu0 0.0
    %1421 = vmatprep.subr.mxu0 0.0
    %1422 = vmatpush1.msra.mxu0 0.0
    %1423 = vmatprep.subr.mxu0 0.0
    %1424 = vmatpush1.msra.mxu0 0.0
    %1425 = vmatprep.subr.mxu0 0.0
    %1426 = vmatpush1.msra.mxu0 0.0
    %1427 = vmatprep.subr.mxu0 0.0
    %1428 = vmatpush1.msra.mxu0 0.0
    %1429 = vmatprep.subr.mxu0 0.0
    %1430 = vmatpush1.msra.mxu0 0.0
    %1431 = vmatprep.subr.mxu0 0.0
    %1432 = vmatpush1.msra.mxu0 0.0
    %1433 = vmatprep.subr.mxu0 0.0
    %1434 = vmatpush1.msra.mxu0 0.0
    %1435 = vmatprep.subr.mxu0 0.0
    %1436 = vmatpush1.msra.mxu0 0.0
    %1437 = vmatprep.subr.mxu0 0.0
    %1438 = vmatpush1.msra.mxu0 0.0
    %1439 = vmatprep.subr.mxu0 0.0
    %1440 = vmatpush1.msra.mxu0 0.0
    %1441 = vmatprep.subr.mxu0 0.0
    %1442 = vmatpush1.msra.mxu0 0.0
    %1443 = vmatprep.subr.mxu0 0.0
    %1444 = vmatpush1.msra.mxu0 0.0
    %1445 = vmatprep.subr.mxu0 0.0
    %1446 = vmatpush1.msra.mxu0 0.0
    %1447 = vmatprep.subr.mxu0 0.0
    %1448 = vmatpush1.msra.mxu0 0.0
    %1449 = vmatprep.subr.mxu0 0.0
    %1450 = vmatpush1.msra.mxu0 0.0
    %1451 = vmatprep.subr.mxu0 0.0
    %1452 = vmatpush1.msra.mxu0 0.0
    %1453 = vmatprep.subr.mxu0 0.0
    %1454 = vmatpush1.msra.mxu0 0.0
    %1455 = vmatprep.subr.mxu0 0.0
    %1456 = vmatpush1.msra.mxu0 0.0
    %1457 = vmatprep.subr.mxu0 0.0
    %1458 = vmatpush1.msra.mxu0 0.0
    %1459 = vmatprep.mubr.f32.mxu0 0.0
    %v1460 = vand.u32 %v1131, 4294901760
    %v1461 = vsub.f32 %v1131, %v1460
    %v1462 = vand.u32 %v1461, 4294901760
    %1463 = vmatmul.mubr.f32.gmra.mrb[0].mxu0 %v1462
    %v1464 = vpop.f32.mrb[0].mxu0
    %v1465 = vadd.f32 %v1383, %v1464
    %v1466 = vpop.f32.mrb[0].mxu0
    %1467 = vmatprep.mubr.f32.mxu0 0.0
    %v1468 = vand.u32 %v1134, 4294901760
    %v1469 = vsub.f32 %v1134, %v1468
    %v1470 = vand.u32 %v1469, 4294901760
    %1471 = vmatmul.mubr.f32.gmra.mrb[0].mxu0 %v1470
    %v1472 = vpop.f32.mrb[0].mxu0
    %v1473 = vadd.f32 %v1390, %v1472
    %v1474 = vpop.f32.mrb[0].mxu0
    %1475 = vdwg.mxu0
    %1476 = vmatprep.subr.mxu0 0.0
    %v1477 = vand.u32 %v1072, 4294901760
    %v1478 = vsub.f32 %v1072, %v1477
    %v1479 = vand.u32 %v1478, 4294901760
    %1480 = vmatpush1.msra.mxu0 %v1479
    %1481 = vmatprep.subr.mxu0 0.0
    %v1482 = vand.u32 %v1078, 4294901760
    %v1483 = vsub.f32 %v1078, %v1482
    %v1484 = vand.u32 %v1483, 4294901760
    %1485 = vmatpush1.msra.mxu0 %v1484
    %1486 = vmatprep.subr.mxu0 0.0
    %1487 = vmatpush1.msra.mxu0 0.0
    %1488 = vmatprep.subr.mxu0 0.0
    %1489 = vmatpush1.msra.mxu0 0.0
    %1490 = vmatprep.subr.mxu0 0.0
    %1491 = vmatpush1.msra.mxu0 0.0
    %1492 = vmatprep.subr.mxu0 0.0
    %1493 = vmatpush1.msra.mxu0 0.0
    %1494 = vmatprep.subr.mxu0 0.0
    %1495 = vmatpush1.msra.mxu0 0.0
    %1496 = vmatprep.subr.mxu0 0.0
    %1497 = vmatpush1.msra.mxu0 0.0
    %1498 = vmatprep.subr.mxu0 0.0
    %1499 = vmatpush1.msra.mxu0 0.0
    %1500 = vmatprep.subr.mxu0 0.0
    %1501 = vmatpush1.msra.mxu0 0.0
    %1502 = vmatprep.subr.mxu0 0.0
    %1503 = vmatpush1.msra.mxu0 0.0
    %1504 = vmatprep.subr.mxu0 0.0
    %1505 = vmatpush1.msra.mxu0 0.0
    %1506 = vmatprep.subr.mxu0 0.0
    %1507 = vmatpush1.msra.mxu0 0.0
    %1508 = vmatprep.subr.mxu0 0.0
    %1509 = vmatpush1.msra.mxu0 0.0
    %1510 = vmatprep.subr.mxu0 0.0
    %1511 = vmatpush1.msra.mxu0 0.0
    %1512 = vmatprep.subr.mxu0 0.0
    %1513 = vmatpush1.msra.mxu0 0.0
    %1514 = vmatprep.subr.mxu0 0.0
    %1515 = vmatpush1.msra.mxu0 0.0
    %1516 = vmatprep.subr.mxu0 0.0
    %1517 = vmatpush1.msra.mxu0 0.0
    %1518 = vmatprep.subr.mxu0 0.0
    %1519 = vmatpush1.msra.mxu0 0.0
    %1520 = vmatprep.subr.mxu0 0.0
    %1521 = vmatpush1.msra.mxu0 0.0
    %1522 = vmatprep.subr.mxu0 0.0
    %1523 = vmatpush1.msra.mxu0 0.0
    %1524 = vmatprep.subr.mxu0 0.0
    %1525 = vmatpush1.msra.mxu0 0.0
    %1526 = vmatprep.subr.mxu0 0.0
    %1527 = vmatpush1.msra.mxu0 0.0
    %1528 = vmatprep.subr.mxu0 0.0
    %1529 = vmatpush1.msra.mxu0 0.0
    %1530 = vmatprep.subr.mxu0 0.0
    %1531 = vmatpush1.msra.mxu0 0.0
    %1532 = vmatprep.subr.mxu0 0.0
    %1533 = vmatpush1.msra.mxu0 0.0
    %1534 = vmatprep.subr.mxu0 0.0
    %1535 = vmatpush1.msra.mxu0 0.0
    %1536 = vmatprep.subr.mxu0 0.0
    %1537 = vmatpush1.msra.mxu0 0.0
    %1538 = vmatprep.subr.mxu0 0.0
    %1539 = vmatpush1.msra.mxu0 0.0
    %1540 = vmatprep.subr.mxu0 0.0
    %1541 = vmatpush1.msra.mxu0 0.0
    %1542 = vmatprep.subr.mxu0 0.0
    %1543 = vmatpush1.msra.mxu0 0.0
    %1544 = vmatprep.subr.mxu0 0.0
    %1545 = vmatpush1.msra.mxu0 0.0
    %1546 = vmatprep.mubr.f32.mxu0 0.0
    %v1547 = vand.u32 %v1131, 4294901760
    %1548 = vmatmul.mubr.f32.gmra.mrb[0].mxu0 %v1547
    %v1549 = vpop.f32.mrb[0].mxu0
    %v1550 = vadd.f32 %v1465, %v1549
    %v1551 = vpop.f32.mrb[0].mxu0
    %1552 = vmatprep.mubr.f32.mxu0 0.0
    %v1553 = vand.u32 %v1134, 4294901760
    %1554 = vmatmul.mubr.f32.gmra.mrb[0].mxu0 %v1553
    %v1555 = vpop.f32.mrb[0].mxu0
    %v1556 = vadd.f32 %v1473, %v1555
    %v1557 = vpop.f32.mrb[0].mxu0
    %1558 = vdwg.mxu0
    %1559 = vmatprep.subr.mxu0 0.0
    %v1560 = vand.u32 %v1072, 4294901760
    %1561 = vmatpush1.msra.mxu0 %v1560
    %1562 = vmatprep.subr.mxu0 0.0
    %v1563 = vand.u32 %v1078, 4294901760
    %1564 = vmatpush1.msra.mxu0 %v1563
    %1565 = vmatprep.subr.mxu0 0.0
    %1566 = vmatpush1.msra.mxu0 0.0
    %1567 = vmatprep.subr.mxu0 0.0
    %1568 = vmatpush1.msra.mxu0 0.0
    %1569 = vmatprep.subr.mxu0 0.0
    %1570 = vmatpush1.msra.mxu0 0.0
    %1571 = vmatprep.subr.mxu0 0.0
    %1572 = vmatpush1.msra.mxu0 0.0
    %1573 = vmatprep.subr.mxu0 0.0
    %1574 = vmatpush1.msra.mxu0 0.0
    %1575 = vmatprep.subr.mxu0 0.0
    %1576 = vmatpush1.msra.mxu0 0.0
    %1577 = vmatprep.subr.mxu0 0.0
    %1578 = vmatpush1.msra.mxu0 0.0
    %1579 = vmatprep.subr.mxu0 0.0
    %1580 = vmatpush1.msra.mxu0 0.0
    %1581 = vmatprep.subr.mxu0 0.0
    %1582 = vmatpush1.msra.mxu0 0.0
    %1583 = vmatprep.subr.mxu0 0.0
    %1584 = vmatpush1.msra.mxu0 0.0
    %1585 = vmatprep.subr.mxu0 0.0
    %1586 = vmatpush1.msra.mxu0 0.0
    %1587 = vmatprep.subr.mxu0 0.0
    %1588 = vmatpush1.msra.mxu0 0.0
    %1589 = vmatprep.subr.mxu0 0.0
    %1590 = vmatpush1.msra.mxu0 0.0
    %1591 = vmatprep.subr.mxu0 0.0
    %1592 = vmatpush1.msra.mxu0 0.0
    %1593 = vmatprep.subr.mxu0 0.0
    %1594 = vmatpush1.msra.mxu0 0.0
    %1595 = vmatprep.subr.mxu0 0.0
    %1596 = vmatpush1.msra.mxu0 0.0
    %1597 = vmatprep.subr.mxu0 0.0
    %1598 = vmatpush1.msra.mxu0 0.0
    %1599 = vmatprep.subr.mxu0 0.0
    %1600 = vmatpush1.msra.mxu0 0.0
    %1601 = vmatprep.subr.mxu0 0.0
    %1602 = vmatpush1.msra.mxu0 0.0
    %1603 = vmatprep.subr.mxu0 0.0
    %1604 = vmatpush1.msra.mxu0 0.0
    %1605 = vmatprep.subr.mxu0 0.0
    %1606 = vmatpush1.msra.mxu0 0.0
    %1607 = vmatprep.subr.mxu0 0.0
    %1608 = vmatpush1.msra.mxu0 0.0
    %1609 = vmatprep.subr.mxu0 0.0
    %1610 = vmatpush1.msra.mxu0 0.0
    %1611 = vmatprep.subr.mxu0 0.0
    %1612 = vmatpush1.msra.mxu0 0.0
    %1613 = vmatprep.subr.mxu0 0.0
    %1614 = vmatpush1.msra.mxu0 0.0
    %1615 = vmatprep.subr.mxu0 0.0
    %1616 = vmatpush1.msra.mxu0 0.0
    %1617 = vmatprep.subr.mxu0 0.0
    %1618 = vmatpush1.msra.mxu0 0.0
    %1619 = vmatprep.subr.mxu0 0.0
    %1620 = vmatpush1.msra.mxu0 0.0
    %1621 = vmatprep.subr.mxu0 0.0
    %1622 = vmatpush1.msra.mxu0 0.0
    %1623 = vmatprep.subr.mxu0 0.0
    %1624 = vmatpush1.msra.mxu0 0.0
    %1625 = vmatprep.mubr.f32.mxu0 0.0
    %v1626 = vand.u32 %v1131, 4294901760
    %1627 = vmatmul.mubr.f32.gmra.mrb[0].mxu0 %v1626
    %v1628 = vpop.f32.mrb[0].mxu0
    %v1629 = vadd.f32 %v1550, %v1628
    %v1630 = vpop.f32.mrb[0].mxu0
    %1631 = vmatprep.mubr.f32.mxu0 0.0
    %v1632 = vand.u32 %v1134, 4294901760
    %1633 = vmatmul.mubr.f32.gmra.mrb[0].mxu0 %v1632
    %v1634 = vpop.f32.mrb[0].mxu0
    %v1635 = vadd.f32 %v1556, %v1634
    %v1636 = vpop.f32.mrb[0].mxu0
    %1637 = vdwg.mxu0
    %1638 = vmatprep.subr.mxu0 0.0
    %v1639 = vand.u32 %v1084, 4294901760
    %1640 = vmatpush1.msra.mxu0 %v1639
    %1641 = vmatprep.subr.mxu0 0.0
    %v1642 = vand.u32 %v1090, 4294901760
    %1643 = vmatpush1.msra.mxu0 %v1642
    %1644 = vmatprep.subr.mxu0 0.0
    %1645 = vmatpush1.msra.mxu0 0.0
    %1646 = vmatprep.subr.mxu0 0.0
    %1647 = vmatpush1.msra.mxu0 0.0
    %1648 = vmatprep.subr.mxu0 0.0
    %1649 = vmatpush1.msra.mxu0 0.0
    %1650 = vmatprep.subr.mxu0 0.0
    %1651 = vmatpush1.msra.mxu0 0.0
    %1652 = vmatprep.subr.mxu0 0.0
    %1653 = vmatpush1.msra.mxu0 0.0
    %1654 = vmatprep.subr.mxu0 0.0
    %1655 = vmatpush1.msra.mxu0 0.0
    %1656 = vmatprep.subr.mxu0 0.0
    %1657 = vmatpush1.msra.mxu0 0.0
    %1658 = vmatprep.subr.mxu0 0.0
    %1659 = vmatpush1.msra.mxu0 0.0
    %1660 = vmatprep.subr.mxu0 0.0
    %1661 = vmatpush1.msra.mxu0 0.0
    %1662 = vmatprep.subr.mxu0 0.0
    %1663 = vmatpush1.msra.mxu0 0.0
    %1664 = vmatprep.subr.mxu0 0.0
    %1665 = vmatpush1.msra.mxu0 0.0
    %1666 = vmatprep.subr.mxu0 0.0
    %1667 = vmatpush1.msra.mxu0 0.0
    %1668 = vmatprep.subr.mxu0 0.0
    %1669 = vmatpush1.msra.mxu0 0.0
    %1670 = vmatprep.subr.mxu0 0.0
    %1671 = vmatpush1.msra.mxu0 0.0
    %1672 = vmatprep.subr.mxu0 0.0
    %1673 = vmatpush1.msra.mxu0 0.0
    %1674 = vmatprep.subr.mxu0 0.0
    %1675 = vmatpush1.msra.mxu0 0.0
    %1676 = vmatprep.subr.mxu0 0.0
    %1677 = vmatpush1.msra.mxu0 0.0
    %1678 = vmatprep.subr.mxu0 0.0
    %1679 = vmatpush1.msra.mxu0 0.0
    %1680 = vmatprep.subr.mxu0 0.0
    %1681 = vmatpush1.msra.mxu0 0.0
    %1682 = vmatprep.subr.mxu0 0.0
    %1683 = vmatpush1.msra.mxu0 0.0
    %1684 = vmatprep.subr.mxu0 0.0
    %1685 = vmatpush1.msra.mxu0 0.0
    %1686 = vmatprep.subr.mxu0 0.0
    %1687 = vmatpush1.msra.mxu0 0.0
    %1688 = vmatprep.subr.mxu0 0.0
    %1689 = vmatpush1.msra.mxu0 0.0
    %1690 = vmatprep.subr.mxu0 0.0
    %1691 = vmatpush1.msra.mxu0 0.0
    %1692 = vmatprep.subr.mxu0 0.0
    %1693 = vmatpush1.msra.mxu0 0.0
    %1694 = vmatprep.subr.mxu0 0.0
    %1695 = vmatpush1.msra.mxu0 0.0
    %1696 = vmatprep.subr.mxu0 0.0
    %1697 = vmatpush1.msra.mxu0 0.0
    %1698 = vmatprep.subr.mxu0 0.0
    %1699 = vmatpush1.msra.mxu0 0.0
    %1700 = vmatprep.subr.mxu0 0.0
    %1701 = vmatpush1.msra.mxu0 0.0
    %1702 = vmatprep.subr.mxu0 0.0
    %1703 = vmatpush1.msra.mxu0 0.0
    %1704 = vmatprep.mubr.f32.mxu0 0.0
    %v1705 = vand.u32 %v1131, 4294901760
    %v1706 = vsub.f32 %v1131, %v1705
    %v1707 = vand.u32 %v1706, 4294901760
    %v1708 = vsub.f32 %v1706, %v1707
    %v1709 = vand.u32 %v1708, 4294901760
    %1710 = vmatmul.mubr.f32.gmra.mrb[0].mxu0 %v1709
    %v1711 = vpop.f32.mrb[0].mxu0
    %v1712 = vadd.f32 0.0, %v1711
    %v1713 = vpop.f32.mrb[0].mxu0
    %1714 = vmatprep.mubr.f32.mxu0 0.0
    %v1715 = vand.u32 %v1134, 4294901760
    %v1716 = vsub.f32 %v1134, %v1715
    %v1717 = vand.u32 %v1716, 4294901760
    %v1718 = vsub.f32 %v1716, %v1717
    %v1719 = vand.u32 %v1718, 4294901760
    %1720 = vmatmul.mubr.f32.gmra.mrb[0].mxu0 %v1719
    %v1721 = vpop.f32.mrb[0].mxu0
    %v1722 = vadd.f32 0.0, %v1721
    %v1723 = vpop.f32.mrb[0].mxu0
    %1724 = vdwg.mxu0
    %1725 = vmatprep.subr.mxu0 0.0
    %v1726 = vand.u32 %v1084, 4294901760
    %v1727 = vsub.f32 %v1084, %v1726
    %v1728 = vand.u32 %v1727, 4294901760
    %v1729 = vsub.f32 %v1727, %v1728
    %v1730 = vand.u32 %v1729, 4294901760
    %1731 = vmatpush1.msra.mxu0 %v1730
    %1732 = vmatprep.subr.mxu0 0.0
    %v1733 = vand.u32 %v1090, 4294901760
    %v1734 = vsub.f32 %v1090, %v1733
    %v1735 = vand.u32 %v1734, 4294901760
    %v1736 = vsub.f32 %v1734, %v1735
    %v1737 = vand.u32 %v1736, 4294901760
    %1738 = vmatpush1.msra.mxu0 %v1737
    %1739 = vmatprep.subr.mxu0 0.0
    %1740 = vmatpush1.msra.mxu0 0.0
    %1741 = vmatprep.subr.mxu0 0.0
    %1742 = vmatpush1.msra.mxu0 0.0
    %1743 = vmatprep.subr.mxu0 0.0
    %1744 = vmatpush1.msra.mxu0 0.0
    %1745 = vmatprep.subr.mxu0 0.0
    %1746 = vmatpush1.msra.mxu0 0.0
    %1747 = vmatprep.subr.mxu0 0.0
    %1748 = vmatpush1.msra.mxu0 0.0
    %1749 = vmatprep.subr.mxu0 0.0
    %1750 = vmatpush1.msra.mxu0 0.0
    %1751 = vmatprep.subr.mxu0 0.0
    %1752 = vmatpush1.msra.mxu0 0.0
    %1753 = vmatprep.subr.mxu0 0.0
    %1754 = vmatpush1.msra.mxu0 0.0
    %1755 = vmatprep.subr.mxu0 0.0
    %1756 = vmatpush1.msra.mxu0 0.0
    %1757 = vmatprep.subr.mxu0 0.0
    %1758 = vmatpush1.msra.mxu0 0.0
    %1759 = vmatprep.subr.mxu0 0.0
    %1760 = vmatpush1.msra.mxu0 0.0
    %1761 = vmatprep.subr.mxu0 0.0
    %1762 = vmatpush1.msra.mxu0 0.0
    %1763 = vmatprep.subr.mxu0 0.0
    %1764 = vmatpush1.msra.mxu0 0.0
    %1765 = vmatprep.subr.mxu0 0.0
    %1766 = vmatpush1.msra.mxu0 0.0
    %1767 = vmatprep.subr.mxu0 0.0
    %1768 = vmatpush1.msra.mxu0 0.0
    %1769 = vmatprep.subr.mxu0 0.0
    %1770 = vmatpush1.msra.mxu0 0.0
    %1771 = vmatprep.subr.mxu0 0.0
    %1772 = vmatpush1.msra.mxu0 0.0
    %1773 = vmatprep.subr.mxu0 0.0
    %1774 = vmatpush1.msra.mxu0 0.0
    %1775 = vmatprep.subr.mxu0 0.0
    %1776 = vmatpush1.msra.mxu0 0.0
    %1777 = vmatprep.subr.mxu0 0.0
    %1778 = vmatpush1.msra.mxu0 0.0
    %1779 = vmatprep.subr.mxu0 0.0
    %1780 = vmatpush1.msra.mxu0 0.0
    %1781 = vmatprep.subr.mxu0 0.0
    %1782 = vmatpush1.msra.mxu0 0.0
    %1783 = vmatprep.subr.mxu0 0.0
    %1784 = vmatpush1.msra.mxu0 0.0
    %1785 = vmatprep.subr.mxu0 0.0
    %1786 = vmatpush1.msra.mxu0 0.0
    %1787 = vmatprep.subr.mxu0 0.0
    %1788 = vmatpush1.msra.mxu0 0.0
    %1789 = vmatprep.subr.mxu0 0.0
    %1790 = vmatpush1.msra.mxu0 0.0
    %1791 = vmatprep.subr.mxu0 0.0
    %1792 = vmatpush1.msra.mxu0 0.0
    %1793 = vmatprep.subr.mxu0 0.0
    %1794 = vmatpush1.msra.mxu0 0.0
    %1795 = vmatprep.subr.mxu0 0.0
    %1796 = vmatpush1.msra.mxu0 0.0
    %1797 = vmatprep.subr.mxu0 0.0
    %1798 = vmatpush1.msra.mxu0 0.0
    %1799 = vmatprep.mubr.f32.mxu0 0.0
    %v1800 = vand.u32 %v1131, 4294901760
    %1801 = vmatmul.mubr.f32.gmra.mrb[0].mxu0 %v1800
    %v1802 = vpop.f32.mrb[0].mxu0
    %v1803 = vadd.f32 %v1712, %v1802
    %v1804 = vpop.f32.mrb[0].mxu0
    %1805 = vmatprep.mubr.f32.mxu0 0.0
    %v1806 = vand.u32 %v1134, 4294901760
    %1807 = vmatmul.mubr.f32.gmra.mrb[0].mxu0 %v1806
    %v1808 = vpop.f32.mrb[0].mxu0
    %v1809 = vadd.f32 %v1722, %v1808
    %v1810 = vpop.f32.mrb[0].mxu0
    %1811 = vdwg.mxu0
    %1812 = vmatprep.subr.mxu0 0.0
    %v1813 = vand.u32 %v1084, 4294901760
    %v1814 = vsub.f32 %v1084, %v1813
    %1815 = vmatpush1.msra.mxu0 %v1814
    %1816 = vmatprep.subr.mxu0 0.0
    %v1817 = vand.u32 %v1090, 4294901760
    %v1818 = vsub.f32 %v1090, %v1817
    %1819 = vmatpush1.msra.mxu0 %v1818
    %1820 = vmatprep.subr.mxu0 0.0
    %1821 = vmatpush1.msra.mxu0 0.0
    %1822 = vmatprep.subr.mxu0 0.0
    %1823 = vmatpush1.msra.mxu0 0.0
    %1824 = vmatprep.subr.mxu0 0.0
    %1825 = vmatpush1.msra.mxu0 0.0
    %1826 = vmatprep.subr.mxu0 0.0
    %1827 = vmatpush1.msra.mxu0 0.0
    %1828 = vmatprep.subr.mxu0 0.0
    %1829 = vmatpush1.msra.mxu0 0.0
    %1830 = vmatprep.subr.mxu0 0.0
    %1831 = vmatpush1.msra.mxu0 0.0
    %1832 = vmatprep.subr.mxu0 0.0
    %1833 = vmatpush1.msra.mxu0 0.0
    %1834 = vmatprep.subr.mxu0 0.0
    %1835 = vmatpush1.msra.mxu0 0.0
    %1836 = vmatprep.subr.mxu0 0.0
    %1837 = vmatpush1.msra.mxu0 0.0
    %1838 = vmatprep.subr.mxu0 0.0
    %1839 = vmatpush1.msra.mxu0 0.0
    %1840 = vmatprep.subr.mxu0 0.0
    %1841 = vmatpush1.msra.mxu0 0.0
    %1842 = vmatprep.subr.mxu0 0.0
    %1843 = vmatpush1.msra.mxu0 0.0
    %1844 = vmatprep.subr.mxu0 0.0
    %1845 = vmatpush1.msra.mxu0 0.0
    %1846 = vmatprep.subr.mxu0 0.0
    %1847 = vmatpush1.msra.mxu0 0.0
    %1848 = vmatprep.subr.mxu0 0.0
    %1849 = vmatpush1.msra.mxu0 0.0
    %1850 = vmatprep.subr.mxu0 0.0
    %1851 = vmatpush1.msra.mxu0 0.0
    %1852 = vmatprep.subr.mxu0 0.0
    %1853 = vmatpush1.msra.mxu0 0.0
    %1854 = vmatprep.subr.mxu0 0.0
    %1855 = vmatpush1.msra.mxu0 0.0
    %1856 = vmatprep.subr.mxu0 0.0
    %1857 = vmatpush1.msra.mxu0 0.0
    %1858 = vmatprep.subr.mxu0 0.0
    %1859 = vmatpush1.msra.mxu0 0.0
    %1860 = vmatprep.subr.mxu0 0.0
    %1861 = vmatpush1.msra.mxu0 0.0
    %1862 = vmatprep.subr.mxu0 0.0
    %1863 = vmatpush1.msra.mxu0 0.0
    %1864 = vmatprep.subr.mxu0 0.0
    %1865 = vmatpush1.msra.mxu0 0.0
    %1866 = vmatprep.subr.mxu0 0.0
    %1867 = vmatpush1.msra.mxu0 0.0
    %1868 = vmatprep.subr.mxu0 0.0
    %1869 = vmatpush1.msra.mxu0 0.0
    %1870 = vmatprep.subr.mxu0 0.0
    %1871 = vmatpush1.msra.mxu0 0.0
    %1872 = vmatprep.subr.mxu0 0.0
    %1873 = vmatpush1.msra.mxu0 0.0
    %1874 = vmatprep.subr.mxu0 0.0
    %1875 = vmatpush1.msra.mxu0 0.0
    %1876 = vmatprep.subr.mxu0 0.0
    %1877 = vmatpush1.msra.mxu0 0.0
    %1878 = vmatprep.subr.mxu0 0.0
    %1879 = vmatpush1.msra.mxu0 0.0
    %1880 = vmatprep.mubr.f32.mxu0 0.0
    %v1881 = vand.u32 %v1131, 4294901760
    %v1882 = vsub.f32 %v1131, %v1881
    %1883 = vmatmul.mubr.f32.gmra.mrb[0].mxu0 %v1882
    %v1884 = vpop.f32.mrb[0].mxu0
    %v1885 = vadd.f32 %v1803, %v1884
    %v1886 = vpop.f32.mrb[0].mxu0
    %1887 = vmatprep.mubr.f32.mxu0 0.0
    %v1888 = vand.u32 %v1134, 4294901760
    %v1889 = vsub.f32 %v1134, %v1888
    %1890 = vmatmul.mubr.f32.gmra.mrb[0].mxu0 %v1889
    %v1891 = vpop.f32.mrb[0].mxu0
    %v1892 = vadd.f32 %v1809, %v1891
    %v1893 = vpop.f32.mrb[0].mxu0
    %1894 = vdwg.mxu0
    %1895 = vmatprep.subr.mxu0 0.0
    %v1896 = vand.u32 %v1084, 4294901760
    %1897 = vmatpush1.msra.mxu0 %v1896
    %1898 = vmatprep.subr.mxu0 0.0
    %v1899 = vand.u32 %v1090, 4294901760
    %1900 = vmatpush1.msra.mxu0 %v1899
    %1901 = vmatprep.subr.mxu0 0.0
    %1902 = vmatpush1.msra.mxu0 0.0
    %1903 = vmatprep.subr.mxu0 0.0
    %1904 = vmatpush1.msra.mxu0 0.0
    %1905 = vmatprep.subr.mxu0 0.0
    %1906 = vmatpush1.msra.mxu0 0.0
    %1907 = vmatprep.subr.mxu0 0.0
    %1908 = vmatpush1.msra.mxu0 0.0
    %1909 = vmatprep.subr.mxu0 0.0
    %1910 = vmatpush1.msra.mxu0 0.0
    %1911 = vmatprep.subr.mxu0 0.0
    %1912 = vmatpush1.msra.mxu0 0.0
    %1913 = vmatprep.subr.mxu0 0.0
    %1914 = vmatpush1.msra.mxu0 0.0
    %1915 = vmatprep.subr.mxu0 0.0
    %1916 = vmatpush1.msra.mxu0 0.0
    %1917 = vmatprep.subr.mxu0 0.0
    %1918 = vmatpush1.msra.mxu0 0.0
    %1919 = vmatprep.subr.mxu0 0.0
    %1920 = vmatpush1.msra.mxu0 0.0
    %1921 = vmatprep.subr.mxu0 0.0
    %1922 = vmatpush1.msra.mxu0 0.0
    %1923 = vmatprep.subr.mxu0 0.0
    %1924 = vmatpush1.msra.mxu0 0.0
    %1925 = vmatprep.subr.mxu0 0.0
    %1926 = vmatpush1.msra.mxu0 0.0
    %1927 = vmatprep.subr.mxu0 0.0
    %1928 = vmatpush1.msra.mxu0 0.0
    %1929 = vmatprep.subr.mxu0 0.0
    %1930 = vmatpush1.msra.mxu0 0.0
    %1931 = vmatprep.subr.mxu0 0.0
    %1932 = vmatpush1.msra.mxu0 0.0
    %1933 = vmatprep.subr.mxu0 0.0
    %1934 = vmatpush1.msra.mxu0 0.0
    %1935 = vmatprep.subr.mxu0 0.0
    %1936 = vmatpush1.msra.mxu0 0.0
    %1937 = vmatprep.subr.mxu0 0.0
    %1938 = vmatpush1.msra.mxu0 0.0
    %1939 = vmatprep.subr.mxu0 0.0
    %1940 = vmatpush1.msra.mxu0 0.0
    %1941 = vmatprep.subr.mxu0 0.0
    %1942 = vmatpush1.msra.mxu0 0.0
    %1943 = vmatprep.subr.mxu0 0.0
    %1944 = vmatpush1.msra.mxu0 0.0
    %1945 = vmatprep.subr.mxu0 0.0
    %1946 = vmatpush1.msra.mxu0 0.0
    %1947 = vmatprep.subr.mxu0 0.0
    %1948 = vmatpush1.msra.mxu0 0.0
    %1949 = vmatprep.subr.mxu0 0.0
    %1950 = vmatpush1.msra.mxu0 0.0
    %1951 = vmatprep.subr.mxu0 0.0
    %1952 = vmatpush1.msra.mxu0 0.0
    %1953 = vmatprep.subr.mxu0 0.0
    %1954 = vmatpush1.msra.mxu0 0.0
    %1955 = vmatprep.subr.mxu0 0.0
    %1956 = vmatpush1.msra.mxu0 0.0
    %1957 = vmatprep.subr.mxu0 0.0
    %1958 = vmatpush1.msra.mxu0 0.0
    %1959 = vmatprep.subr.mxu0 0.0
    %1960 = vmatpush1.msra.mxu0 0.0
    %1961 = vmatprep.mubr.f32.mxu0 0.0
    %v1962 = vand.u32 %v1131, 4294901760
    %v1963 = vsub.f32 %v1131, %v1962
    %v1964 = vand.u32 %v1963, 4294901760
    %1965 = vmatmul.mubr.f32.gmra.mrb[0].mxu0 %v1964
    %v1966 = vpop.f32.mrb[0].mxu0
    %v1967 = vadd.f32 %v1885, %v1966
    %v1968 = vpop.f32.mrb[0].mxu0
    %1969 = vmatprep.mubr.f32.mxu0 0.0
    %v1970 = vand.u32 %v1134, 4294901760
    %v1971 = vsub.f32 %v1134, %v1970
    %v1972 = vand.u32 %v1971, 4294901760
    %1973 = vmatmul.mubr.f32.gmra.mrb[0].mxu0 %v1972
    %v1974 = vpop.f32.mrb[0].mxu0
    %v1975 = vadd.f32 %v1892, %v1974
    %v1976 = vpop.f32.mrb[0].mxu0
    %1977 = vdwg.mxu0
    %1978 = vmatprep.subr.mxu0 0.0
    %v1979 = vand.u32 %v1084, 4294901760
    %v1980 = vsub.f32 %v1084, %v1979
    %v1981 = vand.u32 %v1980, 4294901760
    %1982 = vmatpush1.msra.mxu0 %v1981
    %1983 = vmatprep.subr.mxu0 0.0
    %v1984 = vand.u32 %v1090, 4294901760
    %v1985 = vsub.f32 %v1090, %v1984
    %v1986 = vand.u32 %v1985, 4294901760
    %1987 = vmatpush1.msra.mxu0 %v1986
    %1988 = vmatprep.subr.mxu0 0.0
    %1989 = vmatpush1.msra.mxu0 0.0
    %1990 = vmatprep.subr.mxu0 0.0
    %1991 = vmatpush1.msra.mxu0 0.0
    %1992 = vmatprep.subr.mxu0 0.0
    %1993 = vmatpush1.msra.mxu0 0.0
    %1994 = vmatprep.subr.mxu0 0.0
    %1995 = vmatpush1.msra.mxu0 0.0
    %1996 = vmatprep.subr.mxu0 0.0
    %1997 = vmatpush1.msra.mxu0 0.0
    %1998 = vmatprep.subr.mxu0 0.0
    %1999 = vmatpush1.msra.mxu0 0.0
    %2000 = vmatprep.subr.mxu0 0.0
    %2001 = vmatpush1.msra.mxu0 0.0
    %2002 = vmatprep.subr.mxu0 0.0
    %2003 = vmatpush1.msra.mxu0 0.0
    %2004 = vmatprep.subr.mxu0 0.0
    %2005 = vmatpush1.msra.mxu0 0.0
    %2006 = vmatprep.subr.mxu0 0.0
    %2007 = vmatpush1.msra.mxu0 0.0
    %2008 = vmatprep.subr.mxu0 0.0
    %2009 = vmatpush1.msra.mxu0 0.0
    %2010 = vmatprep.subr.mxu0 0.0
    %2011 = vmatpush1.msra.mxu0 0.0
    %2012 = vmatprep.subr.mxu0 0.0
    %2013 = vmatpush1.msra.mxu0 0.0
    %2014 = vmatprep.subr.mxu0 0.0
    %2015 = vmatpush1.msra.mxu0 0.0
    %2016 = vmatprep.subr.mxu0 0.0
    %2017 = vmatpush1.msra.mxu0 0.0
    %2018 = vmatprep.subr.mxu0 0.0
    %2019 = vmatpush1.msra.mxu0 0.0
    %2020 = vmatprep.subr.mxu0 0.0
    %2021 = vmatpush1.msra.mxu0 0.0
    %2022 = vmatprep.subr.mxu0 0.0
    %2023 = vmatpush1.msra.mxu0 0.0
    %2024 = vmatprep.subr.mxu0 0.0
    %2025 = vmatpush1.msra.mxu0 0.0
    %2026 = vmatprep.subr.mxu0 0.0
    %2027 = vmatpush1.msra.mxu0 0.0
    %2028 = vmatprep.subr.mxu0 0.0
    %2029 = vmatpush1.msra.mxu0 0.0
    %2030 = vmatprep.subr.mxu0 0.0
    %2031 = vmatpush1.msra.mxu0 0.0
    %2032 = vmatprep.subr.mxu0 0.0
    %2033 = vmatpush1.msra.mxu0 0.0
    %2034 = vmatprep.subr.mxu0 0.0
    %2035 = vmatpush1.msra.mxu0 0.0
    %2036 = vmatprep.subr.mxu0 0.0
    %2037 = vmatpush1.msra.mxu0 0.0
    %2038 = vmatprep.subr.mxu0 0.0
    %2039 = vmatpush1.msra.mxu0 0.0
    %2040 = vmatprep.subr.mxu0 0.0
    %2041 = vmatpush1.msra.mxu0 0.0
    %2042 = vmatprep.subr.mxu0 0.0
    %2043 = vmatpush1.msra.mxu0 0.0
    %2044 = vmatprep.subr.mxu0 0.0
    %2045 = vmatpush1.msra.mxu0 0.0
    %2046 = vmatprep.subr.mxu0 0.0
    %2047 = vmatpush1.msra.mxu0 0.0
    %2048 = vmatprep.mubr.f32.mxu0 0.0
    %v2049 = vand.u32 %v1131, 4294901760
    %2050 = vmatmul.mubr.f32.gmra.mrb[0].mxu0 %v2049
    %v2051 = vpop.f32.mrb[0].mxu0
    %v2052 = vadd.f32 %v1967, %v2051
    %v2053 = vpop.f32.mrb[0].mxu0
    %2054 = vmatprep.mubr.f32.mxu0 0.0
    %v2055 = vand.u32 %v1134, 4294901760
    %2056 = vmatmul.mubr.f32.gmra.mrb[0].mxu0 %v2055
    %v2057 = vpop.f32.mrb[0].mxu0
    %v2058 = vadd.f32 %v1975, %v2057
    %v2059 = vpop.f32.mrb[0].mxu0
    %2060 = vdwg.mxu0
    %2061 = vmatprep.subr.mxu0 0.0
    %v2062 = vand.u32 %v1084, 4294901760
    %2063 = vmatpush1.msra.mxu0 %v2062
    %2064 = vmatprep.subr.mxu0 0.0
    %v2065 = vand.u32 %v1090, 4294901760
    %2066 = vmatpush1.msra.mxu0 %v2065
    %2067 = vmatprep.subr.mxu0 0.0
    %2068 = vmatpush1.msra.mxu0 0.0
    %2069 = vmatprep.subr.mxu0 0.0
    %2070 = vmatpush1.msra.mxu0 0.0
    %2071 = vmatprep.subr.mxu0 0.0
    %2072 = vmatpush1.msra.mxu0 0.0
    %2073 = vmatprep.subr.mxu0 0.0
    %2074 = vmatpush1.msra.mxu0 0.0
    %2075 = vmatprep.subr.mxu0 0.0
    %2076 = vmatpush1.msra.mxu0 0.0
    %2077 = vmatprep.subr.mxu0 0.0
    %2078 = vmatpush1.msra.mxu0 0.0
    %2079 = vmatprep.subr.mxu0 0.0
    %2080 = vmatpush1.msra.mxu0 0.0
    %2081 = vmatprep.subr.mxu0 0.0
    %2082 = vmatpush1.msra.mxu0 0.0
    %2083 = vmatprep.subr.mxu0 0.0
    %2084 = vmatpush1.msra.mxu0 0.0
    %2085 = vmatprep.subr.mxu0 0.0
    %2086 = vmatpush1.msra.mxu0 0.0
    %2087 = vmatprep.subr.mxu0 0.0
    %2088 = vmatpush1.msra.mxu0 0.0
    %2089 = vmatprep.subr.mxu0 0.0
    %2090 = vmatpush1.msra.mxu0 0.0
    %2091 = vmatprep.subr.mxu0 0.0
    %2092 = vmatpush1.msra.mxu0 0.0
    %2093 = vmatprep.subr.mxu0 0.0
    %2094 = vmatpush1.msra.mxu0 0.0
    %2095 = vmatprep.subr.mxu0 0.0
    %2096 = vmatpush1.msra.mxu0 0.0
    %2097 = vmatprep.subr.mxu0 0.0
    %2098 = vmatpush1.msra.mxu0 0.0
    %2099 = vmatprep.subr.mxu0 0.0
    %2100 = vmatpush1.msra.mxu0 0.0
    %2101 = vmatprep.subr.mxu0 0.0
    %2102 = vmatpush1.msra.mxu0 0.0
    %2103 = vmatprep.subr.mxu0 0.0
    %2104 = vmatpush1.msra.mxu0 0.0
    %2105 = vmatprep.subr.mxu0 0.0
    %2106 = vmatpush1.msra.mxu0 0.0
    %2107 = vmatprep.subr.mxu0 0.0
    %2108 = vmatpush1.msra.mxu0 0.0
    %2109 = vmatprep.subr.mxu0 0.0
    %2110 = vmatpush1.msra.mxu0 0.0
    %2111 = vmatprep.subr.mxu0 0.0
    %2112 = vmatpush1.msra.mxu0 0.0
    %2113 = vmatprep.subr.mxu0 0.0
    %2114 = vmatpush1.msra.mxu0 0.0
    %2115 = vmatprep.subr.mxu0 0.0
    %2116 = vmatpush1.msra.mxu0 0.0
    %2117 = vmatprep.subr.mxu0 0.0
    %2118 = vmatpush1.msra.mxu0 0.0
    %2119 = vmatprep.subr.mxu0 0.0
    %2120 = vmatpush1.msra.mxu0 0.0
    %2121 = vmatprep.subr.mxu0 0.0
    %2122 = vmatpush1.msra.mxu0 0.0
    %2123 = vmatprep.subr.mxu0 0.0
    %2124 = vmatpush1.msra.mxu0 0.0
    %2125 = vmatprep.subr.mxu0 0.0
    %2126 = vmatpush1.msra.mxu0 0.0
    %2127 = vmatprep.mubr.f32.mxu0 0.0
    %v2128 = vand.u32 %v1131, 4294901760
    %2129 = vmatmul.mubr.f32.gmra.mrb[0].mxu0 %v2128
    %v2130 = vpop.f32.mrb[0].mxu0
    %v2131 = vadd.f32 %v2052, %v2130
    %v2132 = vpop.f32.mrb[0].mxu0
    %2133 = vmatprep.mubr.f32.mxu0 0.0
    %v2134 = vand.u32 %v1134, 4294901760
    %2135 = vmatmul.mubr.f32.gmra.mrb[0].mxu0 %v2134
    %v2136 = vpop.f32.mrb[0].mxu0
    %v2137 = vadd.f32 %v2058, %v2136
    %v2138 = vpop.f32.mrb[0].mxu0
    %2139 = vdwg.mxu0
    %2140 = vmatprep.subr.mxu0 0.0
    %v2141 = vand.u32 %v1096, 4294901760
    %2142 = vmatpush1.msra.mxu0 %v2141
    %2143 = vmatprep.subr.mxu0 0.0
    %v2144 = vand.u32 %v1102, 4294901760
    %2145 = vmatpush1.msra.mxu0 %v2144
    %2146 = vmatprep.subr.mxu0 0.0
    %2147 = vmatpush1.msra.mxu0 0.0
    %2148 = vmatprep.subr.mxu0 0.0
    %2149 = vmatpush1.msra.mxu0 0.0
    %2150 = vmatprep.subr.mxu0 0.0
    %2151 = vmatpush1.msra.mxu0 0.0
    %2152 = vmatprep.subr.mxu0 0.0
    %2153 = vmatpush1.msra.mxu0 0.0
    %2154 = vmatprep.subr.mxu0 0.0
    %2155 = vmatpush1.msra.mxu0 0.0
    %2156 = vmatprep.subr.mxu0 0.0
    %2157 = vmatpush1.msra.mxu0 0.0
    %2158 = vmatprep.subr.mxu0 0.0
    %2159 = vmatpush1.msra.mxu0 0.0
    %2160 = vmatprep.subr.mxu0 0.0
    %2161 = vmatpush1.msra.mxu0 0.0
    %2162 = vmatprep.subr.mxu0 0.0
    %2163 = vmatpush1.msra.mxu0 0.0
    %2164 = vmatprep.subr.mxu0 0.0
    %2165 = vmatpush1.msra.mxu0 0.0
    %2166 = vmatprep.subr.mxu0 0.0
    %2167 = vmatpush1.msra.mxu0 0.0
    %2168 = vmatprep.subr.mxu0 0.0
    %2169 = vmatpush1.msra.mxu0 0.0
    %2170 = vmatprep.subr.mxu0 0.0
    %2171 = vmatpush1.msra.mxu0 0.0
    %2172 = vmatprep.subr.mxu0 0.0
    %2173 = vmatpush1.msra.mxu0 0.0
    %2174 = vmatprep.subr.mxu0 0.0
    %2175 = vmatpush1.msra.mxu0 0.0
    %2176 = vmatprep.subr.mxu0 0.0
    %2177 = vmatpush1.msra.mxu0 0.0
    %2178 = vmatprep.subr.mxu0 0.0
    %2179 = vmatpush1.msra.mxu0 0.0
    %2180 = vmatprep.subr.mxu0 0.0
    %2181 = vmatpush1.msra.mxu0 0.0
    %2182 = vmatprep.subr.mxu0 0.0
    %2183 = vmatpush1.msra.mxu0 0.0
    %2184 = vmatprep.subr.mxu0 0.0
    %2185 = vmatpush1.msra.mxu0 0.0
    %2186 = vmatprep.subr.mxu0 0.0
    %2187 = vmatpush1.msra.mxu0 0.0
    %2188 = vmatprep.subr.mxu0 0.0
    %2189 = vmatpush1.msra.mxu0 0.0
    %2190 = vmatprep.subr.mxu0 0.0
    %2191 = vmatpush1.msra.mxu0 0.0
    %2192 = vmatprep.subr.mxu0 0.0
    %2193 = vmatpush1.msra.mxu0 0.0
    %2194 = vmatprep.subr.mxu0 0.0
    %2195 = vmatpush1.msra.mxu0 0.0
    %2196 = vmatprep.subr.mxu0 0.0
    %2197 = vmatpush1.msra.mxu0 0.0
    %2198 = vmatprep.subr.mxu0 0.0
    %2199 = vmatpush1.msra.mxu0 0.0
    %2200 = vmatprep.subr.mxu0 0.0
    %2201 = vmatpush1.msra.mxu0 0.0
    %2202 = vmatprep.subr.mxu0 0.0
    %2203 = vmatpush1.msra.mxu0 0.0
    %2204 = vmatprep.subr.mxu0 0.0
    %2205 = vmatpush1.msra.mxu0 0.0
    %2206 = vmatprep.mubr.f32.mxu0 0.0
    %v2207 = vand.u32 %v1131, 4294901760
    %v2208 = vsub.f32 %v1131, %v2207
    %v2209 = vand.u32 %v2208, 4294901760
    %v2210 = vsub.f32 %v2208, %v2209
    %v2211 = vand.u32 %v2210, 4294901760
    %2212 = vmatmul.mubr.f32.gmra.mrb[0].mxu0 %v2211
    %v2213 = vpop.f32.mrb[0].mxu0
    %v2214 = vadd.f32 0.0, %v2213
    %v2215 = vpop.f32.mrb[0].mxu0
    %2216 = vmatprep.mubr.f32.mxu0 0.0
    %v2217 = vand.u32 %v1134, 4294901760
    %v2218 = vsub.f32 %v1134, %v2217
    %v2219 = vand.u32 %v2218, 4294901760
    %v2220 = vsub.f32 %v2218, %v2219
    %v2221 = vand.u32 %v2220, 4294901760
    %2222 = vmatmul.mubr.f32.gmra.mrb[0].mxu0 %v2221
    %v2223 = vpop.f32.mrb[0].mxu0
    %v2224 = vadd.f32 0.0, %v2223
    %v2225 = vpop.f32.mrb[0].mxu0
    %2226 = vdwg.mxu0
    %2227 = vmatprep.subr.mxu0 0.0
    %v2228 = vand.u32 %v1096, 4294901760
    %v2229 = vsub.f32 %v1096, %v2228
    %v2230 = vand.u32 %v2229, 4294901760
    %v2231 = vsub.f32 %v2229, %v2230
    %v2232 = vand.u32 %v2231, 4294901760
    %2233 = vmatpush1.msra.mxu0 %v2232
    %2234 = vmatprep.subr.mxu0 0.0
    %v2235 = vand.u32 %v1102, 4294901760
    %v2236 = vsub.f32 %v1102, %v2235
    %v2237 = vand.u32 %v2236, 4294901760
    %v2238 = vsub.f32 %v2236, %v2237
    %v2239 = vand.u32 %v2238, 4294901760
    %2240 = vmatpush1.msra.mxu0 %v2239
    %2241 = vmatprep.subr.mxu0 0.0
    %2242 = vmatpush1.msra.mxu0 0.0
    %2243 = vmatprep.subr.mxu0 0.0
    %2244 = vmatpush1.msra.mxu0 0.0
    %2245 = vmatprep.subr.mxu0 0.0
    %2246 = vmatpush1.msra.mxu0 0.0
    %2247 = vmatprep.subr.mxu0 0.0
    %2248 = vmatpush1.msra.mxu0 0.0
    %2249 = vmatprep.subr.mxu0 0.0
    %2250 = vmatpush1.msra.mxu0 0.0
    %2251 = vmatprep.subr.mxu0 0.0
    %2252 = vmatpush1.msra.mxu0 0.0
    %2253 = vmatprep.subr.mxu0 0.0
    %2254 = vmatpush1.msra.mxu0 0.0
    %2255 = vmatprep.subr.mxu0 0.0
    %2256 = vmatpush1.msra.mxu0 0.0
    %2257 = vmatprep.subr.mxu0 0.0
    %2258 = vmatpush1.msra.mxu0 0.0
    %2259 = vmatprep.subr.mxu0 0.0
    %2260 = vmatpush1.msra.mxu0 0.0
    %2261 = vmatprep.subr.mxu0 0.0
    %2262 = vmatpush1.msra.mxu0 0.0
    %2263 = vmatprep.subr.mxu0 0.0
    %2264 = vmatpush1.msra.mxu0 0.0
    %2265 = vmatprep.subr.mxu0 0.0
    %2266 = vmatpush1.msra.mxu0 0.0
    %2267 = vmatprep.subr.mxu0 0.0
    %2268 = vmatpush1.msra.mxu0 0.0
    %2269 = vmatprep.subr.mxu0 0.0
    %2270 = vmatpush1.msra.mxu0 0.0
    %2271 = vmatprep.subr.mxu0 0.0
    %2272 = vmatpush1.msra.mxu0 0.0
    %2273 = vmatprep.subr.mxu0 0.0
    %2274 = vmatpush1.msra.mxu0 0.0
    %2275 = vmatprep.subr.mxu0 0.0
    %2276 = vmatpush1.msra.mxu0 0.0
    %2277 = vmatprep.subr.mxu0 0.0
    %2278 = vmatpush1.msra.mxu0 0.0
    %2279 = vmatprep.subr.mxu0 0.0
    %2280 = vmatpush1.msra.mxu0 0.0
    %2281 = vmatprep.subr.mxu0 0.0
    %2282 = vmatpush1.msra.mxu0 0.0
    %2283 = vmatprep.subr.mxu0 0.0
    %2284 = vmatpush1.msra.mxu0 0.0
    %2285 = vmatprep.subr.mxu0 0.0
    %2286 = vmatpush1.msra.mxu0 0.0
    %2287 = vmatprep.subr.mxu0 0.0
    %2288 = vmatpush1.msra.mxu0 0.0
    %2289 = vmatprep.subr.mxu0 0.0
    %2290 = vmatpush1.msra.mxu0 0.0
    %2291 = vmatprep.subr.mxu0 0.0
    %2292 = vmatpush1.msra.mxu0 0.0
    %2293 = vmatprep.subr.mxu0 0.0
    %2294 = vmatpush1.msra.mxu0 0.0
    %2295 = vmatprep.subr.mxu0 0.0
    %2296 = vmatpush1.msra.mxu0 0.0
    %2297 = vmatprep.subr.mxu0 0.0
    %2298 = vmatpush1.msra.mxu0 0.0
    %2299 = vmatprep.subr.mxu0 0.0
    %2300 = vmatpush1.msra.mxu0 0.0
    %2301 = vmatprep.mubr.f32.mxu0 0.0
    %v2302 = vand.u32 %v1131, 4294901760
    %2303 = vmatmul.mubr.f32.gmra.mrb[0].mxu0 %v2302
    %v2304 = vpop.f32.mrb[0].mxu0
    %v2305 = vadd.f32 %v2214, %v2304
    %v2306 = vpop.f32.mrb[0].mxu0
    %2307 = vmatprep.mubr.f32.mxu0 0.0
    %v2308 = vand.u32 %v1134, 4294901760
    %2309 = vmatmul.mubr.f32.gmra.mrb[0].mxu0 %v2308
    %v2310 = vpop.f32.mrb[0].mxu0
    %v2311 = vadd.f32 %v2224, %v2310
    %v2312 = vpop.f32.mrb[0].mxu0
    %2313 = vdwg.mxu0
    %2314 = vmatprep.subr.mxu0 0.0
    %v2315 = vand.u32 %v1096, 4294901760
    %v2316 = vsub.f32 %v1096, %v2315
    %2317 = vmatpush1.msra.mxu0 %v2316
    %2318 = vmatprep.subr.mxu0 0.0
    %v2319 = vand.u32 %v1102, 4294901760
    %v2320 = vsub.f32 %v1102, %v2319
    %2321 = vmatpush1.msra.mxu0 %v2320
    %2322 = vmatprep.subr.mxu0 0.0
    %2323 = vmatpush1.msra.mxu0 0.0
    %2324 = vmatprep.subr.mxu0 0.0
    %2325 = vmatpush1.msra.mxu0 0.0
    %2326 = vmatprep.subr.mxu0 0.0
    %2327 = vmatpush1.msra.mxu0 0.0
    %2328 = vmatprep.subr.mxu0 0.0
    %2329 = vmatpush1.msra.mxu0 0.0
    %2330 = vmatprep.subr.mxu0 0.0
    %2331 = vmatpush1.msra.mxu0 0.0
    %2332 = vmatprep.subr.mxu0 0.0
    %2333 = vmatpush1.msra.mxu0 0.0
    %2334 = vmatprep.subr.mxu0 0.0
    %2335 = vmatpush1.msra.mxu0 0.0
    %2336 = vmatprep.subr.mxu0 0.0
    %2337 = vmatpush1.msra.mxu0 0.0
    %2338 = vmatprep.subr.mxu0 0.0
    %2339 = vmatpush1.msra.mxu0 0.0
    %2340 = vmatprep.subr.mxu0 0.0
    %2341 = vmatpush1.msra.mxu0 0.0
    %2342 = vmatprep.subr.mxu0 0.0
    %2343 = vmatpush1.msra.mxu0 0.0
    %2344 = vmatprep.subr.mxu0 0.0
    %2345 = vmatpush1.msra.mxu0 0.0
    %2346 = vmatprep.subr.mxu0 0.0
    %2347 = vmatpush1.msra.mxu0 0.0
    %2348 = vmatprep.subr.mxu0 0.0
    %2349 = vmatpush1.msra.mxu0 0.0
    %2350 = vmatprep.subr.mxu0 0.0
    %2351 = vmatpush1.msra.mxu0 0.0
    %2352 = vmatprep.subr.mxu0 0.0
    %2353 = vmatpush1.msra.mxu0 0.0
    %2354 = vmatprep.subr.mxu0 0.0
    %2355 = vmatpush1.msra.mxu0 0.0
    %2356 = vmatprep.subr.mxu0 0.0
    %2357 = vmatpush1.msra.mxu0 0.0
    %2358 = vmatprep.subr.mxu0 0.0
    %2359 = vmatpush1.msra.mxu0 0.0
    %2360 = vmatprep.subr.mxu0 0.0
    %2361 = vmatpush1.msra.mxu0 0.0
    %2362 = vmatprep.subr.mxu0 0.0
    %2363 = vmatpush1.msra.mxu0 0.0
    %2364 = vmatprep.subr.mxu0 0.0
    %2365 = vmatpush1.msra.mxu0 0.0
    %2366 = vmatprep.subr.mxu0 0.0
    %2367 = vmatpush1.msra.mxu0 0.0
    %2368 = vmatprep.subr.mxu0 0.0
    %2369 = vmatpush1.msra.mxu0 0.0
    %2370 = vmatprep.subr.mxu0 0.0
    %2371 = vmatpush1.msra.mxu0 0.0
    %2372 = vmatprep.subr.mxu0 0.0
    %2373 = vmatpush1.msra.mxu0 0.0
    %2374 = vmatprep.subr.mxu0 0.0
    %2375 = vmatpush1.msra.mxu0 0.0
    %2376 = vmatprep.subr.mxu0 0.0
    %2377 = vmatpush1.msra.mxu0 0.0
    %2378 = vmatprep.subr.mxu0 0.0
    %2379 = vmatpush1.msra.mxu0 0.0
    %2380 = vmatprep.subr.mxu0 0.0
    %2381 = vmatpush1.msra.mxu0 0.0
    %2382 = vmatprep.mubr.f32.mxu0 0.0
    %v2383 = vand.u32 %v1131, 4294901760
    %v2384 = vsub.f32 %v1131, %v2383
    %2385 = vmatmul.mubr.f32.gmra.mrb[0].mxu0 %v2384
    %v2386 = vpop.f32.mrb[0].mxu0
    %v2387 = vadd.f32 %v2305, %v2386
    %v2388 = vpop.f32.mrb[0].mxu0
    %2389 = vmatprep.mubr.f32.mxu0 0.0
    %v2390 = vand.u32 %v1134, 4294901760
    %v2391 = vsub.f32 %v1134, %v2390
    %2392 = vmatmul.mubr.f32.gmra.mrb[0].mxu0 %v2391
    %v2393 = vpop.f32.mrb[0].mxu0
    %v2394 = vadd.f32 %v2311, %v2393
    %v2395 = vpop.f32.mrb[0].mxu0
    %2396 = vdwg.mxu0
    %2397 = vmatprep.subr.mxu0 0.0
    %v2398 = vand.u32 %v1096, 4294901760
    %2399 = vmatpush1.msra.mxu0 %v2398
    %2400 = vmatprep.subr.mxu0 0.0
    %v2401 = vand.u32 %v1102, 4294901760
    %2402 = vmatpush1.msra.mxu0 %v2401
    %2403 = vmatprep.subr.mxu0 0.0
    %2404 = vmatpush1.msra.mxu0 0.0
    %2405 = vmatprep.subr.mxu0 0.0
    %2406 = vmatpush1.msra.mxu0 0.0
    %2407 = vmatprep.subr.mxu0 0.0
    %2408 = vmatpush1.msra.mxu0 0.0
    %2409 = vmatprep.subr.mxu0 0.0
    %2410 = vmatpush1.msra.mxu0 0.0
    %2411 = vmatprep.subr.mxu0 0.0
    %2412 = vmatpush1.msra.mxu0 0.0
    %2413 = vmatprep.subr.mxu0 0.0
    %2414 = vmatpush1.msra.mxu0 0.0
    %2415 = vmatprep.subr.mxu0 0.0
    %2416 = vmatpush1.msra.mxu0 0.0
    %2417 = vmatprep.subr.mxu0 0.0
    %2418 = vmatpush1.msra.mxu0 0.0
    %2419 = vmatprep.subr.mxu0 0.0
    %2420 = vmatpush1.msra.mxu0 0.0
    %2421 = vmatprep.subr.mxu0 0.0
    %2422 = vmatpush1.msra.mxu0 0.0
    %2423 = vmatprep.subr.mxu0 0.0
    %2424 = vmatpush1.msra.mxu0 0.0
    %2425 = vmatprep.subr.mxu0 0.0
    %2426 = vmatpush1.msra.mxu0 0.0
    %2427 = vmatprep.subr.mxu0 0.0
    %2428 = vmatpush1.msra.mxu0 0.0
    %2429 = vmatprep.subr.mxu0 0.0
    %2430 = vmatpush1.msra.mxu0 0.0
    %2431 = vmatprep.subr.mxu0 0.0
    %2432 = vmatpush1.msra.mxu0 0.0
    %2433 = vmatprep.subr.mxu0 0.0
    %2434 = vmatpush1.msra.mxu0 0.0
    %2435 = vmatprep.subr.mxu0 0.0
    %2436 = vmatpush1.msra.mxu0 0.0
    %2437 = vmatprep.subr.mxu0 0.0
    %2438 = vmatpush1.msra.mxu0 0.0
    %2439 = vmatprep.subr.mxu0 0.0
    %2440 = vmatpush1.msra.mxu0 0.0
    %2441 = vmatprep.subr.mxu0 0.0
    %2442 = vmatpush1.msra.mxu0 0.0
    %2443 = vmatprep.subr.mxu0 0.0
    %2444 = vmatpush1.msra.mxu0 0.0
    %2445 = vmatprep.subr.mxu0 0.0
    %2446 = vmatpush1.msra.mxu0 0.0
    %2447 = vmatprep.subr.mxu0 0.0
    %2448 = vmatpush1.msra.mxu0 0.0
    %2449 = vmatprep.subr.mxu0 0.0
    %2450 = vmatpush1.msra.mxu0 0.0
    %2451 = vmatprep.subr.mxu0 0.0
    %2452 = vmatpush1.msra.mxu0 0.0
    %2453 = vmatprep.subr.mxu0 0.0
    %2454 = vmatpush1.msra.mxu0 0.0
    %2455 = vmatprep.subr.mxu0 0.0
    %2456 = vmatpush1.msra.mxu0 0.0
    %2457 = vmatprep.subr.mxu0 0.0
    %2458 = vmatpush1.msra.mxu0 0.0
    %2459 = vmatprep.subr.mxu0 0.0
    %2460 = vmatpush1.msra.mxu0 0.0
    %2461 = vmatprep.subr.mxu0 0.0
    %2462 = vmatpush1.msra.mxu0 0.0
    %2463 = vmatprep.mubr.f32.mxu0 0.0
    %v2464 = vand.u32 %v1131, 4294901760
    %v2465 = vsub.f32 %v1131, %v2464
    %v2466 = vand.u32 %v2465, 4294901760
    %2467 = vmatmul.mubr.f32.gmra.mrb[0].mxu0 %v2466
    %v2468 = vpop.f32.mrb[0].mxu0
    %v2469 = vadd.f32 %v2387, %v2468
    %v2470 = vpop.f32.mrb[0].mxu0
    %2471 = vmatprep.mubr.f32.mxu0 0.0
    %v2472 = vand.u32 %v1134, 4294901760
    %v2473 = vsub.f32 %v1134, %v2472
    %v2474 = vand.u32 %v2473, 4294901760
    %2475 = vmatmul.mubr.f32.gmra.mrb[0].mxu0 %v2474
    %v2476 = vpop.f32.mrb[0].mxu0
    %v2477 = vadd.f32 %v2394, %v2476
    %v2478 = vpop.f32.mrb[0].mxu0
    %2479 = vdwg.mxu0
    %2480 = vmatprep.subr.mxu0 0.0
    %v2481 = vand.u32 %v1096, 4294901760
    %v2482 = vsub.f32 %v1096, %v2481
    %v2483 = vand.u32 %v2482, 4294901760
    %2484 = vmatpush1.msra.mxu0 %v2483
    %2485 = vmatprep.subr.mxu0 0.0
    %v2486 = vand.u32 %v1102, 4294901760
    %v2487 = vsub.f32 %v1102, %v2486
    %v2488 = vand.u32 %v2487, 4294901760
    %2489 = vmatpush1.msra.mxu0 %v2488
    %2490 = vmatprep.subr.mxu0 0.0
    %2491 = vmatpush1.msra.mxu0 0.0
    %2492 = vmatprep.subr.mxu0 0.0
    %2493 = vmatpush1.msra.mxu0 0.0
    %2494 = vmatprep.subr.mxu0 0.0
    %2495 = vmatpush1.msra.mxu0 0.0
    %2496 = vmatprep.subr.mxu0 0.0
    %2497 = vmatpush1.msra.mxu0 0.0
    %2498 = vmatprep.subr.mxu0 0.0
    %2499 = vmatpush1.msra.mxu0 0.0
    %2500 = vmatprep.subr.mxu0 0.0
    %2501 = vmatpush1.msra.mxu0 0.0
    %2502 = vmatprep.subr.mxu0 0.0
    %2503 = vmatpush1.msra.mxu0 0.0
    %2504 = vmatprep.subr.mxu0 0.0
    %2505 = vmatpush1.msra.mxu0 0.0
    %2506 = vmatprep.subr.mxu0 0.0
    %2507 = vmatpush1.msra.mxu0 0.0
    %2508 = vmatprep.subr.mxu0 0.0
    %2509 = vmatpush1.msra.mxu0 0.0
    %2510 = vmatprep.subr.mxu0 0.0
    %2511 = vmatpush1.msra.mxu0 0.0
    %2512 = vmatprep.subr.mxu0 0.0
    %2513 = vmatpush1.msra.mxu0 0.0
    %2514 = vmatprep.subr.mxu0 0.0
    %2515 = vmatpush1.msra.mxu0 0.0
    %2516 = vmatprep.subr.mxu0 0.0
    %2517 = vmatpush1.msra.mxu0 0.0
    %2518 = vmatprep.subr.mxu0 0.0
    %2519 = vmatpush1.msra.mxu0 0.0
    %2520 = vmatprep.subr.mxu0 0.0
    %2521 = vmatpush1.msra.mxu0 0.0
    %2522 = vmatprep.subr.mxu0 0.0
    %2523 = vmatpush1.msra.mxu0 0.0
    %2524 = vmatprep.subr.mxu0 0.0
    %2525 = vmatpush1.msra.mxu0 0.0
    %2526 = vmatprep.subr.mxu0 0.0
    %2527 = vmatpush1.msra.mxu0 0.0
    %2528 = vmatprep.subr.mxu0 0.0
    %2529 = vmatpush1.msra.mxu0 0.0
    %2530 = vmatprep.subr.mxu0 0.0
    %2531 = vmatpush1.msra.mxu0 0.0
    %2532 = vmatprep.subr.mxu0 0.0
    %2533 = vmatpush1.msra.mxu0 0.0
    %2534 = vmatprep.subr.mxu0 0.0
    %2535 = vmatpush1.msra.mxu0 0.0
    %2536 = vmatprep.subr.mxu0 0.0
    %2537 = vmatpush1.msra.mxu0 0.0
    %2538 = vmatprep.subr.mxu0 0.0
    %2539 = vmatpush1.msra.mxu0 0.0
    %2540 = vmatprep.subr.mxu0 0.0
    %2541 = vmatpush1.msra.mxu0 0.0
    %2542 = vmatprep.subr.mxu0 0.0
    %2543 = vmatpush1.msra.mxu0 0.0
    %2544 = vmatprep.subr.mxu0 0.0
    %2545 = vmatpush1.msra.mxu0 0.0
    %2546 = vmatprep.subr.mxu0 0.0
    %2547 = vmatpush1.msra.mxu0 0.0
    %2548 = vmatprep.subr.mxu0 0.0
    %2549 = vmatpush1.msra.mxu0 0.0
    %2550 = vmatprep.mubr.f32.mxu0 0.0
    %v2551 = vand.u32 %v1131, 4294901760
    %2552 = vmatmul.mubr.f32.gmra.mrb[0].mxu0 %v2551
    %v2553 = vpop.f32.mrb[0].mxu0
    %v2554 = vadd.f32 %v2469, %v2553
    %v2555 = vpop.f32.mrb[0].mxu0
    %2556 = vmatprep.mubr.f32.mxu0 0.0
    %v2557 = vand.u32 %v1134, 4294901760
    %2558 = vmatmul.mubr.f32.gmra.mrb[0].mxu0 %v2557
    %v2559 = vpop.f32.mrb[0].mxu0
    %v2560 = vadd.f32 %v2477, %v2559
    %v2561 = vpop.f32.mrb[0].mxu0
    %2562 = vdwg.mxu0
    %2563 = vmatprep.subr.mxu0 0.0
    %v2564 = vand.u32 %v1096, 4294901760
    %2565 = vmatpush1.msra.mxu0 %v2564
    %2566 = vmatprep.subr.mxu0 0.0
    %v2567 = vand.u32 %v1102, 4294901760
    %2568 = vmatpush1.msra.mxu0 %v2567
    %2569 = vmatprep.subr.mxu0 0.0
    %2570 = vmatpush1.msra.mxu0 0.0
    %2571 = vmatprep.subr.mxu0 0.0
    %2572 = vmatpush1.msra.mxu0 0.0
    %2573 = vmatprep.subr.mxu0 0.0
    %2574 = vmatpush1.msra.mxu0 0.0
    %2575 = vmatprep.subr.mxu0 0.0
    %2576 = vmatpush1.msra.mxu0 0.0
    %2577 = vmatprep.subr.mxu0 0.0
    %2578 = vmatpush1.msra.mxu0 0.0
    %2579 = vmatprep.subr.mxu0 0.0
    %2580 = vmatpush1.msra.mxu0 0.0
    %2581 = vmatprep.subr.mxu0 0.0
    %2582 = vmatpush1.msra.mxu0 0.0
    %2583 = vmatprep.subr.mxu0 0.0
    %2584 = vmatpush1.msra.mxu0 0.0
    %2585 = vmatprep.subr.mxu0 0.0
    %2586 = vmatpush1.msra.mxu0 0.0
    %2587 = vmatprep.subr.mxu0 0.0
    %2588 = vmatpush1.msra.mxu0 0.0
    %2589 = vmatprep.subr.mxu0 0.0
    %2590 = vmatpush1.msra.mxu0 0.0
    %2591 = vmatprep.subr.mxu0 0.0
    %2592 = vmatpush1.msra.mxu0 0.0
    %2593 = vmatprep.subr.mxu0 0.0
    %2594 = vmatpush1.msra.mxu0 0.0
    %2595 = vmatprep.subr.mxu0 0.0
    %2596 = vmatpush1.msra.mxu0 0.0
    %2597 = vmatprep.subr.mxu0 0.0
    %2598 = vmatpush1.msra.mxu0 0.0
    %2599 = vmatprep.subr.mxu0 0.0
    %2600 = vmatpush1.msra.mxu0 0.0
    %2601 = vmatprep.subr.mxu0 0.0
    %2602 = vmatpush1.msra.mxu0 0.0
    %2603 = vmatprep.subr.mxu0 0.0
    %2604 = vmatpush1.msra.mxu0 0.0
    %2605 = vmatprep.subr.mxu0 0.0
    %2606 = vmatpush1.msra.mxu0 0.0
    %2607 = vmatprep.subr.mxu0 0.0
    %2608 = vmatpush1.msra.mxu0 0.0
    %2609 = vmatprep.subr.mxu0 0.0
    %2610 = vmatpush1.msra.mxu0 0.0
    %2611 = vmatprep.subr.mxu0 0.0
    %2612 = vmatpush1.msra.mxu0 0.0
    %2613 = vmatprep.subr.mxu0 0.0
    %2614 = vmatpush1.msra.mxu0 0.0
    %2615 = vmatprep.subr.mxu0 0.0
    %2616 = vmatpush1.msra.mxu0 0.0
    %2617 = vmatprep.subr.mxu0 0.0
    %2618 = vmatpush1.msra.mxu0 0.0
    %2619 = vmatprep.subr.mxu0 0.0
    %2620 = vmatpush1.msra.mxu0 0.0
    %2621 = vmatprep.subr.mxu0 0.0
    %2622 = vmatpush1.msra.mxu0 0.0
    %2623 = vmatprep.subr.mxu0 0.0
    %2624 = vmatpush1.msra.mxu0 0.0
    %2625 = vmatprep.subr.mxu0 0.0
    %2626 = vmatpush1.msra.mxu0 0.0
    %2627 = vmatprep.subr.mxu0 0.0
    %2628 = vmatpush1.msra.mxu0 0.0
    %2629 = vmatprep.mubr.f32.mxu0 0.0
    %v2630 = vand.u32 %v1131, 4294901760
    %2631 = vmatmul.mubr.f32.gmra.mrb[0].mxu0 %v2630
    %v2632 = vpop.f32.mrb[0].mxu0
    %v2633 = vadd.f32 %v2554, %v2632
    %v2634 = vpop.f32.mrb[0].mxu0
    %2635 = vmatprep.mubr.f32.mxu0 0.0
    %v2636 = vand.u32 %v1134, 4294901760
    %2637 = vmatmul.mubr.f32.gmra.mrb[0].mxu0 %v2636
    %v2638 = vpop.f32.mrb[0].mxu0
    %v2639 = vadd.f32 %v2560, %v2638
    %v2640 = vpop.f32.mrb[0].mxu0
    %2641 = vdwg.mxu0
    %2642 = vmatprep.subr.mxu0 0.0
    %v2643 = vand.u32 %v1108, 4294901760
    %2644 = vmatpush1.msra.mxu0 %v2643
    %2645 = vmatprep.subr.mxu0 0.0
    %v2646 = vand.u32 %v1114, 4294901760
    %2647 = vmatpush1.msra.mxu0 %v2646
    %2648 = vmatprep.subr.mxu0 0.0
    %2649 = vmatpush1.msra.mxu0 0.0
    %2650 = vmatprep.subr.mxu0 0.0
    %2651 = vmatpush1.msra.mxu0 0.0
    %2652 = vmatprep.subr.mxu0 0.0
    %2653 = vmatpush1.msra.mxu0 0.0
    %2654 = vmatprep.subr.mxu0 0.0
    %2655 = vmatpush1.msra.mxu0 0.0
    %2656 = vmatprep.subr.mxu0 0.0
    %2657 = vmatpush1.msra.mxu0 0.0
    %2658 = vmatprep.subr.mxu0 0.0
    %2659 = vmatpush1.msra.mxu0 0.0
    %2660 = vmatprep.subr.mxu0 0.0
    %2661 = vmatpush1.msra.mxu0 0.0
    %2662 = vmatprep.subr.mxu0 0.0
    %2663 = vmatpush1.msra.mxu0 0.0
    %2664 = vmatprep.subr.mxu0 0.0
    %2665 = vmatpush1.msra.mxu0 0.0
    %2666 = vmatprep.subr.mxu0 0.0
    %2667 = vmatpush1.msra.mxu0 0.0
    %2668 = vmatprep.subr.mxu0 0.0
    %2669 = vmatpush1.msra.mxu0 0.0
    %2670 = vmatprep.subr.mxu0 0.0
    %2671 = vmatpush1.msra.mxu0 0.0
    %2672 = vmatprep.subr.mxu0 0.0
    %2673 = vmatpush1.msra.mxu0 0.0
    %2674 = vmatprep.subr.mxu0 0.0
    %2675 = vmatpush1.msra.mxu0 0.0
    %2676 = vmatprep.subr.mxu0 0.0
    %2677 = vmatpush1.msra.mxu0 0.0
    %2678 = vmatprep.subr.mxu0 0.0
    %2679 = vmatpush1.msra.mxu0 0.0
    %2680 = vmatprep.subr.mxu0 0.0
    %2681 = vmatpush1.msra.mxu0 0.0
    %2682 = vmatprep.subr.mxu0 0.0
    %2683 = vmatpush1.msra.mxu0 0.0
    %2684 = vmatprep.subr.mxu0 0.0
    %2685 = vmatpush1.msra.mxu0 0.0
    %2686 = vmatprep.subr.mxu0 0.0
    %2687 = vmatpush1.msra.mxu0 0.0
    %2688 = vmatprep.subr.mxu0 0.0
    %2689 = vmatpush1.msra.mxu0 0.0
    %2690 = vmatprep.subr.mxu0 0.0
    %2691 = vmatpush1.msra.mxu0 0.0
    %2692 = vmatprep.subr.mxu0 0.0
    %2693 = vmatpush1.msra.mxu0 0.0
    %2694 = vmatprep.subr.mxu0 0.0
    %2695 = vmatpush1.msra.mxu0 0.0
    %2696 = vmatprep.subr.mxu0 0.0
    %2697 = vmatpush1.msra.mxu0 0.0
    %2698 = vmatprep.subr.mxu0 0.0
    %2699 = vmatpush1.msra.mxu0 0.0
    %2700 = vmatprep.subr.mxu0 0.0
    %2701 = vmatpush1.msra.mxu0 0.0
    %2702 = vmatprep.subr.mxu0 0.0
    %2703 = vmatpush1.msra.mxu0 0.0
    %2704 = vmatprep.subr.mxu0 0.0
    %2705 = vmatpush1.msra.mxu0 0.0
    %2706 = vmatprep.subr.mxu0 0.0
    %2707 = vmatpush1.msra.mxu0 0.0
    %2708 = vmatprep.mubr.f32.mxu0 0.0
    %v2709 = vand.u32 %v1131, 4294901760
    %v2710 = vsub.f32 %v1131, %v2709
    %v2711 = vand.u32 %v2710, 4294901760
    %v2712 = vsub.f32 %v2710, %v2711
    %v2713 = vand.u32 %v2712, 4294901760
    %2714 = vmatmul.mubr.f32.gmra.mrb[0].mxu0 %v2713
    %v2715 = vpop.f32.mrb[0].mxu0
    %v2716 = vadd.f32 0.0, %v2715
    %v2717 = vpop.f32.mrb[0].mxu0
    %2718 = vmatprep.mubr.f32.mxu0 0.0
    %v2719 = vand.u32 %v1134, 4294901760
    %v2720 = vsub.f32 %v1134, %v2719
    %v2721 = vand.u32 %v2720, 4294901760
    %v2722 = vsub.f32 %v2720, %v2721
    %v2723 = vand.u32 %v2722, 4294901760
    %2724 = vmatmul.mubr.f32.gmra.mrb[0].mxu0 %v2723
    %v2725 = vpop.f32.mrb[0].mxu0
    %v2726 = vadd.f32 0.0, %v2725
    %v2727 = vpop.f32.mrb[0].mxu0
    %2728 = vdwg.mxu0
    %2729 = vmatprep.subr.mxu0 0.0
    %v2730 = vand.u32 %v1108, 4294901760
    %v2731 = vsub.f32 %v1108, %v2730
    %v2732 = vand.u32 %v2731, 4294901760
    %v2733 = vsub.f32 %v2731, %v2732
    %v2734 = vand.u32 %v2733, 4294901760
    %2735 = vmatpush1.msra.mxu0 %v2734
    %2736 = vmatprep.subr.mxu0 0.0
    %v2737 = vand.u32 %v1114, 4294901760
    %v2738 = vsub.f32 %v1114, %v2737
    %v2739 = vand.u32 %v2738, 4294901760
    %v2740 = vsub.f32 %v2738, %v2739
    %v2741 = vand.u32 %v2740, 4294901760
    %2742 = vmatpush1.msra.mxu0 %v2741
    %2743 = vmatprep.subr.mxu0 0.0
    %2744 = vmatpush1.msra.mxu0 0.0
    %2745 = vmatprep.subr.mxu0 0.0
    %2746 = vmatpush1.msra.mxu0 0.0
    %2747 = vmatprep.subr.mxu0 0.0
    %2748 = vmatpush1.msra.mxu0 0.0
    %2749 = vmatprep.subr.mxu0 0.0
    %2750 = vmatpush1.msra.mxu0 0.0
    %2751 = vmatprep.subr.mxu0 0.0
    %2752 = vmatpush1.msra.mxu0 0.0
    %2753 = vmatprep.subr.mxu0 0.0
    %2754 = vmatpush1.msra.mxu0 0.0
    %2755 = vmatprep.subr.mxu0 0.0
    %2756 = vmatpush1.msra.mxu0 0.0
    %2757 = vmatprep.subr.mxu0 0.0
    %2758 = vmatpush1.msra.mxu0 0.0
    %2759 = vmatprep.subr.mxu0 0.0
    %2760 = vmatpush1.msra.mxu0 0.0
    %2761 = vmatprep.subr.mxu0 0.0
    %2762 = vmatpush1.msra.mxu0 0.0
    %2763 = vmatprep.subr.mxu0 0.0
    %2764 = vmatpush1.msra.mxu0 0.0
    %2765 = vmatprep.subr.mxu0 0.0
    %2766 = vmatpush1.msra.mxu0 0.0
    %2767 = vmatprep.subr.mxu0 0.0
    %2768 = vmatpush1.msra.mxu0 0.0
    %2769 = vmatprep.subr.mxu0 0.0
    %2770 = vmatpush1.msra.mxu0 0.0
    %2771 = vmatprep.subr.mxu0 0.0
    %2772 = vmatpush1.msra.mxu0 0.0
    %2773 = vmatprep.subr.mxu0 0.0
    %2774 = vmatpush1.msra.mxu0 0.0
    %2775 = vmatprep.subr.mxu0 0.0
    %2776 = vmatpush1.msra.mxu0 0.0
    %2777 = vmatprep.subr.mxu0 0.0
    %2778 = vmatpush1.msra.mxu0 0.0
    %2779 = vmatprep.subr.mxu0 0.0
    %2780 = vmatpush1.msra.mxu0 0.0
    %2781 = vmatprep.subr.mxu0 0.0
    %2782 = vmatpush1.msra.mxu0 0.0
    %2783 = vmatprep.subr.mxu0 0.0
    %2784 = vmatpush1.msra.mxu0 0.0
    %2785 = vmatprep.subr.mxu0 0.0
    %2786 = vmatpush1.msra.mxu0 0.0
    %2787 = vmatprep.subr.mxu0 0.0
    %2788 = vmatpush1.msra.mxu0 0.0
    %2789 = vmatprep.subr.mxu0 0.0
    %2790 = vmatpush1.msra.mxu0 0.0
    %2791 = vmatprep.subr.mxu0 0.0
    %2792 = vmatpush1.msra.mxu0 0.0
    %2793 = vmatprep.subr.mxu0 0.0
    %2794 = vmatpush1.msra.mxu0 0.0
    %2795 = vmatprep.subr.mxu0 0.0
    %2796 = vmatpush1.msra.mxu0 0.0
    %2797 = vmatprep.subr.mxu0 0.0
    %2798 = vmatpush1.msra.mxu0 0.0
    %2799 = vmatprep.subr.mxu0 0.0
    %2800 = vmatpush1.msra.mxu0 0.0
    %2801 = vmatprep.subr.mxu0 0.0
    %2802 = vmatpush1.msra.mxu0 0.0
    %2803 = vmatprep.mubr.f32.mxu0 0.0
    %v2804 = vand.u32 %v1131, 4294901760
    %2805 = vmatmul.mubr.f32.gmra.mrb[0].mxu0 %v2804
    %v2806 = vpop.f32.mrb[0].mxu0
    %v2807 = vadd.f32 %v2716, %v2806
    %v2808 = vpop.f32.mrb[0].mxu0
    %2809 = vmatprep.mubr.f32.mxu0 0.0
    %v2810 = vand.u32 %v1134, 4294901760
    %2811 = vmatmul.mubr.f32.gmra.mrb[0].mxu0 %v2810
    %v2812 = vpop.f32.mrb[0].mxu0
    %v2813 = vadd.f32 %v2726, %v2812
    %v2814 = vpop.f32.mrb[0].mxu0
    %2815 = vdwg.mxu0
    %2816 = vmatprep.subr.mxu0 0.0
    %v2817 = vand.u32 %v1108, 4294901760
    %v2818 = vsub.f32 %v1108, %v2817
    %2819 = vmatpush1.msra.mxu0 %v2818
    %2820 = vmatprep.subr.mxu0 0.0
    %v2821 = vand.u32 %v1114, 4294901760
    %v2822 = vsub.f32 %v1114, %v2821
    %2823 = vmatpush1.msra.mxu0 %v2822
    %2824 = vmatprep.subr.mxu0 0.0
    %2825 = vmatpush1.msra.mxu0 0.0
    %2826 = vmatprep.subr.mxu0 0.0
    %2827 = vmatpush1.msra.mxu0 0.0
    %2828 = vmatprep.subr.mxu0 0.0
    %2829 = vmatpush1.msra.mxu0 0.0
    %2830 = vmatprep.subr.mxu0 0.0
    %2831 = vmatpush1.msra.mxu0 0.0
    %2832 = vmatprep.subr.mxu0 0.0
    %2833 = vmatpush1.msra.mxu0 0.0
    %2834 = vmatprep.subr.mxu0 0.0
    %2835 = vmatpush1.msra.mxu0 0.0
    %2836 = vmatprep.subr.mxu0 0.0
    %2837 = vmatpush1.msra.mxu0 0.0
    %2838 = vmatprep.subr.mxu0 0.0
    %2839 = vmatpush1.msra.mxu0 0.0
    %2840 = vmatprep.subr.mxu0 0.0
    %2841 = vmatpush1.msra.mxu0 0.0
    %2842 = vmatprep.subr.mxu0 0.0
    %2843 = vmatpush1.msra.mxu0 0.0
    %2844 = vmatprep.subr.mxu0 0.0
    %2845 = vmatpush1.msra.mxu0 0.0
    %2846 = vmatprep.subr.mxu0 0.0
    %2847 = vmatpush1.msra.mxu0 0.0
    %2848 = vmatprep.subr.mxu0 0.0
    %2849 = vmatpush1.msra.mxu0 0.0
    %2850 = vmatprep.subr.mxu0 0.0
    %2851 = vmatpush1.msra.mxu0 0.0
    %2852 = vmatprep.subr.mxu0 0.0
    %2853 = vmatpush1.msra.mxu0 0.0
    %2854 = vmatprep.subr.mxu0 0.0
    %2855 = vmatpush1.msra.mxu0 0.0
    %2856 = vmatprep.subr.mxu0 0.0
    %2857 = vmatpush1.msra.mxu0 0.0
    %2858 = vmatprep.subr.mxu0 0.0
    %2859 = vmatpush1.msra.mxu0 0.0
    %2860 = vmatprep.subr.mxu0 0.0
    %2861 = vmatpush1.msra.mxu0 0.0
    %2862 = vmatprep.subr.mxu0 0.0
    %2863 = vmatpush1.msra.mxu0 0.0
    %2864 = vmatprep.subr.mxu0 0.0
    %2865 = vmatpush1.msra.mxu0 0.0
    %2866 = vmatprep.subr.mxu0 0.0
    %2867 = vmatpush1.msra.mxu0 0.0
    %2868 = vmatprep.subr.mxu0 0.0
    %2869 = vmatpush1.msra.mxu0 0.0
    %2870 = vmatprep.subr.mxu0 0.0
    %2871 = vmatpush1.msra.mxu0 0.0
    %2872 = vmatprep.subr.mxu0 0.0
    %2873 = vmatpush1.msra.mxu0 0.0
    %2874 = vmatprep.subr.mxu0 0.0
    %2875 = vmatpush1.msra.mxu0 0.0
    %2876 = vmatprep.subr.mxu0 0.0
    %2877 = vmatpush1.msra.mxu0 0.0
    %2878 = vmatprep.subr.mxu0 0.0
    %2879 = vmatpush1.msra.mxu0 0.0
    %2880 = vmatprep.subr.mxu0 0.0
    %2881 = vmatpush1.msra.mxu0 0.0
    %2882 = vmatprep.subr.mxu0 0.0
    %2883 = vmatpush1.msra.mxu0 0.0
    %2884 = vmatprep.mubr.f32.mxu0 0.0
    %v2885 = vand.u32 %v1131, 4294901760
    %v2886 = vsub.f32 %v1131, %v2885
    %2887 = vmatmul.mubr.f32.gmra.mrb[0].mxu0 %v2886
    %v2888 = vpop.f32.mrb[0].mxu0
    %v2889 = vadd.f32 %v2807, %v2888
    %v2890 = vpop.f32.mrb[0].mxu0
    %2891 = vmatprep.mubr.f32.mxu0 0.0
    %v2892 = vand.u32 %v1134, 4294901760
    %v2893 = vsub.f32 %v1134, %v2892
    %2894 = vmatmul.mubr.f32.gmra.mrb[0].mxu0 %v2893
    %v2895 = vpop.f32.mrb[0].mxu0
    %v2896 = vadd.f32 %v2813, %v2895
    %v2897 = vpop.f32.mrb[0].mxu0
    %2898 = vdwg.mxu0
    %2899 = vmatprep.subr.mxu0 0.0
    %v2900 = vand.u32 %v1108, 4294901760
    %2901 = vmatpush1.msra.mxu0 %v2900
    %2902 = vmatprep.subr.mxu0 0.0
    %v2903 = vand.u32 %v1114, 4294901760
    %2904 = vmatpush1.msra.mxu0 %v2903
    %2905 = vmatprep.subr.mxu0 0.0
    %2906 = vmatpush1.msra.mxu0 0.0
    %2907 = vmatprep.subr.mxu0 0.0
    %2908 = vmatpush1.msra.mxu0 0.0
    %2909 = vmatprep.subr.mxu0 0.0
    %2910 = vmatpush1.msra.mxu0 0.0
    %2911 = vmatprep.subr.mxu0 0.0
    %2912 = vmatpush1.msra.mxu0 0.0
    %2913 = vmatprep.subr.mxu0 0.0
    %2914 = vmatpush1.msra.mxu0 0.0
    %2915 = vmatprep.subr.mxu0 0.0
    %2916 = vmatpush1.msra.mxu0 0.0
    %2917 = vmatprep.subr.mxu0 0.0
    %2918 = vmatpush1.msra.mxu0 0.0
    %2919 = vmatprep.subr.mxu0 0.0
    %2920 = vmatpush1.msra.mxu0 0.0
    %2921 = vmatprep.subr.mxu0 0.0
    %2922 = vmatpush1.msra.mxu0 0.0
    %2923 = vmatprep.subr.mxu0 0.0
    %2924 = vmatpush1.msra.mxu0 0.0
    %2925 = vmatprep.subr.mxu0 0.0
    %2926 = vmatpush1.msra.mxu0 0.0
    %2927 = vmatprep.subr.mxu0 0.0
    %2928 = vmatpush1.msra.mxu0 0.0
    %2929 = vmatprep.subr.mxu0 0.0
    %2930 = vmatpush1.msra.mxu0 0.0
    %2931 = vmatprep.subr.mxu0 0.0
    %2932 = vmatpush1.msra.mxu0 0.0
    %2933 = vmatprep.subr.mxu0 0.0
    %2934 = vmatpush1.msra.mxu0 0.0
    %2935 = vmatprep.subr.mxu0 0.0
    %2936 = vmatpush1.msra.mxu0 0.0
    %2937 = vmatprep.subr.mxu0 0.0
    %2938 = vmatpush1.msra.mxu0 0.0
    %2939 = vmatprep.subr.mxu0 0.0
    %2940 = vmatpush1.msra.mxu0 0.0
    %2941 = vmatprep.subr.mxu0 0.0
    %2942 = vmatpush1.msra.mxu0 0.0
    %2943 = vmatprep.subr.mxu0 0.0
    %2944 = vmatpush1.msra.mxu0 0.0
    %2945 = vmatprep.subr.mxu0 0.0
    %2946 = vmatpush1.msra.mxu0 0.0
    %2947 = vmatprep.subr.mxu0 0.0
    %2948 = vmatpush1.msra.mxu0 0.0
    %2949 = vmatprep.subr.mxu0 0.0
    %2950 = vmatpush1.msra.mxu0 0.0
    %2951 = vmatprep.subr.mxu0 0.0
    %2952 = vmatpush1.msra.mxu0 0.0
    %2953 = vmatprep.subr.mxu0 0.0
    %2954 = vmatpush1.msra.mxu0 0.0
    %2955 = vmatprep.subr.mxu0 0.0
    %2956 = vmatpush1.msra.mxu0 0.0
    %2957 = vmatprep.subr.mxu0 0.0
    %2958 = vmatpush1.msra.mxu0 0.0
    %2959 = vmatprep.subr.mxu0 0.0
    %2960 = vmatpush1.msra.mxu0 0.0
    %2961 = vmatprep.subr.mxu0 0.0
    %2962 = vmatpush1.msra.mxu0 0.0
    %2963 = vmatprep.subr.mxu0 0.0
    %2964 = vmatpush1.msra.mxu0 0.0
    %2965 = vmatprep.mubr.f32.mxu0 0.0
    %v2966 = vand.u32 %v1131, 4294901760
    %v2967 = vsub.f32 %v1131, %v2966
    %v2968 = vand.u32 %v2967, 4294901760
    %2969 = vmatmul.mubr.f32.gmra.mrb[0].mxu0 %v2968
    %v2970 = vpop.f32.mrb[0].mxu0
    %v2971 = vadd.f32 %v2889, %v2970
    %v2972 = vpop.f32.mrb[0].mxu0
    %2973 = vmatprep.mubr.f32.mxu0 0.0
    %v2974 = vand.u32 %v1134, 4294901760
    %v2975 = vsub.f32 %v1134, %v2974
    %v2976 = vand.u32 %v2975, 4294901760
    %2977 = vmatmul.mubr.f32.gmra.mrb[0].mxu0 %v2976
    %v2978 = vpop.f32.mrb[0].mxu0
    %v2979 = vadd.f32 %v2896, %v2978
    %v2980 = vpop.f32.mrb[0].mxu0
    %2981 = vdwg.mxu0
    %2982 = vmatprep.subr.mxu0 0.0
    %v2983 = vand.u32 %v1108, 4294901760
    %v2984 = vsub.f32 %v1108, %v2983
    %v2985 = vand.u32 %v2984, 4294901760
    %2986 = vmatpush1.msra.mxu0 %v2985
    %2987 = vmatprep.subr.mxu0 0.0
    %v2988 = vand.u32 %v1114, 4294901760
    %v2989 = vsub.f32 %v1114, %v2988
    %v2990 = vand.u32 %v2989, 4294901760
    %2991 = vmatpush1.msra.mxu0 %v2990
    %2992 = vmatprep.subr.mxu0 0.0
    %2993 = vmatpush1.msra.mxu0 0.0
    %2994 = vmatprep.subr.mxu0 0.0
    %2995 = vmatpush1.msra.mxu0 0.0
    %2996 = vmatprep.subr.mxu0 0.0
    %2997 = vmatpush1.msra.mxu0 0.0
    %2998 = vmatprep.subr.mxu0 0.0
    %2999 = vmatpush1.msra.mxu0 0.0
    %3000 = vmatprep.subr.mxu0 0.0
    %3001 = vmatpush1.msra.mxu0 0.0
    %3002 = vmatprep.subr.mxu0 0.0
    %3003 = vmatpush1.msra.mxu0 0.0
    %3004 = vmatprep.subr.mxu0 0.0
    %3005 = vmatpush1.msra.mxu0 0.0
    %3006 = vmatprep.subr.mxu0 0.0
    %3007 = vmatpush1.msra.mxu0 0.0
    %3008 = vmatprep.subr.mxu0 0.0
    %3009 = vmatpush1.msra.mxu0 0.0
    %3010 = vmatprep.subr.mxu0 0.0
    %3011 = vmatpush1.msra.mxu0 0.0
    %3012 = vmatprep.subr.mxu0 0.0
    %3013 = vmatpush1.msra.mxu0 0.0
    %3014 = vmatprep.subr.mxu0 0.0
    %3015 = vmatpush1.msra.mxu0 0.0
    %3016 = vmatprep.subr.mxu0 0.0
    %3017 = vmatpush1.msra.mxu0 0.0
    %3018 = vmatprep.subr.mxu0 0.0
    %3019 = vmatpush1.msra.mxu0 0.0
    %3020 = vmatprep.subr.mxu0 0.0
    %3021 = vmatpush1.msra.mxu0 0.0
    %3022 = vmatprep.subr.mxu0 0.0
    %3023 = vmatpush1.msra.mxu0 0.0
    %3024 = vmatprep.subr.mxu0 0.0
    %3025 = vmatpush1.msra.mxu0 0.0
    %3026 = vmatprep.subr.mxu0 0.0
    %3027 = vmatpush1.msra.mxu0 0.0
    %3028 = vmatprep.subr.mxu0 0.0
    %3029 = vmatpush1.msra.mxu0 0.0
    %3030 = vmatprep.subr.mxu0 0.0
    %3031 = vmatpush1.msra.mxu0 0.0
    %3032 = vmatprep.subr.mxu0 0.0
    %3033 = vmatpush1.msra.mxu0 0.0
    %3034 = vmatprep.subr.mxu0 0.0
    %3035 = vmatpush1.msra.mxu0 0.0
    %3036 = vmatprep.subr.mxu0 0.0
    %3037 = vmatpush1.msra.mxu0 0.0
    %3038 = vmatprep.subr.mxu0 0.0
    %3039 = vmatpush1.msra.mxu0 0.0
    %3040 = vmatprep.subr.mxu0 0.0
    %3041 = vmatpush1.msra.mxu0 0.0
    %3042 = vmatprep.subr.mxu0 0.0
    %3043 = vmatpush1.msra.mxu0 0.0
    %3044 = vmatprep.subr.mxu0 0.0
    %3045 = vmatpush1.msra.mxu0 0.0
    %3046 = vmatprep.subr.mxu0 0.0
    %3047 = vmatpush1.msra.mxu0 0.0
    %3048 = vmatprep.subr.mxu0 0.0
    %3049 = vmatpush1.msra.mxu0 0.0
    %3050 = vmatprep.subr.mxu0 0.0
    %3051 = vmatpush1.msra.mxu0 0.0
    %3052 = vmatprep.mubr.f32.mxu0 0.0
    %v3053 = vand.u32 %v1131, 4294901760
    %3054 = vmatmul.mubr.f32.gmra.mrb[0].mxu0 %v3053
    %v3055 = vpop.f32.mrb[0].mxu0
    %v3056 = vadd.f32 %v2971, %v3055
    %v3057 = vpop.f32.mrb[0].mxu0
    %3058 = vmatprep.mubr.f32.mxu0 0.0
    %v3059 = vand.u32 %v1134, 4294901760
    %3060 = vmatmul.mubr.f32.gmra.mrb[0].mxu0 %v3059
    %v3061 = vpop.f32.mrb[0].mxu0
    %v3062 = vadd.f32 %v2979, %v3061
    %v3063 = vpop.f32.mrb[0].mxu0
    %3064 = vdwg.mxu0
    %3065 = vmatprep.subr.mxu0 0.0
    %v3066 = vand.u32 %v1108, 4294901760
    %3067 = vmatpush1.msra.mxu0 %v3066
    %3068 = vmatprep.subr.mxu0 0.0
    %v3069 = vand.u32 %v1114, 4294901760
    %3070 = vmatpush1.msra.mxu0 %v3069
    %3071 = vmatprep.subr.mxu0 0.0
    %3072 = vmatpush1.msra.mxu0 0.0
    %3073 = vmatprep.subr.mxu0 0.0
    %3074 = vmatpush1.msra.mxu0 0.0
    %3075 = vmatprep.subr.mxu0 0.0
    %3076 = vmatpush1.msra.mxu0 0.0
    %3077 = vmatprep.subr.mxu0 0.0
    %3078 = vmatpush1.msra.mxu0 0.0
    %3079 = vmatprep.subr.mxu0 0.0
    %3080 = vmatpush1.msra.mxu0 0.0
    %3081 = vmatprep.subr.mxu0 0.0
    %3082 = vmatpush1.msra.mxu0 0.0
    %3083 = vmatprep.subr.mxu0 0.0
    %3084 = vmatpush1.msra.mxu0 0.0
    %3085 = vmatprep.subr.mxu0 0.0
    %3086 = vmatpush1.msra.mxu0 0.0
    %3087 = vmatprep.subr.mxu0 0.0
    %3088 = vmatpush1.msra.mxu0 0.0
    %3089 = vmatprep.subr.mxu0 0.0
    %3090 = vmatpush1.msra.mxu0 0.0
    %3091 = vmatprep.subr.mxu0 0.0
    %3092 = vmatpush1.msra.mxu0 0.0
    %3093 = vmatprep.subr.mxu0 0.0
    %3094 = vmatpush1.msra.mxu0 0.0
    %3095 = vmatprep.subr.mxu0 0.0
    %3096 = vmatpush1.msra.mxu0 0.0
    %3097 = vmatprep.subr.mxu0 0.0
    %3098 = vmatpush1.msra.mxu0 0.0
    %3099 = vmatprep.subr.mxu0 0.0
    %3100 = vmatpush1.msra.mxu0 0.0
    %3101 = vmatprep.subr.mxu0 0.0
    %3102 = vmatpush1.msra.mxu0 0.0
    %3103 = vmatprep.subr.mxu0 0.0
    %3104 = vmatpush1.msra.mxu0 0.0
    %3105 = vmatprep.subr.mxu0 0.0
    %3106 = vmatpush1.msra.mxu0 0.0
    %3107 = vmatprep.subr.mxu0 0.0
    %3108 = vmatpush1.msra.mxu0 0.0
    %3109 = vmatprep.subr.mxu0 0.0
    %3110 = vmatpush1.msra.mxu0 0.0
    %3111 = vmatprep.subr.mxu0 0.0
    %3112 = vmatpush1.msra.mxu0 0.0
    %3113 = vmatprep.subr.mxu0 0.0
    %3114 = vmatpush1.msra.mxu0 0.0
    %3115 = vmatprep.subr.mxu0 0.0
    %3116 = vmatpush1.msra.mxu0 0.0
    %3117 = vmatprep.subr.mxu0 0.0
    %3118 = vmatpush1.msra.mxu0 0.0
    %3119 = vmatprep.subr.mxu0 0.0
    %3120 = vmatpush1.msra.mxu0 0.0
    %3121 = vmatprep.subr.mxu0 0.0
    %3122 = vmatpush1.msra.mxu0 0.0
    %3123 = vmatprep.subr.mxu0 0.0
    %3124 = vmatpush1.msra.mxu0 0.0
    %3125 = vmatprep.subr.mxu0 0.0
    %3126 = vmatpush1.msra.mxu0 0.0
    %3127 = vmatprep.subr.mxu0 0.0
    %3128 = vmatpush1.msra.mxu0 0.0
    %3129 = vmatprep.subr.mxu0 0.0
    %3130 = vmatpush1.msra.mxu0 0.0
    %3131 = vmatprep.mubr.f32.mxu0 0.0
    %v3132 = vand.u32 %v1131, 4294901760
    %3133 = vmatmul.mubr.f32.gmra.mrb[0].mxu0 %v3132
    %v3134 = vpop.f32.mrb[0].mxu0
    %v3135 = vadd.f32 %v3056, %v3134
    %v3136 = vpop.f32.mrb[0].mxu0
    %3137 = vmatprep.mubr.f32.mxu0 0.0
    %v3138 = vand.u32 %v1134, 4294901760
    %3139 = vmatmul.mubr.f32.gmra.mrb[0].mxu0 %v3138
    %v3140 = vpop.f32.mrb[0].mxu0
    %v3141 = vadd.f32 %v3062, %v3140
    %v3142 = vpop.f32.mrb[0].mxu0
    %3143 = vdwg.mxu0
    %3144 = vmatprep.subr.mxu0 0.0
    %v3145 = vand.u32 %v1120, 4294901760
    %3146 = vmatpush1.msra.mxu0 %v3145
    %3147 = vmatprep.subr.mxu0 0.0
    %v3148 = vand.u32 %v1126, 4294901760
    %3149 = vmatpush1.msra.mxu0 %v3148
    %3150 = vmatprep.subr.mxu0 0.0
    %3151 = vmatpush1.msra.mxu0 0.0
    %3152 = vmatprep.subr.mxu0 0.0
    %3153 = vmatpush1.msra.mxu0 0.0
    %3154 = vmatprep.subr.mxu0 0.0
    %3155 = vmatpush1.msra.mxu0 0.0
    %3156 = vmatprep.subr.mxu0 0.0
    %3157 = vmatpush1.msra.mxu0 0.0
    %3158 = vmatprep.subr.mxu0 0.0
    %3159 = vmatpush1.msra.mxu0 0.0
    %3160 = vmatprep.subr.mxu0 0.0
    %3161 = vmatpush1.msra.mxu0 0.0
    %3162 = vmatprep.subr.mxu0 0.0
    %3163 = vmatpush1.msra.mxu0 0.0
    %3164 = vmatprep.subr.mxu0 0.0
    %3165 = vmatpush1.msra.mxu0 0.0
    %3166 = vmatprep.subr.mxu0 0.0
    %3167 = vmatpush1.msra.mxu0 0.0
    %3168 = vmatprep.subr.mxu0 0.0
    %3169 = vmatpush1.msra.mxu0 0.0
    %3170 = vmatprep.subr.mxu0 0.0
    %3171 = vmatpush1.msra.mxu0 0.0
    %3172 = vmatprep.subr.mxu0 0.0
    %3173 = vmatpush1.msra.mxu0 0.0
    %3174 = vmatprep.subr.mxu0 0.0
    %3175 = vmatpush1.msra.mxu0 0.0
    %3176 = vmatprep.subr.mxu0 0.0
    %3177 = vmatpush1.msra.mxu0 0.0
    %3178 = vmatprep.subr.mxu0 0.0
    %3179 = vmatpush1.msra.mxu0 0.0
    %3180 = vmatprep.subr.mxu0 0.0
    %3181 = vmatpush1.msra.mxu0 0.0
    %3182 = vmatprep.subr.mxu0 0.0
    %3183 = vmatpush1.msra.mxu0 0.0
    %3184 = vmatprep.subr.mxu0 0.0
    %3185 = vmatpush1.msra.mxu0 0.0
    %3186 = vmatprep.subr.mxu0 0.0
    %3187 = vmatpush1.msra.mxu0 0.0
    %3188 = vmatprep.subr.mxu0 0.0
    %3189 = vmatpush1.msra.mxu0 0.0
    %3190 = vmatprep.subr.mxu0 0.0
    %3191 = vmatpush1.msra.mxu0 0.0
    %3192 = vmatprep.subr.mxu0 0.0
    %3193 = vmatpush1.msra.mxu0 0.0
    %3194 = vmatprep.subr.mxu0 0.0
    %3195 = vmatpush1.msra.mxu0 0.0
    %3196 = vmatprep.subr.mxu0 0.0
    %3197 = vmatpush1.msra.mxu0 0.0
    %3198 = vmatprep.subr.mxu0 0.0
    %3199 = vmatpush1.msra.mxu0 0.0
    %3200 = vmatprep.subr.mxu0 0.0
    %3201 = vmatpush1.msra.mxu0 0.0
    %3202 = vmatprep.subr.mxu0 0.0
    %3203 = vmatpush1.msra.mxu0 0.0
    %3204 = vmatprep.subr.mxu0 0.0
    %3205 = vmatpush1.msra.mxu0 0.0
    %3206 = vmatprep.subr.mxu0 0.0
    %3207 = vmatpush1.msra.mxu0 0.0
    %3208 = vmatprep.subr.mxu0 0.0
    %3209 = vmatpush1.msra.mxu0 0.0
    %3210 = vmatprep.mubr.f32.mxu0 0.0
    %v3211 = vand.u32 %v1131, 4294901760
    %v3212 = vsub.f32 %v1131, %v3211
    %v3213 = vand.u32 %v3212, 4294901760
    %v3214 = vsub.f32 %v3212, %v3213
    %v3215 = vand.u32 %v3214, 4294901760
    %3216 = vmatmul.mubr.f32.gmra.mrb[0].mxu0 %v3215
    %v3217 = vpop.f32.mrb[0].mxu0
    %v3218 = vadd.f32 0.0, %v3217
    %v3219 = vpop.f32.mrb[0].mxu0
    %3220 = vmatprep.mubr.f32.mxu0 0.0
    %v3221 = vand.u32 %v1134, 4294901760
    %v3222 = vsub.f32 %v1134, %v3221
    %v3223 = vand.u32 %v3222, 4294901760
    %v3224 = vsub.f32 %v3222, %v3223
    %v3225 = vand.u32 %v3224, 4294901760
    %3226 = vmatmul.mubr.f32.gmra.mrb[0].mxu0 %v3225
    %v3227 = vpop.f32.mrb[0].mxu0
    %v3228 = vadd.f32 0.0, %v3227
    %v3229 = vpop.f32.mrb[0].mxu0
    %3230 = vdwg.mxu0
    %3231 = vmatprep.subr.mxu0 0.0
    %v3232 = vand.u32 %v1120, 4294901760
    %v3233 = vsub.f32 %v1120, %v3232
    %v3234 = vand.u32 %v3233, 4294901760
    %v3235 = vsub.f32 %v3233, %v3234
    %v3236 = vand.u32 %v3235, 4294901760
    %3237 = vmatpush1.msra.mxu0 %v3236
    %3238 = vmatprep.subr.mxu0 0.0
    %v3239 = vand.u32 %v1126, 4294901760
    %v3240 = vsub.f32 %v1126, %v3239
    %v3241 = vand.u32 %v3240, 4294901760
    %v3242 = vsub.f32 %v3240, %v3241
    %v3243 = vand.u32 %v3242, 4294901760
    %3244 = vmatpush1.msra.mxu0 %v3243
    %3245 = vmatprep.subr.mxu0 0.0
    %3246 = vmatpush1.msra.mxu0 0.0
    %3247 = vmatprep.subr.mxu0 0.0
    %3248 = vmatpush1.msra.mxu0 0.0
    %3249 = vmatprep.subr.mxu0 0.0
    %3250 = vmatpush1.msra.mxu0 0.0
    %3251 = vmatprep.subr.mxu0 0.0
    %3252 = vmatpush1.msra.mxu0 0.0
    %3253 = vmatprep.subr.mxu0 0.0
    %3254 = vmatpush1.msra.mxu0 0.0
    %3255 = vmatprep.subr.mxu0 0.0
    %3256 = vmatpush1.msra.mxu0 0.0
    %3257 = vmatprep.subr.mxu0 0.0
    %3258 = vmatpush1.msra.mxu0 0.0
    %3259 = vmatprep.subr.mxu0 0.0
    %3260 = vmatpush1.msra.mxu0 0.0
    %3261 = vmatprep.subr.mxu0 0.0
    %3262 = vmatpush1.msra.mxu0 0.0
    %3263 = vmatprep.subr.mxu0 0.0
    %3264 = vmatpush1.msra.mxu0 0.0
    %3265 = vmatprep.subr.mxu0 0.0
    %3266 = vmatpush1.msra.mxu0 0.0
    %3267 = vmatprep.subr.mxu0 0.0
    %3268 = vmatpush1.msra.mxu0 0.0
    %3269 = vmatprep.subr.mxu0 0.0
    %3270 = vmatpush1.msra.mxu0 0.0
    %3271 = vmatprep.subr.mxu0 0.0
    %3272 = vmatpush1.msra.mxu0 0.0
    %3273 = vmatprep.subr.mxu0 0.0
    %3274 = vmatpush1.msra.mxu0 0.0
    %3275 = vmatprep.subr.mxu0 0.0
    %3276 = vmatpush1.msra.mxu0 0.0
    %3277 = vmatprep.subr.mxu0 0.0
    %3278 = vmatpush1.msra.mxu0 0.0
    %3279 = vmatprep.subr.mxu0 0.0
    %3280 = vmatpush1.msra.mxu0 0.0
    %3281 = vmatprep.subr.mxu0 0.0
    %3282 = vmatpush1.msra.mxu0 0.0
    %3283 = vmatprep.subr.mxu0 0.0
    %3284 = vmatpush1.msra.mxu0 0.0
    %3285 = vmatprep.subr.mxu0 0.0
    %3286 = vmatpush1.msra.mxu0 0.0
    %3287 = vmatprep.subr.mxu0 0.0
    %3288 = vmatpush1.msra.mxu0 0.0
    %3289 = vmatprep.subr.mxu0 0.0
    %3290 = vmatpush1.msra.mxu0 0.0
    %3291 = vmatprep.subr.mxu0 0.0
    %3292 = vmatpush1.msra.mxu0 0.0
    %3293 = vmatprep.subr.mxu0 0.0
    %3294 = vmatpush1.msra.mxu0 0.0
    %3295 = vmatprep.subr.mxu0 0.0
    %3296 = vmatpush1.msra.mxu0 0.0
    %3297 = vmatprep.subr.mxu0 0.0
    %3298 = vmatpush1.msra.mxu0 0.0
    %3299 = vmatprep.subr.mxu0 0.0
    %3300 = vmatpush1.msra.mxu0 0.0
    %3301 = vmatprep.subr.mxu0 0.0
    %3302 = vmatpush1.msra.mxu0 0.0
    %3303 = vmatprep.subr.mxu0 0.0
    %3304 = vmatpush1.msra.mxu0 0.0
    %3305 = vmatprep.mubr.f32.mxu0 0.0
    %v3306 = vand.u32 %v1131, 4294901760
    %3307 = vmatmul.mubr.f32.gmra.mrb[0].mxu0 %v3306
    %v3308 = vpop.f32.mrb[0].mxu0
    %v3309 = vadd.f32 %v3218, %v3308
    %v3310 = vpop.f32.mrb[0].mxu0
    %3311 = vmatprep.mubr.f32.mxu0 0.0
    %v3312 = vand.u32 %v1134, 4294901760
    %3313 = vmatmul.mubr.f32.gmra.mrb[0].mxu0 %v3312
    %v3314 = vpop.f32.mrb[0].mxu0
    %v3315 = vadd.f32 %v3228, %v3314
    %v3316 = vpop.f32.mrb[0].mxu0
    %3317 = vdwg.mxu0
    %3318 = vmatprep.subr.mxu0 0.0
    %v3319 = vand.u32 %v1120, 4294901760
    %v3320 = vsub.f32 %v1120, %v3319
    %3321 = vmatpush1.msra.mxu0 %v3320
    %3322 = vmatprep.subr.mxu0 0.0
    %v3323 = vand.u32 %v1126, 4294901760
    %v3324 = vsub.f32 %v1126, %v3323
    %3325 = vmatpush1.msra.mxu0 %v3324
    %3326 = vmatprep.subr.mxu0 0.0
    %3327 = vmatpush1.msra.mxu0 0.0
    %3328 = vmatprep.subr.mxu0 0.0
    %3329 = vmatpush1.msra.mxu0 0.0
    %3330 = vmatprep.subr.mxu0 0.0
    %3331 = vmatpush1.msra.mxu0 0.0
    %3332 = vmatprep.subr.mxu0 0.0
    %3333 = vmatpush1.msra.mxu0 0.0
    %3334 = vmatprep.subr.mxu0 0.0
    %3335 = vmatpush1.msra.mxu0 0.0
    %3336 = vmatprep.subr.mxu0 0.0
    %3337 = vmatpush1.msra.mxu0 0.0
    %3338 = vmatprep.subr.mxu0 0.0
    %3339 = vmatpush1.msra.mxu0 0.0
    %3340 = vmatprep.subr.mxu0 0.0
    %3341 = vmatpush1.msra.mxu0 0.0
    %3342 = vmatprep.subr.mxu0 0.0
    %3343 = vmatpush1.msra.mxu0 0.0
    %3344 = vmatprep.subr.mxu0 0.0
    %3345 = vmatpush1.msra.mxu0 0.0
    %3346 = vmatprep.subr.mxu0 0.0
    %3347 = vmatpush1.msra.mxu0 0.0
    %3348 = vmatprep.subr.mxu0 0.0
    %3349 = vmatpush1.msra.mxu0 0.0
    %3350 = vmatprep.subr.mxu0 0.0
    %3351 = vmatpush1.msra.mxu0 0.0
    %3352 = vmatprep.subr.mxu0 0.0
    %3353 = vmatpush1.msra.mxu0 0.0
    %3354 = vmatprep.subr.mxu0 0.0
    %3355 = vmatpush1.msra.mxu0 0.0
    %3356 = vmatprep.subr.mxu0 0.0
    %3357 = vmatpush1.msra.mxu0 0.0
    %3358 = vmatprep.subr.mxu0 0.0
    %3359 = vmatpush1.msra.mxu0 0.0
    %3360 = vmatprep.subr.mxu0 0.0
    %3361 = vmatpush1.msra.mxu0 0.0
    %3362 = vmatprep.subr.mxu0 0.0
    %3363 = vmatpush1.msra.mxu0 0.0
    %3364 = vmatprep.subr.mxu0 0.0
    %3365 = vmatpush1.msra.mxu0 0.0
    %3366 = vmatprep.subr.mxu0 0.0
    %3367 = vmatpush1.msra.mxu0 0.0
    %3368 = vmatprep.subr.mxu0 0.0
    %3369 = vmatpush1.msra.mxu0 0.0
    %3370 = vmatprep.subr.mxu0 0.0
    %3371 = vmatpush1.msra.mxu0 0.0
    %3372 = vmatprep.subr.mxu0 0.0
    %3373 = vmatpush1.msra.mxu0 0.0
    %3374 = vmatprep.subr.mxu0 0.0
    %3375 = vmatpush1.msra.mxu0 0.0
    %3376 = vmatprep.subr.mxu0 0.0
    %3377 = vmatpush1.msra.mxu0 0.0
    %3378 = vmatprep.subr.mxu0 0.0
    %3379 = vmatpush1.msra.mxu0 0.0
    %3380 = vmatprep.subr.mxu0 0.0
    %3381 = vmatpush1.msra.mxu0 0.0
    %3382 = vmatprep.subr.mxu0 0.0
    %3383 = vmatpush1.msra.mxu0 0.0
    %3384 = vmatprep.subr.mxu0 0.0
    %3385 = vmatpush1.msra.mxu0 0.0
    %3386 = vmatprep.mubr.f32.mxu0 0.0
    %v3387 = vand.u32 %v1131, 4294901760
    %v3388 = vsub.f32 %v1131, %v3387
    %3389 = vmatmul.mubr.f32.gmra.mrb[0].mxu0 %v3388
    %v3390 = vpop.f32.mrb[0].mxu0
    %v3391 = vadd.f32 %v3309, %v3390
    %v3392 = vpop.f32.mrb[0].mxu0
    %3393 = vmatprep.mubr.f32.mxu0 0.0
    %v3394 = vand.u32 %v1134, 4294901760
    %v3395 = vsub.f32 %v1134, %v3394
    %3396 = vmatmul.mubr.f32.gmra.mrb[0].mxu0 %v3395
    %v3397 = vpop.f32.mrb[0].mxu0
    %v3398 = vadd.f32 %v3315, %v3397
    %v3399 = vpop.f32.mrb[0].mxu0
    %3400 = vdwg.mxu0
    %3401 = vmatprep.subr.mxu0 0.0
    %v3402 = vand.u32 %v1120, 4294901760
    %3403 = vmatpush1.msra.mxu0 %v3402
    %3404 = vmatprep.subr.mxu0 0.0
    %v3405 = vand.u32 %v1126, 4294901760
    %3406 = vmatpush1.msra.mxu0 %v3405
    %3407 = vmatprep.subr.mxu0 0.0
    %3408 = vmatpush1.msra.mxu0 0.0
    %3409 = vmatprep.subr.mxu0 0.0
    %3410 = vmatpush1.msra.mxu0 0.0
    %3411 = vmatprep.subr.mxu0 0.0
    %3412 = vmatpush1.msra.mxu0 0.0
    %3413 = vmatprep.subr.mxu0 0.0
    %3414 = vmatpush1.msra.mxu0 0.0
    %3415 = vmatprep.subr.mxu0 0.0
    %3416 = vmatpush1.msra.mxu0 0.0
    %3417 = vmatprep.subr.mxu0 0.0
    %3418 = vmatpush1.msra.mxu0 0.0
    %3419 = vmatprep.subr.mxu0 0.0
    %3420 = vmatpush1.msra.mxu0 0.0
    %3421 = vmatprep.subr.mxu0 0.0
    %3422 = vmatpush1.msra.mxu0 0.0
    %3423 = vmatprep.subr.mxu0 0.0
    %3424 = vmatpush1.msra.mxu0 0.0
    %3425 = vmatprep.subr.mxu0 0.0
    %3426 = vmatpush1.msra.mxu0 0.0
    %3427 = vmatprep.subr.mxu0 0.0
    %3428 = vmatpush1.msra.mxu0 0.0
    %3429 = vmatprep.subr.mxu0 0.0
    %3430 = vmatpush1.msra.mxu0 0.0
    %3431 = vmatprep.subr.mxu0 0.0
    %3432 = vmatpush1.msra.mxu0 0.0
    %3433 = vmatprep.subr.mxu0 0.0
    %3434 = vmatpush1.msra.mxu0 0.0
    %3435 = vmatprep.subr.mxu0 0.0
    %3436 = vmatpush1.msra.mxu0 0.0
    %3437 = vmatprep.subr.mxu0 0.0
    %3438 = vmatpush1.msra.mxu0 0.0
    %3439 = vmatprep.subr.mxu0 0.0
    %3440 = vmatpush1.msra.mxu0 0.0
    %3441 = vmatprep.subr.mxu0 0.0
    %3442 = vmatpush1.msra.mxu0 0.0
    %3443 = vmatprep.subr.mxu0 0.0
    %3444 = vmatpush1.msra.mxu0 0.0
    %3445 = vmatprep.subr.mxu0 0.0
    %3446 = vmatpush1.msra.mxu0 0.0
    %3447 = vmatprep.subr.mxu0 0.0
    %3448 = vmatpush1.msra.mxu0 0.0
    %3449 = vmatprep.subr.mxu0 0.0
    %3450 = vmatpush1.msra.mxu0 0.0
    %3451 = vmatprep.subr.mxu0 0.0
    %3452 = vmatpush1.msra.mxu0 0.0
    %3453 = vmatprep.subr.mxu0 0.0
    %3454 = vmatpush1.msra.mxu0 0.0
    %3455 = vmatprep.subr.mxu0 0.0
    %3456 = vmatpush1.msra.mxu0 0.0
    %3457 = vmatprep.subr.mxu0 0.0
    %3458 = vmatpush1.msra.mxu0 0.0
    %3459 = vmatprep.subr.mxu0 0.0
    %3460 = vmatpush1.msra.mxu0 0.0
    %3461 = vmatprep.subr.mxu0 0.0
    %3462 = vmatpush1.msra.mxu0 0.0
    %3463 = vmatprep.subr.mxu0 0.0
    %3464 = vmatpush1.msra.mxu0 0.0
    %3465 = vmatprep.subr.mxu0 0.0
    %3466 = vmatpush1.msra.mxu0 0.0
    %3467 = vmatprep.mubr.f32.mxu0 0.0
    %v3468 = vand.u32 %v1131, 4294901760
    %v3469 = vsub.f32 %v1131, %v3468
    %v3470 = vand.u32 %v3469, 4294901760
    %3471 = vmatmul.mubr.f32.gmra.mrb[0].mxu0 %v3470
    %v3472 = vpop.f32.mrb[0].mxu0
    %v3473 = vadd.f32 %v3391, %v3472
    %v3474 = vpop.f32.mrb[0].mxu0
    %3475 = vmatprep.mubr.f32.mxu0 0.0
    %v3476 = vand.u32 %v1134, 4294901760
    %v3477 = vsub.f32 %v1134, %v3476
    %v3478 = vand.u32 %v3477, 4294901760
    %3479 = vmatmul.mubr.f32.gmra.mrb[0].mxu0 %v3478
    %v3480 = vpop.f32.mrb[0].mxu0
    %v3481 = vadd.f32 %v3398, %v3480
    %v3482 = vpop.f32.mrb[0].mxu0
    %3483 = vdwg.mxu0
    %3484 = vmatprep.subr.mxu0 0.0
    %v3485 = vand.u32 %v1120, 4294901760
    %v3486 = vsub.f32 %v1120, %v3485
    %v3487 = vand.u32 %v3486, 4294901760
    %3488 = vmatpush1.msra.mxu0 %v3487
    %3489 = vmatprep.subr.mxu0 0.0
    %v3490 = vand.u32 %v1126, 4294901760
    %v3491 = vsub.f32 %v1126, %v3490
    %v3492 = vand.u32 %v3491, 4294901760
    %3493 = vmatpush1.msra.mxu0 %v3492
    %3494 = vmatprep.subr.mxu0 0.0
    %3495 = vmatpush1.msra.mxu0 0.0
    %3496 = vmatprep.subr.mxu0 0.0
    %3497 = vmatpush1.msra.mxu0 0.0
    %3498 = vmatprep.subr.mxu0 0.0
    %3499 = vmatpush1.msra.mxu0 0.0
    %3500 = vmatprep.subr.mxu0 0.0
    %3501 = vmatpush1.msra.mxu0 0.0
    %3502 = vmatprep.subr.mxu0 0.0
    %3503 = vmatpush1.msra.mxu0 0.0
    %3504 = vmatprep.subr.mxu0 0.0
    %3505 = vmatpush1.msra.mxu0 0.0
    %3506 = vmatprep.subr.mxu0 0.0
    %3507 = vmatpush1.msra.mxu0 0.0
    %3508 = vmatprep.subr.mxu0 0.0
    %3509 = vmatpush1.msra.mxu0 0.0
    %3510 = vmatprep.subr.mxu0 0.0
    %3511 = vmatpush1.msra.mxu0 0.0
    %3512 = vmatprep.subr.mxu0 0.0
    %3513 = vmatpush1.msra.mxu0 0.0
    %3514 = vmatprep.subr.mxu0 0.0
    %3515 = vmatpush1.msra.mxu0 0.0
    %3516 = vmatprep.subr.mxu0 0.0
    %3517 = vmatpush1.msra.mxu0 0.0
    %3518 = vmatprep.subr.mxu0 0.0
    %3519 = vmatpush1.msra.mxu0 0.0
    %3520 = vmatprep.subr.mxu0 0.0
    %3521 = vmatpush1.msra.mxu0 0.0
    %3522 = vmatprep.subr.mxu0 0.0
    %3523 = vmatpush1.msra.mxu0 0.0
    %3524 = vmatprep.subr.mxu0 0.0
    %3525 = vmatpush1.msra.mxu0 0.0
    %3526 = vmatprep.subr.mxu0 0.0
    %3527 = vmatpush1.msra.mxu0 0.0
    %3528 = vmatprep.subr.mxu0 0.0
    %3529 = vmatpush1.msra.mxu0 0.0
    %3530 = vmatprep.subr.mxu0 0.0
    %3531 = vmatpush1.msra.mxu0 0.0
    %3532 = vmatprep.subr.mxu0 0.0
    %3533 = vmatpush1.msra.mxu0 0.0
    %3534 = vmatprep.subr.mxu0 0.0
    %3535 = vmatpush1.msra.mxu0 0.0
    %3536 = vmatprep.subr.mxu0 0.0
    %3537 = vmatpush1.msra.mxu0 0.0
    %3538 = vmatprep.subr.mxu0 0.0
    %3539 = vmatpush1.msra.mxu0 0.0
    %3540 = vmatprep.subr.mxu0 0.0
    %3541 = vmatpush1.msra.mxu0 0.0
    %3542 = vmatprep.subr.mxu0 0.0
    %3543 = vmatpush1.msra.mxu0 0.0
    %3544 = vmatprep.subr.mxu0 0.0
    %3545 = vmatpush1.msra.mxu0 0.0
    %3546 = vmatprep.subr.mxu0 0.0
    %3547 = vmatpush1.msra.mxu0 0.0
    %3548 = vmatprep.subr.mxu0 0.0
    %3549 = vmatpush1.msra.mxu0 0.0
    %3550 = vmatprep.subr.mxu0 0.0
    %3551 = vmatpush1.msra.mxu0 0.0
    %3552 = vmatprep.subr.mxu0 0.0
    %3553 = vmatpush1.msra.mxu0 0.0
    %3554 = vmatprep.mubr.f32.mxu0 0.0
    %v3555 = vand.u32 %v1131, 4294901760
    %3556 = vmatmul.mubr.f32.gmra.mrb[0].mxu0 %v3555
    %v3557 = vpop.f32.mrb[0].mxu0
    %v3558 = vadd.f32 %v3473, %v3557
    %v3559 = vpop.f32.mrb[0].mxu0
    %3560 = vmatprep.mubr.f32.mxu0 0.0
    %v3561 = vand.u32 %v1134, 4294901760
    %3562 = vmatmul.mubr.f32.gmra.mrb[0].mxu0 %v3561
    %v3563 = vpop.f32.mrb[0].mxu0
    %v3564 = vadd.f32 %v3481, %v3563
    %v3565 = vpop.f32.mrb[0].mxu0
    %3566 = vdwg.mxu0
    %3567 = vmatprep.subr.mxu0 0.0
    %v3568 = vand.u32 %v1120, 4294901760
    %3569 = vmatpush1.msra.mxu0 %v3568
    %3570 = vmatprep.subr.mxu0 0.0
    %v3571 = vand.u32 %v1126, 4294901760
    %3572 = vmatpush1.msra.mxu0 %v3571
    %3573 = vmatprep.subr.mxu0 0.0
    %3574 = vmatpush1.msra.mxu0 0.0
    %3575 = vmatprep.subr.mxu0 0.0
    %3576 = vmatpush1.msra.mxu0 0.0
    %3577 = vmatprep.subr.mxu0 0.0
    %3578 = vmatpush1.msra.mxu0 0.0
    %3579 = vmatprep.subr.mxu0 0.0
    %3580 = vmatpush1.msra.mxu0 0.0
    %3581 = vmatprep.subr.mxu0 0.0
    %3582 = vmatpush1.msra.mxu0 0.0
    %3583 = vmatprep.subr.mxu0 0.0
    %3584 = vmatpush1.msra.mxu0 0.0
    %3585 = vmatprep.subr.mxu0 0.0
    %3586 = vmatpush1.msra.mxu0 0.0
    %3587 = vmatprep.subr.mxu0 0.0
    %3588 = vmatpush1.msra.mxu0 0.0
    %3589 = vmatprep.subr.mxu0 0.0
    %3590 = vmatpush1.msra.mxu0 0.0
    %3591 = vmatprep.subr.mxu0 0.0
    %3592 = vmatpush1.msra.mxu0 0.0
    %3593 = vmatprep.subr.mxu0 0.0
    %3594 = vmatpush1.msra.mxu0 0.0
    %3595 = vmatprep.subr.mxu0 0.0
    %3596 = vmatpush1.msra.mxu0 0.0
    %3597 = vmatprep.subr.mxu0 0.0
    %3598 = vmatpush1.msra.mxu0 0.0
    %3599 = vmatprep.subr.mxu0 0.0
    %3600 = vmatpush1.msra.mxu0 0.0
    %3601 = vmatprep.subr.mxu0 0.0
    %3602 = vmatpush1.msra.mxu0 0.0
    %3603 = vmatprep.subr.mxu0 0.0
    %3604 = vmatpush1.msra.mxu0 0.0
    %3605 = vmatprep.subr.mxu0 0.0
    %3606 = vmatpush1.msra.mxu0 0.0
    %3607 = vmatprep.subr.mxu0 0.0
    %3608 = vmatpush1.msra.mxu0 0.0
    %3609 = vmatprep.subr.mxu0 0.0
    %3610 = vmatpush1.msra.mxu0 0.0
    %3611 = vmatprep.subr.mxu0 0.0
    %3612 = vmatpush1.msra.mxu0 0.0
    %3613 = vmatprep.subr.mxu0 0.0
    %3614 = vmatpush1.msra.mxu0 0.0
    %3615 = vmatprep.subr.mxu0 0.0
    %3616 = vmatpush1.msra.mxu0 0.0
    %3617 = vmatprep.subr.mxu0 0.0
    %3618 = vmatpush1.msra.mxu0 0.0
    %3619 = vmatprep.subr.mxu0 0.0
    %3620 = vmatpush1.msra.mxu0 0.0
    %3621 = vmatprep.subr.mxu0 0.0
    %3622 = vmatpush1.msra.mxu0 0.0
    %3623 = vmatprep.subr.mxu0 0.0
    %3624 = vmatpush1.msra.mxu0 0.0
    %3625 = vmatprep.subr.mxu0 0.0
    %3626 = vmatpush1.msra.mxu0 0.0
    %3627 = vmatprep.subr.mxu0 0.0
    %3628 = vmatpush1.msra.mxu0 0.0
    %3629 = vmatprep.subr.mxu0 0.0
    %3630 = vmatpush1.msra.mxu0 0.0
    %3631 = vmatprep.subr.mxu0 0.0
    %3632 = vmatpush1.msra.mxu0 0.0
    %3633 = vmatprep.mubr.f32.mxu0 0.0
    %v3634 = vand.u32 %v1131, 4294901760
    %3635 = vmatmul.mubr.f32.gmra.mrb[0].mxu0 %v3634
    %v3636 = vpop.f32.mrb[0].mxu0
    %v3637 = vadd.f32 %v3558, %v3636
    %v3638 = vpop.f32.mrb[0].mxu0
    %3639 = vmatprep.mubr.f32.mxu0 0.0
    %v3640 = vand.u32 %v1134, 4294901760
    %3641 = vmatmul.mubr.f32.gmra.mrb[0].mxu0 %v3640
    %v3642 = vpop.f32.mrb[0].mxu0
    %v3643 = vadd.f32 %v3564, %v3642
    %v3644 = vpop.f32.mrb[0].mxu0
    %3645 = vdwg.mxu0
    %v3646 = vmul.f32 %v1629, %v1629
    %v3647 = vmul.f32 %v1635, %v1635
    %v3648 = vmul.f32 %v2131, %v2131
    %v3649 = vmul.f32 %v2137, %v2137
    %v3650 = vmul.f32 %v1629, %v2131
    %v3651 = vmul.f32 %v1635, %v2137
    %v3652 = vsub.f32 %v2633, %v3646
    %v3653 = vsub.f32 %v2639, %v3647
    %v3654 = vsub.f32 %v3135, %v3648
    %v3655 = vsub.f32 %v3141, %v3649
    %v3656 = vsub.f32 %v3637, %v3650
    %v3657 = vsub.f32 %v3643, %v3651
    %v3658 = vmul.f32 %v3650, 2.0
    %v3659 = vmul.f32 %v3651, 2.0
    %v3660 = vadd.f32 %v3658, 0.0001
    %v3661 = vadd.f32 %v3659, 0.0001
    %v3662 = vmul.f32 %v3656, 2.0
    %v3663 = vmul.f32 %v3657, 2.0
    %v3664 = vadd.f32 %v3662, 0.0009
    %v3665 = vadd.f32 %v3663, 0.0009
    %v3666 = vmul.f32 %v3660, %v3664
    %v3667 = vmul.f32 %v3661, %v3665
    %v3668 = vadd.f32 %v3646, %v3648
    %v3669 = vadd.f32 %v3647, %v3649
    %v3670 = vadd.f32 %v3668, 0.0001
    %v3671 = vadd.f32 %v3669, 0.0001
    %v3672 = vadd.f32 %v3652, %v3654
    %v3673 = vadd.f32 %v3653, %v3655
    %v3674 = vadd.f32 %v3672, 0.0009
    %v3675 = vadd.f32 %v3673, 0.0009
    %v3676 = vmul.f32 %v3670, %v3674
    %v3677 = vmul.f32 %v3671, %v3675
    %v3678 = vrcp.pop %v3676
    %v3679 = vmul.f32 %v3666, %v3678
    %v3680 = vrcp.pop %v3677
    %v3681 = vmul.f32 %v3667, %v3680
    %v3682 = vadd.f32 %v3679, %v3681
    %3683 = vadd.xlane.f32.xlu0 %v3682
    %v3684 = vpop.xlane.xlu0 %3683
    %v3685 = vrot.slane %v3684, 4
    %v3686 = vadd.f32 %v3684, %v3685
    %v3687 = vrot.slane %v3686, 2
    %v3688 = vadd.f32 %v3686, %v3687
    %v3689 = vrot.slane %v3688, 1
    %v3690 = vadd.f32 %v3688, %v3689
    %s3691 = vtos %v3690
    %s3692 = scalar_lea.smem [#allocation10], 0
    %3693 = sst [smem:[%s3692]] %s3691
    // Predicated region
    $region34: #{tpu_custom_call.1} parent=1 // pred_check
      _
    $region35: #{tpu_custom_call.1} parent=1 // pred_check_branch
      %3695 = sbr.rel (0) target = $region37
    $region36: #{tpu_custom_call.1} parent=1 // pred_region
      %s3697 = ssub.s32 16, 16
      %3698 = vsyncadd [#allocation4], %s3697
      %3701 = dma.smem_to_hbm [#allocation10], 16, %s4, [#allocation4]
    $region37: #{tpu_custom_call.1} parent=1 // pred_fallthru
      _
    // Predicated region
    $region38: #{tpu_custom_call.1} parent=1 // pred_check
      _
    $region39: #{tpu_custom_call.1} parent=1 // pred_check_branch
      %3703 = sbr.rel (0) target = $region41
    $region40: #{tpu_custom_call.1} parent=1 // pred_region
      %3704 = dma.done [#allocation4], 16
    $region41: #{tpu_custom_call.1} parent=1 // pred_fallthru
      _
    %3705 = sfence
    %3706 = vsyncpa [#allocation3], 1
    %3707 = vsyncpa [#allocation6], 1
    %3708 = vsyncpa [#allocation9], 1
    %3709 = vsyncpa [#allocation4], 1

</llo_original>
